<compile_context>
chip_gen: v5e
topology: v5e:2x2
jax: 0.10.0
libtpu: 0.0.40
codegen_flags: <defaults>
</compile_context>

<pallas_src>
import jax
import jax.numpy as jnp
from jax.experimental import pallas as pl
from jax.experimental.pallas import tpu as pltpu

EMBED_SIZE = 1024      # default embed_size in Pipeline.__init__
CONV_OUT = 256         # Conv1d out channels / embed_vp in features
KERNEL = 7             # Conv1d kernel size == per-token feature width
NUM_CLASSES = 2        # networking_head output (CrossEntropy over 2 classes)
HEAD_PAD = 128         # logits padded to a full lane width (lane-dense stores)
LN_EPS = 1e-5
LEAKY_SLOPE = 0.01     # torch.nn.LeakyReLU default


def pipeline_kernel(x_ref, wc_ref, wv_ref, wh_ref, vec_ref, logits_ref):
    # Row tile for this grid step; single bf16 cast feeds the MXU.
    x = x_ref[...].astype(jnp.bfloat16)                       # [T, 7]

    # Packed small per-feature vectors (static slices -> zero-cost views).
    bc   = vec_ref[0:1, 0:CONV_OUT]                           # [1, 256] conv bias
    bv   = vec_ref[1:2, :]                                    # [1, E]   embed_vp bias
    wsum = vec_ref[2:3, 0:HEAD_PAD]                           # [1, 128] colsum(gamma * Wh)
    bhp  = vec_ref[3:4, 0:HEAD_PAD]                           # [1, 128] beta @ Wh + bh

    # conv1d(1, 256, 7) on a length-7 token == Linear(7, 256); LeakyReLU as max(h, a*h)
    # (2 VPU ops per vreg instead of cmp+select+mul).
    h = jnp.dot(x, wc_ref[...], preferred_element_type=jnp.float32) + bc
    h = jnp.maximum(h, LEAKY_SLOPE * h)                       # [T, 256] f32

    # embed_vp: Linear(256, E). bf16 MXU inputs, f32 accumulation.
    e = jnp.dot(h.astype(jnp.bfloat16), wv_ref[...],
                preferred_element_type=jnp.float32) + bv      # [T, E] f32

    # Single-pass LayerNorm statistics (f32): var = E[e^2] - mu^2, guarded for rsqrt.
    mu = jnp.mean(e, axis=-1, keepdims=True)                  # [T, 1]
    ms = jnp.mean(e * e, axis=-1, keepdims=True)              # [T, 1]
    inv_std = jax.lax.rsqrt(jnp.maximum(ms - mu * mu, 0.0) + LN_EPS)

    # embed_ln affine + per-row scale folded into the head matmul:
    #   ((e - mu)*inv_std*gamma + beta) @ Wh + bh
    #     = inv_std * (e @ (gamma*Wh) - mu * colsum(gamma*Wh)) + (beta @ Wh + bh)
    # e_ln is never materialized; only tiny [T,128] epilogue ops remain.
    p = jnp.dot(e.astype(jnp.bfloat16), wh_ref[...],
                preferred_element_type=jnp.float32)           # [T, 128] f32
    logits = inv_std * (p - mu * wsum) + bhp
    logits_ref[...] = logits.astype(logits_ref.dtype)


def _pick_tile(n):
    """Largest row tile (multiple of 128) that still leaves >=2 grid steps (v7x megacore)."""
    for t in (1024, 512, 256):
        if n >= 2 * t:
            return t
    return 128


def fused_embed_head(x_tok, params):
    """x_tok: [N, 7] f32 token rows. Returns [N_pad, 128] bf16 padded logits."""
    n = x_tok.shape[0]
    tile_n = _pick_tile(n)
    n_pad = ((n + tile_n - 1) // tile_n) * tile_n
    if n_pad != n:
        x_tok = jnp.pad(x_tok, ((0, n_pad - n), (0, 0)))
    grid = (n_pad // tile_n,)

    cost = pl.CostEstimate(
        flops=2 * n_pad * (KERNEL * CONV_OUT + CONV_OUT * EMBED_SIZE + EMBED_SIZE * HEAD_PAD),
        transcendentals=n_pad,  # one rsqrt per row
        bytes_accessed=(n_pad * (KERNEL * 4 + HEAD_PAD * 2)
                        + KERNEL * CONV_OUT * 2
                        + CONV_OUT * EMBED_SIZE * 2
                        + EMBED_SIZE * HEAD_PAD * 2
                        + 8 * EMBED_SIZE * 4),
    )

    # Large tiles need more scoped VMEM than the v5e default (16 MiB).
    vmem_limit = 40 * 1024 * 1024 if tile_n >= 512 else None

    logits = pl.pallas_call(
        pipeline_kernel,
        grid=grid,
        in_specs=[
            pl.BlockSpec((tile_n, KERNEL), lambda i: (i, 0)),           # x rows (pipelined)
            pl.BlockSpec((KERNEL, CONV_OUT), lambda i: (0, 0)),         # wc   (resident, bf16)
            pl.BlockSpec((CONV_OUT, EMBED_SIZE), lambda i: (0, 0)),     # wv   (resident, bf16)
            pl.BlockSpec((EMBED_SIZE, HEAD_PAD), lambda i: (0, 0)),     # gamma*wh (resident, bf16)
            pl.BlockSpec((8, EMBED_SIZE), lambda i: (0, 0)),            # packed bc/bv/wsum/bias
        ],
        out_specs=pl.BlockSpec((tile_n, HEAD_PAD), lambda i: (i, 0)),
        out_shape=jax.ShapeDtypeStruct((n_pad, HEAD_PAD), jnp.bfloat16),
        compiler_params=pltpu.CompilerParams(
            dimension_semantics=("parallel",),      # rows independent -> megacore on v7x
            vmem_limit_bytes=vmem_limit,
        ),
        cost_estimate=cost,
    )(x_tok, params["wc"], params["wv"], params["wh"], params["vec"])
    return logits


def init_params(key):
    ks = jax.random.split(key, 8)
    scale = 0.02

    # Conv1d(1, 256, 7): torch weight [256, 1, 7] -> stored transposed as [7, 256]
    wc = scale * jax.random.normal(ks[0], (KERNEL, CONV_OUT), jnp.float32)
    bc = scale * jax.random.normal(ks[1], (CONV_OUT,), jnp.float32)
    # embed_vp: Linear(256, embed_size) -> [256, E]
    wv = scale * jax.random.normal(ks[2], (CONV_OUT, EMBED_SIZE), jnp.float32)
    bv = scale * jax.random.normal(ks[3], (EMBED_SIZE,), jnp.float32)
    # embed_ln
    gamma = jnp.ones((EMBED_SIZE,), jnp.float32)
    beta = jnp.zeros((EMBED_SIZE,), jnp.float32)
    # plm.networking_head stub: Linear(embed_size, 2)
    wh = scale * jax.random.normal(ks[4], (EMBED_SIZE, NUM_CLASSES), jnp.float32)
    bh = scale * jax.random.normal(ks[5], (NUM_CLASSES,), jnp.float32)
    # label_embed: Embedding(2, 7)
    label_embed = scale * jax.random.normal(ks[6], (2, KERNEL), jnp.float32)

    # Pad head to 128 lanes (lane-dense output) and fold LN affine into it (host precompute).
    wh_pad = jnp.zeros((EMBED_SIZE, HEAD_PAD), jnp.float32).at[:, :NUM_CLASSES].set(wh)
    bh_pad = jnp.zeros((HEAD_PAD,), jnp.float32).at[:NUM_CLASSES].set(bh)
    wh_fold = gamma[:, None] * wh_pad            # W' = gamma * Wh
    wsum = gamma @ wh_pad                        # colsum(gamma * Wh) for the -mu term
    bh_fold = beta @ wh_pad + bh_pad             # b' = beta @ Wh + bh

    # Pack the small per-feature vectors into one [8, E] f32 operand.
    vec = jnp.zeros((8, EMBED_SIZE), jnp.float32)
    vec = vec.at[0, :CONV_OUT].set(bc)
    vec = vec.at[1, :].set(bv)
    vec = vec.at[2, :HEAD_PAD].set(wsum)
    vec = vec.at[3, :HEAD_PAD].set(bh_fold)

    return {
        "wc": wc.astype(jnp.bfloat16),
        "wv": wv.astype(jnp.bfloat16),
        "wh": wh_fold.astype(jnp.bfloat16),
        "vec": vec,
        "label_embed": label_embed,
        # f32 copies kept only for the pure-JAX reference check
        "_wc_f32": wc, "_wv_f32": wv, "_wh_f32": wh, "_bc": bc, "_bv": bv, "_bh": bh,
        "_gamma": gamma, "_beta": beta,
    }


def pipeline_forward(params, history, future):
    """Teacher-forcing forward -> scalar CE loss (mirrors Pipeline.forward).

    history: [B, T_hist, 7] float32  (history viewport trajectory)
    future : [B, T_fut]      int32   labels in {0, 1}
    """
    b, t_hist, k = history.shape
    t_fut = future.shape[1]

    # label_embed(future) and concat along sequence axis (glue gather)
    fut_emb = jnp.take(params["label_embed"], future, axis=0)            # [B, T_fut, 7]
    x = jnp.concatenate([history, fut_emb], axis=1)                      # [B, S, 7]
    s = t_hist + t_fut

    # flatten tokens; fused conv/LN/head kernel over all rows
    n = b * s
    logits_pad = fused_embed_head(x.reshape(n, k), params)               # [N_pad, 128] bf16
    logits = logits_pad[:n, :NUM_CLASSES].astype(jnp.float32).reshape(b, s, NUM_CLASSES)

    # plm(..., teacher_forcing=True) returns logits over the future window
    pred = logits[:, -t_fut:, :]                                         # [B, T_fut, 2]

    # nn.CrossEntropyLoss() (mean reduction) on pred.view(-1, 2) vs future.view(-1)
    pred_flat = pred.reshape(-1, NUM_CLASSES)
    gt_flat = future.reshape(-1)
    logz = jax.nn.logsumexp(pred_flat, axis=-1)
    picked = jnp.take_along_axis(pred_flat, gt_flat[:, None], axis=-1)[:, 0]
    loss = jnp.mean(logz - picked)
    return loss, pred


def _reference_pred(params, history, future):
    """Pure-JAX f32 reference of the module's per-token path (for correctness checking)."""
    fut_emb = jnp.take(params["label_embed"], future, axis=0)
    x = jnp.concatenate([history, fut_emb], axis=1)
    b, s, k = x.shape
    xt = x.reshape(b * s, k)
    h = xt @ params["_wc_f32"] + params["_bc"]
    h = jnp.where(h >= 0, h, LEAKY_SLOPE * h)
    e = h @ params["_wv_f32"] + params["_bv"]
    mu = jnp.mean(e, axis=-1, keepdims=True)
    var = jnp.mean(jnp.square(e - mu), axis=-1, keepdims=True)
    e_ln = (e - mu) * jax.lax.rsqrt(var + LN_EPS) * params["_gamma"] + params["_beta"]
    logits = e_ln @ params["_wh_f32"] + params["_bh"]
    t_fut = future.shape[1]
    return logits.reshape(b, s, NUM_CLASSES)[:, -t_fut:, :]


if __name__ == "__main__":
    key = jax.random.PRNGKey(0)
    pkey, hkey, fkey = jax.random.split(key, 3)

    params = init_params(pkey)

    # batch=1 (the reference .view(1, 256) implies batch size 1), T_hist=8, fut_window=4
    B, T_HIST, T_FUT = 1, 8, 4
    history = jax.random.normal(hkey, (B, T_HIST, KERNEL), jnp.float32)
    future = jax.random.randint(fkey, (B, T_FUT), 0, 2, jnp.int32)

    loss, pred = jax.jit(pipeline_forward)(params, history, future)
    jax.block_until_ready((loss, pred))

    assert pred.shape == (B, T_FUT, NUM_CLASSES)
    assert bool(jnp.isfinite(loss))

    # correctness check vs pure-JAX f32 reference (tolerance covers bf16 MXU inputs/output)
    ref_pred = _reference_pred(params, history, future)
    assert jnp.allclose(pred, ref_pred, atol=5e-2, rtol=1e-1), (
        f"max abs diff {float(jnp.max(jnp.abs(pred - ref_pred)))}")

    print("KERNEL_OK")
</pallas_src>

<mosaic_0001>
module attributes {stable_mosaic.version = 11 : i64} {
  func.func @pipeline_kernel(%arg0: i32, %arg1: memref<128x7xf32, #tpu.memory_space<vmem>>, %arg2: memref<7x256xbf16, #tpu.memory_space<vmem>>, %arg3: memref<256x1024xbf16, #tpu.memory_space<vmem>>, %arg4: memref<1024x128xbf16, #tpu.memory_space<vmem>>, %arg5: memref<8x1024xf32, #tpu.memory_space<vmem>>, %arg6: memref<128x128xbf16, #tpu.memory_space<vmem>>) attributes {dimension_semantics = [#tpu.dimension_semantics<parallel>], iteration_bounds = array<i64: 1>, scalar_prefetch = 0 : i64, scratch_operands = 0 : i64, tpu.core_type = #tpu.core_type<tc>, window_params = [{transform_indices = @transform_0, window_bounds = array<i64: 128, 7>}, {pipeline_mode = #tpu.pipeline_mode<synchronous>, transform_indices = @transform_1, window_bounds = array<i64: 7, 256>}, {pipeline_mode = #tpu.pipeline_mode<synchronous>, transform_indices = @transform_2, window_bounds = array<i64: 256, 1024>}, {pipeline_mode = #tpu.pipeline_mode<synchronous>, transform_indices = @transform_3, window_bounds = array<i64: 1024, 128>}, {pipeline_mode = #tpu.pipeline_mode<synchronous>, transform_indices = @transform_4, window_bounds = array<i64: 8, 1024>}, {transform_indices = @transform_5, window_bounds = array<i64: 128, 128>}]} {
    %c0 = arith.constant 0 : index
    %c0_0 = arith.constant 0 : index
    %0 = vector.load %arg1[%c0, %c0_0] : memref<128x7xf32, #tpu.memory_space<vmem>>, vector<128x7xf32>
    %1 = arith.truncf %0 : vector<128x7xf32> to vector<128x7xbf16>
    %c0_1 = arith.constant 0 : index
    %c0_2 = arith.constant 0 : index
    %2 = vector.load %arg5[%c0_1, %c0_2] : memref<8x1024xf32, #tpu.memory_space<vmem>>, vector<1x256xf32>
    %c1 = arith.constant 1 : index
    %c0_3 = arith.constant 0 : index
    %3 = vector.load %arg5[%c1, %c0_3] : memref<8x1024xf32, #tpu.memory_space<vmem>>, vector<1x1024xf32>
    %c2 = arith.constant 2 : index
    %c0_4 = arith.constant 0 : index
    %4 = vector.load %arg5[%c2, %c0_4] : memref<8x1024xf32, #tpu.memory_space<vmem>>, vector<1x128xf32>
    %c3 = arith.constant 3 : index
    %c0_5 = arith.constant 0 : index
    %5 = vector.load %arg5[%c3, %c0_5] : memref<8x1024xf32, #tpu.memory_space<vmem>>, vector<1x128xf32>
    %c0_6 = arith.constant 0 : index
    %c0_7 = arith.constant 0 : index
    %6 = vector.load %arg2[%c0_6, %c0_7] : memref<7x256xbf16, #tpu.memory_space<vmem>>, vector<7x256xbf16>
    %cst = arith.constant dense<0.000000e+00> : vector<128x256xf32>
    %7 = tpu.matmul %1, %6, %cst {dimension_numbers = #tpu.dot_dimension_numbers<[1], [0], [0], [1], [0, 0, 1, 1], [], []>} : vector<128x7xbf16>, vector<7x256xbf16>, vector<128x256xf32> -> vector<128x256xf32>
    %8 = vector.broadcast %2 : vector<1x256xf32> to vector<128x256xf32>
    %9 = arith.addf %7, %8 : vector<128x256xf32>
    %cst_8 = arith.constant 0.00999999977 : f32
    %10 = vector.broadcast %cst_8 : f32 to vector<128x256xf32>
    %11 = arith.mulf %10, %9 : vector<128x256xf32>
    %12 = arith.maximumf %9, %11 : vector<128x256xf32>
    %13 = arith.truncf %12 : vector<128x256xf32> to vector<128x256xbf16>
    %c0_9 = arith.constant 0 : index
    %c0_10 = arith.constant 0 : index
    %14 = vector.load %arg3[%c0_9, %c0_10] : memref<256x1024xbf16, #tpu.memory_space<vmem>>, vector<256x1024xbf16>
    %cst_11 = arith.constant dense<0.000000e+00> : vector<128x1024xf32>
    %15 = tpu.matmul %13, %14, %cst_11 {dimension_numbers = #tpu.dot_dimension_numbers<[1], [0], [0], [1], [0, 0, 1, 1], [], []>} : vector<128x256xbf16>, vector<256x1024xbf16>, vector<128x1024xf32> -> vector<128x1024xf32>
    %16 = vector.broadcast %3 : vector<1x1024xf32> to vector<128x1024xf32>
    %17 = arith.addf %15, %16 : vector<128x1024xf32>
    %cst_12 = arith.constant dense<0.000000e+00> : vector<128xf32>
    %18 = vector.multi_reduction <add>, %17, %cst_12 [1] : vector<128x1024xf32> to vector<128xf32>
    %19 = vector.shape_cast %18 : vector<128xf32> to vector<128x1xf32>
    %cst_13 = arith.constant 1.024000e+03 : f32
    %20 = vector.broadcast %cst_13 : f32 to vector<128x1xf32>
    %21 = arith.divf %19, %20 : vector<128x1xf32>
    %22 = arith.mulf %17, %17 : vector<128x1024xf32>
    %cst_14 = arith.constant dense<0.000000e+00> : vector<128xf32>
    %23 = vector.multi_reduction <add>, %22, %cst_14 [1] : vector<128x1024xf32> to vector<128xf32>
    %24 = vector.shape_cast %23 : vector<128xf32> to vector<128x1xf32>
    %cst_15 = arith.constant 1.024000e+03 : f32
    %25 = vector.broadcast %cst_15 : f32 to vector<128x1xf32>
    %26 = arith.divf %24, %25 : vector<128x1xf32>
    %27 = arith.mulf %21, %21 : vector<128x1xf32>
    %28 = arith.subf %26, %27 : vector<128x1xf32>
    %cst_16 = arith.constant 0.000000e+00 : f32
    %29 = vector.broadcast %cst_16 : f32 to vector<128x1xf32>
    %30 = arith.maximumf %28, %29 : vector<128x1xf32>
    %cst_17 = arith.constant 9.99999974E-6 : f32
    %31 = vector.broadcast %cst_17 : f32 to vector<128x1xf32>
    %32 = arith.addf %30, %31 : vector<128x1xf32>
    %33 = math.rsqrt %32 : vector<128x1xf32>
    %34 = arith.truncf %17 : vector<128x1024xf32> to vector<128x1024xbf16>
    %c0_18 = arith.constant 0 : index
    %c0_19 = arith.constant 0 : index
    %35 = vector.load %arg4[%c0_18, %c0_19] : memref<1024x128xbf16, #tpu.memory_space<vmem>>, vector<1024x128xbf16>
    %cst_20 = arith.constant dense<0.000000e+00> : vector<128x128xf32>
    %36 = tpu.matmul %34, %35, %cst_20 {dimension_numbers = #tpu.dot_dimension_numbers<[1], [0], [0], [1], [0, 0, 1, 1], [], []>} : vector<128x1024xbf16>, vector<1024x128xbf16>, vector<128x128xf32> -> vector<128x128xf32>
    %37 = vector.broadcast %21 : vector<128x1xf32> to vector<128x128xf32>
    %38 = vector.broadcast %4 : vector<1x128xf32> to vector<128x128xf32>
    %39 = arith.mulf %37, %38 : vector<128x128xf32>
    %40 = arith.subf %36, %39 : vector<128x128xf32>
    %41 = vector.broadcast %33 : vector<128x1xf32> to vector<128x128xf32>
    %42 = arith.mulf %41, %40 : vector<128x128xf32>
    %43 = vector.broadcast %5 : vector<1x128xf32> to vector<128x128xf32>
    %44 = arith.addf %42, %43 : vector<128x128xf32>
    %45 = arith.truncf %44 : vector<128x128xf32> to vector<128x128xbf16>
    %c0_21 = arith.constant 0 : index
    %c0_22 = arith.constant 0 : index
    %46 = vector.load %arg6[%c0_21, %c0_22] : memref<128x128xbf16, #tpu.memory_space<vmem>>, vector<128x128xbf16>
    tpu.vector_store %arg6[%c0_21, %c0_22], %45 {strides = array<i32>} : memref<128x128xbf16, #tpu.memory_space<vmem>>, vector<128x128xbf16>,
    return
  }
  func.func @transform_0(%arg0: i32) -> (i32, i32) {
    %c0_i32 = arith.constant 0 : i32
    %c0_i32_0 = arith.constant 0 : i32
    return %arg0, %c0_i32 : i32, i32
  }
  func.func @transform_1(%arg0: i32) -> (i32, i32) {
    %c0_i32 = arith.constant 0 : i32
    %c0_i32_0 = arith.constant 0 : i32
    %c0_i32_1 = arith.constant 0 : i32
    return %c0_i32, %c0_i32_0 : i32, i32
  }
  func.func @transform_2(%arg0: i32) -> (i32, i32) {
    %c0_i32 = arith.constant 0 : i32
    %c0_i32_0 = arith.constant 0 : i32
    %c0_i32_1 = arith.constant 0 : i32
    return %c0_i32, %c0_i32_0 : i32, i32
  }
  func.func @transform_3(%arg0: i32) -> (i32, i32) {
    %c0_i32 = arith.constant 0 : i32
    %c0_i32_0 = arith.constant 0 : i32
    %c0_i32_1 = arith.constant 0 : i32
    return %c0_i32, %c0_i32_0 : i32, i32
  }
  func.func @transform_4(%arg0: i32) -> (i32, i32) {
    %c0_i32 = arith.constant 0 : i32
    %c0_i32_0 = arith.constant 0 : i32
    %c0_i32_1 = arith.constant 0 : i32
    return %c0_i32, %c0_i32_0 : i32, i32
  }
  func.func @transform_5(%arg0: i32) -> (i32, i32) {
    %c0_i32 = arith.constant 0 : i32
    %c0_i32_0 = arith.constant 0 : i32
    return %arg0, %c0_i32 : i32, i32
  }
}

</mosaic_0001>

<llo_original>
// kernel: pipeline_forward.1
$region0: #{pipeline_forward.1}
  #allocation0 [shape = 'u32[]', space=smem, size = 0x4, offset = 0x4, fixed_abs, tag = 'smem constant byte address 0x4 - core index']
  #allocation1 [shape = 'u32[72,128]{1,0:T(1,128)}', space=vmem, size = 0x9000, scoped, tag = 'internal scratch']
  %s0 = inlined_call_operand.vmem [shape: f32[128,7], index: 0, kind: input, shape index: {}]
  %s1 = inlined_call_operand.vmem [shape: bf16[7,256], index: 1, kind: input, shape index: {}]
  %s2 = inlined_call_operand.hbm [shape: bf16[256,1024], index: 2, kind: input, shape index: {}]
  %s3 = inlined_call_operand.hbm [shape: bf16[1024,128], index: 3, kind: input, shape index: {}]
  %s4 = inlined_call_operand.vmem [shape: f32[8,1024], index: 4, kind: input, shape index: {}]
  %s5 = inlined_call_operand.vmem [shape: bf16[128,128], index: 5, kind: output, shape index: {}]
  %s6 = sld [smem:[#allocation0]]
  $region38: #{pipeline_forward.1} parent=0
    _
  %s8 = ssub.s32 1, %s6
  %s9 = scalar_select 0, %s8, %s6
  $region1: #{pipeline_forward.1} parent=0
    #allocation2 [shape = 'u8[524288]{0}', space=vmem, size = 0x80000, scoped, tag = 'input window, operand 2, single buffered']
    #allocation3 [shape = 's32[1]{0}', space=sflag, size = 0x4, scoped, tag = 'scoped memory for pipeline_forward.1']
    #allocation4 [shape = 'u8[262144]{0}', space=vmem, size = 0x40000, scoped, tag = 'input window, operand 3, single buffered']
    #allocation5 [shape = 's32[1]{0}', space=sflag, size = 0x4, scoped, tag = 'scoped memory for pipeline_forward.1']
    %10 = vsyncpa [#allocation3], 0
    %11 = vsyncpa [#allocation5], 0
    // Predicated region
    $region2: #{pipeline_forward.1} parent=1 // pred_check
      _
    $region3: #{pipeline_forward.1} parent=1 // pred_check_branch
      %13 = sbr.rel (0) target = $region5
    $region4: #{pipeline_forward.1} parent=1 // pred_region
      _
    $region5: #{pipeline_forward.1} parent=1 // pred_fallthru
      _
    // Predicated region
    $region6: #{pipeline_forward.1} parent=1 // pred_check
      _
    $region7: #{pipeline_forward.1} parent=1 // pred_check_branch
      %15 = sbr.rel (0) target = $region9
    $region8: #{pipeline_forward.1} parent=1 // pred_region
      _
    $region9: #{pipeline_forward.1} parent=1 // pred_fallthru
      _
    // Predicated region
    $region10: #{pipeline_forward.1} parent=1 // pred_check
      _
    $region11: #{pipeline_forward.1} parent=1 // pred_check_branch
      %17 = sbr.rel (0) target = $region13
    $region12: #{pipeline_forward.1} parent=1 // pred_region
      %19 = vsyncadd [#allocation3], 0
      %s20 = sshll.u32 %s2, 4
      %s21 = int_to_ptr.hbm [resolvable:$true] %s20
      %s22 = sshll.u32 [#allocation2], 4
      %s23 = int_to_ptr.vmem [resolvable:$true] %s22
      %28 = dma.hbm_to_vmem [thread:$0]  %s21, 16384, %s23, [#allocation3], 512, 512, 32
    $region13: #{pipeline_forward.1} parent=1 // pred_fallthru
      _
    // Predicated region
    $region14: #{pipeline_forward.1} parent=1 // pred_check
      _
    $region15: #{pipeline_forward.1} parent=1 // pred_check_branch
      %30 = sbr.rel (0) target = $region17
    $region16: #{pipeline_forward.1} parent=1 // pred_region
      %32 = vsyncadd [#allocation5], 0
      %s33 = sshll.u32 %s3, 4
      %s34 = int_to_ptr.hbm [resolvable:$true] %s33
      %s35 = sshll.u32 [#allocation4], 4
      %s36 = int_to_ptr.vmem [resolvable:$true] %s35
      %41 = dma.hbm_to_vmem [thread:$0]  %s34, 8192, %s36, [#allocation5], 64, 64, 4
    $region17: #{pipeline_forward.1} parent=1 // pred_fallthru
      _
    // Predicated region
    $region18: #{pipeline_forward.1} parent=1 // pred_check
      _
    $region19: #{pipeline_forward.1} parent=1 // pred_check_branch
      %43 = sbr.rel (0) target = $region21
    $region20: #{pipeline_forward.1} parent=1 // pred_region
      _
    $region21: #{pipeline_forward.1} parent=1 // pred_fallthru
      _
    // Predicated region
    $region22: #{pipeline_forward.1} parent=1 // pred_check
      _
    $region23: #{pipeline_forward.1} parent=1 // pred_check_branch
      %45 = sbr.rel (0) target = $region25
    $region24: #{pipeline_forward.1} parent=1 // pred_region
      %47 = dma.done [#allocation3], 16384
    $region25: #{pipeline_forward.1} parent=1 // pred_fallthru
      _
    // Predicated region
    $region26: #{pipeline_forward.1} parent=1 // pred_check
      _
    $region27: #{pipeline_forward.1} parent=1 // pred_check_branch
      %49 = sbr.rel (0) target = $region29
    $region28: #{pipeline_forward.1} parent=1 // pred_region
      %51 = dma.done [#allocation5], 8192
    $region29: #{pipeline_forward.1} parent=1 // pred_fallthru
      _
    %v53 = vld [vmem:[%s0] sm:$0xff]
    %v54 = vld [vmem:[%s0 + $0x8] sm:$0xff]
    %v55 = vld [vmem:[%s0 + $0x10] sm:$0xff]
    %v56 = vld [vmem:[%s0 + $0x18] sm:$0xff]
    %v57 = vld [vmem:[%s0 + $0x20] sm:$0xff]
    %v58 = vld [vmem:[%s0 + $0x28] sm:$0xff]
    %v59 = vld [vmem:[%s0 + $0x30] sm:$0xff]
    %v60 = vld [vmem:[%s0 + $0x38] sm:$0xff]
    %v61 = vld [vmem:[%s0 + $0x40] sm:$0xff]
    %v62 = vld [vmem:[%s0 + $0x48] sm:$0xff]
    %v63 = vld [vmem:[%s0 + $0x50] sm:$0xff]
    %v64 = vld [vmem:[%s0 + $0x58] sm:$0xff]
    %v65 = vld [vmem:[%s0 + $0x60] sm:$0xff]
    %v66 = vld [vmem:[%s0 + $0x68] sm:$0xff]
    %v67 = vld [vmem:[%s0 + $0x70] sm:$0xff]
    %v68 = vld [vmem:[%s0 + $0x78] sm:$0xff]
    %v69 = vpack.c.bf16 %v54, %v53
    %v70 = vpack.c.bf16 %v56, %v55
    %v71 = vpack.c.bf16 %v58, %v57
    %v72 = vpack.c.bf16 %v60, %v59
    %v73 = vpack.c.bf16 %v62, %v61
    %v74 = vpack.c.bf16 %v64, %v63
    %v75 = vpack.c.bf16 %v66, %v65
    %v76 = vpack.c.bf16 %v68, %v67
    %v77 = vld [vmem:[%s4] ss:$8 sm:$0x3]
    %s78 = scalar_lea.vmem %s4, 1
    %v79 = vld [vmem:[%s78] ss:$8 sm:$0xf]
    %v80 = vld [vmem:[%s78] ss:$8 sm:$0xf0]
    %v81 = vor.u32 %v79, %v80
    %v82 = vld [vmem:[%s4 + $0x2] ss:$0 sm:$0xff]
    %v83 = vld [vmem:[%s4 + $0x3] ss:$0 sm:$0xff]
    %v84 = vld [vmem:[%s1] sm:$0xff]
    %v86 = vperm.slane %v77, 0
    %v87 = vperm.slane %v77, 1
    %v91 = vunpack.c.l.b16 %v84
    %v92 = vunpack.c.h.b16 %v84
    %v93 = vpack.c.b16 %v91, %v91
    %v94 = vpack.c.b16 %v92, %v92
    %vm95 = vcmask 56320
    %v97 = vsel %vm95, %v69, 0
    %v100 = vsel %vm95, %v70, 0
    %v103 = vsel %vm95, %v71, 0
    %v106 = vsel %vm95, %v72, 0
    %v109 = vsel %vm95, %v73, 0
    %v112 = vsel %vm95, %v74, 0
    %v115 = vsel %vm95, %v75, 0
    %v118 = vsel %vm95, %v76, 0
    %vm120 = vcmask 1042432
    %vm121 = vcmask 1043456
    %v122 = vsel %vm120, 4294967295, 65535
    %v123 = vsel %vm121, %v122, 0
    %v125 = vand.u32 %v93, %v123
    %v128 = vand.u32 %v94, %v123
    %130 = vmatpush.bf16.msra.mxu0 0
    %131 = vmatpush.bf16.msra.mxu0 0
    %132 = vmatpush.bf16.msra.mxu0 0
    %133 = vmatpush.bf16.msra.mxu0 0
    %134 = vmatpush.bf16.msra.mxu0 0
    %135 = vmatpush.bf16.msra.mxu0 0
    %136 = vmatpush.bf16.msra.mxu0 0
    %137 = vmatpush.bf16.msra.mxu0 %v125
    %138 = vmatmul.bf16.gmra.mxu0 %v97
    %v139 = vpop.f32.mrf.mxu0
    %v140 = vadd.f32 %v86, %v139
    %v141 = vpop.f32.mrf.mxu0
    %v142 = vadd.f32 %v86, %v141
    %143 = vmatmul.bf16.gmra.mxu0 %v100
    %v144 = vpop.f32.mrf.mxu0
    %v145 = vadd.f32 %v86, %v144
    %v146 = vpop.f32.mrf.mxu0
    %v147 = vadd.f32 %v86, %v146
    %148 = vmatmul.bf16.gmra.mxu0 %v103
    %v149 = vpop.f32.mrf.mxu0
    %v150 = vadd.f32 %v86, %v149
    %v151 = vpop.f32.mrf.mxu0
    %v152 = vadd.f32 %v86, %v151
    %153 = vmatmul.bf16.gmra.mxu0 %v106
    %v154 = vpop.f32.mrf.mxu0
    %v155 = vadd.f32 %v86, %v154
    %v156 = vpop.f32.mrf.mxu0
    %v157 = vadd.f32 %v86, %v156
    %158 = vmatmul.bf16.gmra.mxu0 %v109
    %v159 = vpop.f32.mrf.mxu0
    %v160 = vadd.f32 %v86, %v159
    %v161 = vpop.f32.mrf.mxu0
    %v162 = vadd.f32 %v86, %v161
    %163 = vmatmul.bf16.gmra.mxu0 %v112
    %v164 = vpop.f32.mrf.mxu0
    %v165 = vadd.f32 %v86, %v164
    %v166 = vpop.f32.mrf.mxu0
    %v167 = vadd.f32 %v86, %v166
    %168 = vmatmul.bf16.gmra.mxu0 %v115
    %v169 = vpop.f32.mrf.mxu0
    %v170 = vadd.f32 %v86, %v169
    %v171 = vpop.f32.mrf.mxu0
    %v172 = vadd.f32 %v86, %v171
    %173 = vmatmul.bf16.gmra.mxu0 %v118
    %v174 = vpop.f32.mrf.mxu0
    %v175 = vadd.f32 %v86, %v174
    %v176 = vpop.f32.mrf.mxu0
    %v177 = vadd.f32 %v86, %v176
    %178 = vdwg.mxu0
    %179 = vmatpush.bf16.msra.mxu0 0
    %180 = vmatpush.bf16.msra.mxu0 0
    %181 = vmatpush.bf16.msra.mxu0 0
    %182 = vmatpush.bf16.msra.mxu0 0
    %183 = vmatpush.bf16.msra.mxu0 0
    %184 = vmatpush.bf16.msra.mxu0 0
    %185 = vmatpush.bf16.msra.mxu0 0
    %186 = vmatpush.bf16.msra.mxu0 %v128
    %187 = vmatmul.bf16.gmra.mxu0 %v97
    %v188 = vpop.f32.mrf.mxu0
    %v189 = vadd.f32 %v87, %v188
    %v190 = vpop.f32.mrf.mxu0
    %v191 = vadd.f32 %v87, %v190
    %192 = vmatmul.bf16.gmra.mxu0 %v100
    %v193 = vpop.f32.mrf.mxu0
    %v194 = vadd.f32 %v87, %v193
    %v195 = vpop.f32.mrf.mxu0
    %v196 = vadd.f32 %v87, %v195
    %197 = vmatmul.bf16.gmra.mxu0 %v103
    %v198 = vpop.f32.mrf.mxu0
    %v199 = vadd.f32 %v87, %v198
    %v200 = vpop.f32.mrf.mxu0
    %v201 = vadd.f32 %v87, %v200
    %202 = vmatmul.bf16.gmra.mxu0 %v106
    %v203 = vpop.f32.mrf.mxu0
    %v204 = vadd.f32 %v87, %v203
    %v205 = vpop.f32.mrf.mxu0
    %v206 = vadd.f32 %v87, %v205
    %207 = vmatmul.bf16.gmra.mxu0 %v109
    %v208 = vpop.f32.mrf.mxu0
    %v209 = vadd.f32 %v87, %v208
    %v210 = vpop.f32.mrf.mxu0
    %v211 = vadd.f32 %v87, %v210
    %212 = vmatmul.bf16.gmra.mxu0 %v112
    %v213 = vpop.f32.mrf.mxu0
    %v214 = vadd.f32 %v87, %v213
    %v215 = vpop.f32.mrf.mxu0
    %v216 = vadd.f32 %v87, %v215
    %217 = vmatmul.bf16.gmra.mxu0 %v115
    %v218 = vpop.f32.mrf.mxu0
    %v219 = vadd.f32 %v87, %v218
    %v220 = vpop.f32.mrf.mxu0
    %v221 = vadd.f32 %v87, %v220
    %222 = vmatmul.bf16.gmra.mxu0 %v118
    %v223 = vpop.f32.mrf.mxu0
    %v224 = vadd.f32 %v87, %v223
    %v225 = vpop.f32.mrf.mxu0
    %v226 = vadd.f32 %v87, %v225
    %227 = vdwg.mxu0
    %v228 = vmul.f32 %v140, 0.01
    %v229 = vmul.f32 %v189, 0.01
    %v230 = vmul.f32 %v142, 0.01
    %v231 = vmul.f32 %v191, 0.01
    %v232 = vmul.f32 %v145, 0.01
    %v233 = vmul.f32 %v194, 0.01
    %v234 = vmul.f32 %v147, 0.01
    %v235 = vmul.f32 %v196, 0.01
    %v236 = vmul.f32 %v150, 0.01
    %v237 = vmul.f32 %v199, 0.01
    %v238 = vmul.f32 %v152, 0.01
    %v239 = vmul.f32 %v201, 0.01
    %v240 = vmul.f32 %v155, 0.01
    %v241 = vmul.f32 %v204, 0.01
    %v242 = vmul.f32 %v157, 0.01
    %v243 = vmul.f32 %v206, 0.01
    %v244 = vmul.f32 %v160, 0.01
    %v245 = vmul.f32 %v209, 0.01
    %v246 = vmul.f32 %v162, 0.01
    %v247 = vmul.f32 %v211, 0.01
    %v248 = vmul.f32 %v165, 0.01
    %v249 = vmul.f32 %v214, 0.01
    %v250 = vmul.f32 %v167, 0.01
    %v251 = vmul.f32 %v216, 0.01
    %v252 = vmul.f32 %v170, 0.01
    %v253 = vmul.f32 %v219, 0.01
    %v254 = vmul.f32 %v172, 0.01
    %v255 = vmul.f32 %v221, 0.01
    %v256 = vmul.f32 %v175, 0.01
    %v257 = vmul.f32 %v224, 0.01
    %v258 = vmul.f32 %v177, 0.01
    %v259 = vmul.f32 %v226, 0.01
    %v260 = vmax.f32 %v140, %v228
    %v261 = vmax.f32 %v189, %v229
    %v262 = vmax.f32 %v142, %v230
    %v263 = vmax.f32 %v191, %v231
    %v264 = vmax.f32 %v145, %v232
    %v265 = vmax.f32 %v194, %v233
    %v266 = vmax.f32 %v147, %v234
    %v267 = vmax.f32 %v196, %v235
    %v268 = vmax.f32 %v150, %v236
    %v269 = vmax.f32 %v199, %v237
    %v270 = vmax.f32 %v152, %v238
    %v271 = vmax.f32 %v201, %v239
    %v272 = vmax.f32 %v155, %v240
    %v273 = vmax.f32 %v204, %v241
    %v274 = vmax.f32 %v157, %v242
    %v275 = vmax.f32 %v206, %v243
    %v276 = vmax.f32 %v160, %v244
    %v277 = vmax.f32 %v209, %v245
    %v278 = vmax.f32 %v162, %v246
    %v279 = vmax.f32 %v211, %v247
    %v280 = vmax.f32 %v165, %v248
    %v281 = vmax.f32 %v214, %v249
    %v282 = vmax.f32 %v167, %v250
    %v283 = vmax.f32 %v216, %v251
    %v284 = vmax.f32 %v170, %v252
    %v285 = vmax.f32 %v219, %v253
    %v286 = vmax.f32 %v172, %v254
    %v287 = vmax.f32 %v221, %v255
    %v288 = vmax.f32 %v175, %v256
    %v289 = vmax.f32 %v224, %v257
    %v290 = vmax.f32 %v177, %v258
    %v291 = vmax.f32 %v226, %v259
    %v292 = vpack.c.bf16 %v262, %v260
    %v293 = vpack.c.bf16 %v263, %v261
    %v294 = vpack.c.bf16 %v266, %v264
    %v295 = vpack.c.bf16 %v267, %v265
    %v296 = vpack.c.bf16 %v270, %v268
    %v297 = vpack.c.bf16 %v271, %v269
    %v298 = vpack.c.bf16 %v274, %v272
    %v299 = vpack.c.bf16 %v275, %v273
    %v300 = vpack.c.bf16 %v278, %v276
    %v301 = vpack.c.bf16 %v279, %v277
    %v302 = vpack.c.bf16 %v282, %v280
    %v303 = vpack.c.bf16 %v283, %v281
    %v304 = vpack.c.bf16 %v286, %v284
    %v305 = vpack.c.bf16 %v287, %v285
    %v306 = vpack.c.bf16 %v290, %v288
    %v307 = vpack.c.bf16 %v291, %v289
    %v308 = vld [vmem:[#allocation2] sm:$0xff]
    %v309 = vld [vmem:[#allocation2 + $0x8] sm:$0xff]
    %v310 = vld [vmem:[#allocation2 + $0x10] sm:$0xff]
    %v311 = vld [vmem:[#allocation2 + $0x18] sm:$0xff]
    %v312 = vld [vmem:[#allocation2 + $0x20] sm:$0xff]
    %v313 = vld [vmem:[#allocation2 + $0x28] sm:$0xff]
    %v314 = vld [vmem:[#allocation2 + $0x30] sm:$0xff]
    %v315 = vld [vmem:[#allocation2 + $0x38] sm:$0xff]
    %v316 = vld [vmem:[#allocation2 + $0x40] sm:$0xff]
    %v317 = vld [vmem:[#allocation2 + $0x48] sm:$0xff]
    %v318 = vld [vmem:[#allocation2 + $0x50] sm:$0xff]
    %v319 = vld [vmem:[#allocation2 + $0x58] sm:$0xff]
    %v320 = vld [vmem:[#allocation2 + $0x60] sm:$0xff]
    %v321 = vld [vmem:[#allocation2 + $0x68] sm:$0xff]
    %v322 = vld [vmem:[#allocation2 + $0x70] sm:$0xff]
    %v323 = vld [vmem:[#allocation2 + $0x78] sm:$0xff]
    %v324 = vld [vmem:[#allocation2 + $0x80] sm:$0xff]
    %v325 = vld [vmem:[#allocation2 + $0x88] sm:$0xff]
    %v326 = vld [vmem:[#allocation2 + $0x90] sm:$0xff]
    %v327 = vld [vmem:[#allocation2 + $0x98] sm:$0xff]
    %v328 = vld [vmem:[#allocation2 + $0xa0] sm:$0xff]
    %v329 = vld [vmem:[#allocation2 + $0xa8] sm:$0xff]
    %v330 = vld [vmem:[#allocation2 + $0xb0] sm:$0xff]
    %v331 = vld [vmem:[#allocation2 + $0xb8] sm:$0xff]
    %v332 = vld [vmem:[#allocation2 + $0xc0] sm:$0xff]
    %v333 = vld [vmem:[#allocation2 + $0xc8] sm:$0xff]
    %v334 = vld [vmem:[#allocation2 + $0xd0] sm:$0xff]
    %v335 = vld [vmem:[#allocation2 + $0xd8] sm:$0xff]
    %v336 = vld [vmem:[#allocation2 + $0xe0] sm:$0xff]
    %v337 = vld [vmem:[#allocation2 + $0xe8] sm:$0xff]
    %v338 = vld [vmem:[#allocation2 + $0xf0] sm:$0xff]
    %v339 = vld [vmem:[#allocation2 + $0xf8] sm:$0xff]
    %v340 = vld [vmem:[#allocation2 + $0x100] sm:$0xff]
    %v341 = vld [vmem:[#allocation2 + $0x108] sm:$0xff]
    %v342 = vld [vmem:[#allocation2 + $0x110] sm:$0xff]
    %v343 = vld [vmem:[#allocation2 + $0x118] sm:$0xff]
    %v344 = vld [vmem:[#allocation2 + $0x120] sm:$0xff]
    %v345 = vld [vmem:[#allocation2 + $0x128] sm:$0xff]
    %v346 = vld [vmem:[#allocation2 + $0x130] sm:$0xff]
    %v347 = vld [vmem:[#allocation2 + $0x138] sm:$0xff]
    %v348 = vld [vmem:[#allocation2 + $0x140] sm:$0xff]
    %v349 = vld [vmem:[#allocation2 + $0x148] sm:$0xff]
    %v350 = vld [vmem:[#allocation2 + $0x150] sm:$0xff]
    %v351 = vld [vmem:[#allocation2 + $0x158] sm:$0xff]
    %v352 = vld [vmem:[#allocation2 + $0x160] sm:$0xff]
    %v353 = vld [vmem:[#allocation2 + $0x168] sm:$0xff]
    %v354 = vld [vmem:[#allocation2 + $0x170] sm:$0xff]
    %v355 = vld [vmem:[#allocation2 + $0x178] sm:$0xff]
    %v356 = vld [vmem:[#allocation2 + $0x180] sm:$0xff]
    %v357 = vld [vmem:[#allocation2 + $0x188] sm:$0xff]
    %v358 = vld [vmem:[#allocation2 + $0x190] sm:$0xff]
    %v359 = vld [vmem:[#allocation2 + $0x198] sm:$0xff]
    %v360 = vld [vmem:[#allocation2 + $0x1a0] sm:$0xff]
    %v361 = vld [vmem:[#allocation2 + $0x1a8] sm:$0xff]
    %v362 = vld [vmem:[#allocation2 + $0x1b0] sm:$0xff]
    %v363 = vld [vmem:[#allocation2 + $0x1b8] sm:$0xff]
    %v364 = vld [vmem:[#allocation2 + $0x1c0] sm:$0xff]
    %v365 = vld [vmem:[#allocation2 + $0x1c8] sm:$0xff]
    %v366 = vld [vmem:[#allocation2 + $0x1d0] sm:$0xff]
    %v367 = vld [vmem:[#allocation2 + $0x1d8] sm:$0xff]
    %v368 = vld [vmem:[#allocation2 + $0x1e0] sm:$0xff]
    %v369 = vld [vmem:[#allocation2 + $0x1e8] sm:$0xff]
    %v370 = vld [vmem:[#allocation2 + $0x1f0] sm:$0xff]
    %v371 = vld [vmem:[#allocation2 + $0x1f8] sm:$0xff]
    %v372 = vld [vmem:[#allocation2 + $0x200] sm:$0xff]
    %v373 = vld [vmem:[#allocation2 + $0x208] sm:$0xff]
    %v374 = vld [vmem:[#allocation2 + $0x210] sm:$0xff]
    %v375 = vld [vmem:[#allocation2 + $0x218] sm:$0xff]
    %v376 = vld [vmem:[#allocation2 + $0x220] sm:$0xff]
    %v377 = vld [vmem:[#allocation2 + $0x228] sm:$0xff]
    %v378 = vld [vmem:[#allocation2 + $0x230] sm:$0xff]
    %v379 = vld [vmem:[#allocation2 + $0x238] sm:$0xff]
    %v380 = vld [vmem:[#allocation2 + $0x240] sm:$0xff]
    %v381 = vld [vmem:[#allocation2 + $0x248] sm:$0xff]
    %v382 = vld [vmem:[#allocation2 + $0x250] sm:$0xff]
    %v383 = vld [vmem:[#allocation2 + $0x258] sm:$0xff]
    %v384 = vld [vmem:[#allocation2 + $0x260] sm:$0xff]
    %v385 = vld [vmem:[#allocation2 + $0x268] sm:$0xff]
    %v386 = vld [vmem:[#allocation2 + $0x270] sm:$0xff]
    %v387 = vld [vmem:[#allocation2 + $0x278] sm:$0xff]
    %v388 = vld [vmem:[#allocation2 + $0x280] sm:$0xff]
    %v389 = vld [vmem:[#allocation2 + $0x288] sm:$0xff]
    %v390 = vld [vmem:[#allocation2 + $0x290] sm:$0xff]
    %v391 = vld [vmem:[#allocation2 + $0x298] sm:$0xff]
    %v392 = vld [vmem:[#allocation2 + $0x2a0] sm:$0xff]
    %v393 = vld [vmem:[#allocation2 + $0x2a8] sm:$0xff]
    %v394 = vld [vmem:[#allocation2 + $0x2b0] sm:$0xff]
    %v395 = vld [vmem:[#allocation2 + $0x2b8] sm:$0xff]
    %v396 = vld [vmem:[#allocation2 + $0x2c0] sm:$0xff]
    %v397 = vld [vmem:[#allocation2 + $0x2c8] sm:$0xff]
    %v398 = vld [vmem:[#allocation2 + $0x2d0] sm:$0xff]
    %v399 = vld [vmem:[#allocation2 + $0x2d8] sm:$0xff]
    %v400 = vld [vmem:[#allocation2 + $0x2e0] sm:$0xff]
    %v401 = vld [vmem:[#allocation2 + $0x2e8] sm:$0xff]
    %v402 = vld [vmem:[#allocation2 + $0x2f0] sm:$0xff]
    %v403 = vld [vmem:[#allocation2 + $0x2f8] sm:$0xff]
    %v404 = vld [vmem:[#allocation2 + $0x300] sm:$0xff]
    %v405 = vld [vmem:[#allocation2 + $0x308] sm:$0xff]
    %v406 = vld [vmem:[#allocation2 + $0x310] sm:$0xff]
    %v407 = vld [vmem:[#allocation2 + $0x318] sm:$0xff]
    %v408 = vld [vmem:[#allocation2 + $0x320] sm:$0xff]
    %v409 = vld [vmem:[#allocation2 + $0x328] sm:$0xff]
    %v410 = vld [vmem:[#allocation2 + $0x330] sm:$0xff]
    %v411 = vld [vmem:[#allocation2 + $0x338] sm:$0xff]
    %v412 = vld [vmem:[#allocation2 + $0x340] sm:$0xff]
    %v413 = vld [vmem:[#allocation2 + $0x348] sm:$0xff]
    %v414 = vld [vmem:[#allocation2 + $0x350] sm:$0xff]
    %v415 = vld [vmem:[#allocation2 + $0x358] sm:$0xff]
    %v416 = vld [vmem:[#allocation2 + $0x360] sm:$0xff]
    %v417 = vld [vmem:[#allocation2 + $0x368] sm:$0xff]
    %v418 = vld [vmem:[#allocation2 + $0x370] sm:$0xff]
    %v419 = vld [vmem:[#allocation2 + $0x378] sm:$0xff]
    %v420 = vld [vmem:[#allocation2 + $0x380] sm:$0xff]
    %v421 = vld [vmem:[#allocation2 + $0x388] sm:$0xff]
    %v422 = vld [vmem:[#allocation2 + $0x390] sm:$0xff]
    %v423 = vld [vmem:[#allocation2 + $0x398] sm:$0xff]
    %v424 = vld [vmem:[#allocation2 + $0x3a0] sm:$0xff]
    %v425 = vld [vmem:[#allocation2 + $0x3a8] sm:$0xff]
    %v426 = vld [vmem:[#allocation2 + $0x3b0] sm:$0xff]
    %v427 = vld [vmem:[#allocation2 + $0x3b8] sm:$0xff]
    %v428 = vld [vmem:[#allocation2 + $0x3c0] sm:$0xff]
    %v429 = vld [vmem:[#allocation2 + $0x3c8] sm:$0xff]
    %v430 = vld [vmem:[#allocation2 + $0x3d0] sm:$0xff]
    %v431 = vld [vmem:[#allocation2 + $0x3d8] sm:$0xff]
    %v432 = vld [vmem:[#allocation2 + $0x3e0] sm:$0xff]
    %v433 = vld [vmem:[#allocation2 + $0x3e8] sm:$0xff]
    %v434 = vld [vmem:[#allocation2 + $0x3f0] sm:$0xff]
    %v435 = vld [vmem:[#allocation2 + $0x3f8] sm:$0xff]
    %v437 = vperm.slane %v81, 0
    %v438 = vperm.slane %v81, 1
    %v439 = vperm.slane %v81, 2
    %v440 = vperm.slane %v81, 3
    %v441 = vperm.slane %v81, 4
    %v442 = vperm.slane %v81, 5
    %v443 = vperm.slane %v81, 6
    %v444 = vperm.slane %v81, 7
    %v581 = vunpack.c.l.b16 %v308
    %v582 = vunpack.c.h.b16 %v308
    %v583 = vunpack.c.l.b16 %v309
    %v584 = vunpack.c.h.b16 %v309
    %v585 = vunpack.c.l.b16 %v310
    %v586 = vunpack.c.h.b16 %v310
    %v587 = vunpack.c.l.b16 %v311
    %v588 = vunpack.c.h.b16 %v311
    %v589 = vunpack.c.l.b16 %v312
    %v590 = vunpack.c.h.b16 %v312
    %v591 = vunpack.c.l.b16 %v313
    %v592 = vunpack.c.h.b16 %v313
    %v593 = vunpack.c.l.b16 %v314
    %v594 = vunpack.c.h.b16 %v314
    %v595 = vunpack.c.l.b16 %v315
    %v596 = vunpack.c.h.b16 %v315
    %v597 = vunpack.c.l.b16 %v316
    %v598 = vunpack.c.h.b16 %v316
    %v599 = vunpack.c.l.b16 %v317
    %v600 = vunpack.c.h.b16 %v317
    %v601 = vunpack.c.l.b16 %v318
    %v602 = vunpack.c.h.b16 %v318
    %v603 = vunpack.c.l.b16 %v319
    %v604 = vunpack.c.h.b16 %v319
    %v605 = vunpack.c.l.b16 %v320
    %v606 = vunpack.c.h.b16 %v320
    %v607 = vunpack.c.l.b16 %v321
    %v608 = vunpack.c.h.b16 %v321
    %v609 = vunpack.c.l.b16 %v322
    %v610 = vunpack.c.h.b16 %v322
    %v611 = vunpack.c.l.b16 %v323
    %v612 = vunpack.c.h.b16 %v323
    %v613 = vunpack.c.l.b16 %v324
    %v614 = vunpack.c.h.b16 %v324
    %v615 = vunpack.c.l.b16 %v325
    %v616 = vunpack.c.h.b16 %v325
    %v617 = vunpack.c.l.b16 %v326
    %v618 = vunpack.c.h.b16 %v326
    %v619 = vunpack.c.l.b16 %v327
    %v620 = vunpack.c.h.b16 %v327
    %v621 = vunpack.c.l.b16 %v328
    %v622 = vunpack.c.h.b16 %v328
    %v623 = vunpack.c.l.b16 %v329
    %v624 = vunpack.c.h.b16 %v329
    %v625 = vunpack.c.l.b16 %v330
    %v626 = vunpack.c.h.b16 %v330
    %v627 = vunpack.c.l.b16 %v331
    %v628 = vunpack.c.h.b16 %v331
    %v629 = vunpack.c.l.b16 %v332
    %v630 = vunpack.c.h.b16 %v332
    %v631 = vunpack.c.l.b16 %v333
    %v632 = vunpack.c.h.b16 %v333
    %v633 = vunpack.c.l.b16 %v334
    %v634 = vunpack.c.h.b16 %v334
    %v635 = vunpack.c.l.b16 %v335
    %v636 = vunpack.c.h.b16 %v335
    %v637 = vunpack.c.l.b16 %v336
    %v638 = vunpack.c.h.b16 %v336
    %v639 = vunpack.c.l.b16 %v337
    %v640 = vunpack.c.h.b16 %v337
    %v641 = vunpack.c.l.b16 %v338
    %v642 = vunpack.c.h.b16 %v338
    %v643 = vunpack.c.l.b16 %v339
    %v644 = vunpack.c.h.b16 %v339
    %v645 = vunpack.c.l.b16 %v340
    %v646 = vunpack.c.h.b16 %v340
    %v647 = vunpack.c.l.b16 %v341
    %v648 = vunpack.c.h.b16 %v341
    %v649 = vunpack.c.l.b16 %v342
    %v650 = vunpack.c.h.b16 %v342
    %v651 = vunpack.c.l.b16 %v343
    %v652 = vunpack.c.h.b16 %v343
    %v653 = vunpack.c.l.b16 %v344
    %v654 = vunpack.c.h.b16 %v344
    %v655 = vunpack.c.l.b16 %v345
    %v656 = vunpack.c.h.b16 %v345
    %v657 = vunpack.c.l.b16 %v346
    %v658 = vunpack.c.h.b16 %v346
    %v659 = vunpack.c.l.b16 %v347
    %v660 = vunpack.c.h.b16 %v347
    %v661 = vunpack.c.l.b16 %v348
    %v662 = vunpack.c.h.b16 %v348
    %v663 = vunpack.c.l.b16 %v349
    %v664 = vunpack.c.h.b16 %v349
    %v665 = vunpack.c.l.b16 %v350
    %v666 = vunpack.c.h.b16 %v350
    %v667 = vunpack.c.l.b16 %v351
    %v668 = vunpack.c.h.b16 %v351
    %v669 = vunpack.c.l.b16 %v352
    %v670 = vunpack.c.h.b16 %v352
    %v671 = vunpack.c.l.b16 %v353
    %v672 = vunpack.c.h.b16 %v353
    %v673 = vunpack.c.l.b16 %v354
    %v674 = vunpack.c.h.b16 %v354
    %v675 = vunpack.c.l.b16 %v355
    %v676 = vunpack.c.h.b16 %v355
    %v677 = vunpack.c.l.b16 %v356
    %v678 = vunpack.c.h.b16 %v356
    %v679 = vunpack.c.l.b16 %v357
    %v680 = vunpack.c.h.b16 %v357
    %v681 = vunpack.c.l.b16 %v358
    %v682 = vunpack.c.h.b16 %v358
    %v683 = vunpack.c.l.b16 %v359
    %v684 = vunpack.c.h.b16 %v359
    %v685 = vunpack.c.l.b16 %v360
    %v686 = vunpack.c.h.b16 %v360
    %v687 = vunpack.c.l.b16 %v361
    %v688 = vunpack.c.h.b16 %v361
    %v689 = vunpack.c.l.b16 %v362
    %v690 = vunpack.c.h.b16 %v362
    %v691 = vunpack.c.l.b16 %v363
    %v692 = vunpack.c.h.b16 %v363
    %v693 = vunpack.c.l.b16 %v364
    %v694 = vunpack.c.h.b16 %v364
    %v695 = vunpack.c.l.b16 %v365
    %v696 = vunpack.c.h.b16 %v365
    %v697 = vunpack.c.l.b16 %v366
    %v698 = vunpack.c.h.b16 %v366
    %v699 = vunpack.c.l.b16 %v367
    %v700 = vunpack.c.h.b16 %v367
    %v701 = vunpack.c.l.b16 %v368
    %v702 = vunpack.c.h.b16 %v368
    %v703 = vunpack.c.l.b16 %v369
    %v704 = vunpack.c.h.b16 %v369
    %v705 = vunpack.c.l.b16 %v370
    %v706 = vunpack.c.h.b16 %v370
    %v707 = vunpack.c.l.b16 %v371
    %v708 = vunpack.c.h.b16 %v371
    %v709 = vunpack.c.l.b16 %v372
    %v710 = vunpack.c.h.b16 %v372
    %v711 = vunpack.c.l.b16 %v373
    %v712 = vunpack.c.h.b16 %v373
    %v713 = vunpack.c.l.b16 %v374
    %v714 = vunpack.c.h.b16 %v374
    %v715 = vunpack.c.l.b16 %v375
    %v716 = vunpack.c.h.b16 %v375
    %v717 = vunpack.c.l.b16 %v376
    %v718 = vunpack.c.h.b16 %v376
    %v719 = vunpack.c.l.b16 %v377
    %v720 = vunpack.c.h.b16 %v377
    %v721 = vunpack.c.l.b16 %v378
    %v722 = vunpack.c.h.b16 %v378
    %v723 = vunpack.c.l.b16 %v379
    %v724 = vunpack.c.h.b16 %v379
    %v725 = vunpack.c.l.b16 %v380
    %v726 = vunpack.c.h.b16 %v380
    %v727 = vunpack.c.l.b16 %v381
    %v728 = vunpack.c.h.b16 %v381
    %v729 = vunpack.c.l.b16 %v382
    %v730 = vunpack.c.h.b16 %v382
    %v731 = vunpack.c.l.b16 %v383
    %v732 = vunpack.c.h.b16 %v383
    %v733 = vunpack.c.l.b16 %v384
    %v734 = vunpack.c.h.b16 %v384
    %v735 = vunpack.c.l.b16 %v385
    %v736 = vunpack.c.h.b16 %v385
    %v737 = vunpack.c.l.b16 %v386
    %v738 = vunpack.c.h.b16 %v386
    %v739 = vunpack.c.l.b16 %v387
    %v740 = vunpack.c.h.b16 %v387
    %v741 = vunpack.c.l.b16 %v388
    %v742 = vunpack.c.h.b16 %v388
    %v743 = vunpack.c.l.b16 %v389
    %v744 = vunpack.c.h.b16 %v389
    %v745 = vunpack.c.l.b16 %v390
    %v746 = vunpack.c.h.b16 %v390
    %v747 = vunpack.c.l.b16 %v391
    %v748 = vunpack.c.h.b16 %v391
    %v749 = vunpack.c.l.b16 %v392
    %v750 = vunpack.c.h.b16 %v392
    %v751 = vunpack.c.l.b16 %v393
    %v752 = vunpack.c.h.b16 %v393
    %v753 = vunpack.c.l.b16 %v394
    %v754 = vunpack.c.h.b16 %v394
    %v755 = vunpack.c.l.b16 %v395
    %v756 = vunpack.c.h.b16 %v395
    %v757 = vunpack.c.l.b16 %v396
    %v758 = vunpack.c.h.b16 %v396
    %v759 = vunpack.c.l.b16 %v397
    %v760 = vunpack.c.h.b16 %v397
    %v761 = vunpack.c.l.b16 %v398
    %v762 = vunpack.c.h.b16 %v398
    %v763 = vunpack.c.l.b16 %v399
    %v764 = vunpack.c.h.b16 %v399
    %v765 = vunpack.c.l.b16 %v400
    %v766 = vunpack.c.h.b16 %v400
    %v767 = vunpack.c.l.b16 %v401
    %v768 = vunpack.c.h.b16 %v401
    %v769 = vunpack.c.l.b16 %v402
    %v770 = vunpack.c.h.b16 %v402
    %v771 = vunpack.c.l.b16 %v403
    %v772 = vunpack.c.h.b16 %v403
    %v773 = vunpack.c.l.b16 %v404
    %v774 = vunpack.c.h.b16 %v404
    %v775 = vunpack.c.l.b16 %v405
    %v776 = vunpack.c.h.b16 %v405
    %v777 = vunpack.c.l.b16 %v406
    %v778 = vunpack.c.h.b16 %v406
    %v779 = vunpack.c.l.b16 %v407
    %v780 = vunpack.c.h.b16 %v407
    %v781 = vunpack.c.l.b16 %v408
    %v782 = vunpack.c.h.b16 %v408
    %v783 = vunpack.c.l.b16 %v409
    %v784 = vunpack.c.h.b16 %v409
    %v785 = vunpack.c.l.b16 %v410
    %v786 = vunpack.c.h.b16 %v410
    %v787 = vunpack.c.l.b16 %v411
    %v788 = vunpack.c.h.b16 %v411
    %v789 = vunpack.c.l.b16 %v412
    %v790 = vunpack.c.h.b16 %v412
    %v791 = vunpack.c.l.b16 %v413
    %v792 = vunpack.c.h.b16 %v413
    %v793 = vunpack.c.l.b16 %v414
    %v794 = vunpack.c.h.b16 %v414
    %v795 = vunpack.c.l.b16 %v415
    %v796 = vunpack.c.h.b16 %v415
    %v797 = vunpack.c.l.b16 %v416
    %v798 = vunpack.c.h.b16 %v416
    %v799 = vunpack.c.l.b16 %v417
    %v800 = vunpack.c.h.b16 %v417
    %v801 = vunpack.c.l.b16 %v418
    %v802 = vunpack.c.h.b16 %v418
    %v803 = vunpack.c.l.b16 %v419
    %v804 = vunpack.c.h.b16 %v419
    %v805 = vunpack.c.l.b16 %v420
    %v806 = vunpack.c.h.b16 %v420
    %v807 = vunpack.c.l.b16 %v421
    %v808 = vunpack.c.h.b16 %v421
    %v809 = vunpack.c.l.b16 %v422
    %v810 = vunpack.c.h.b16 %v422
    %v811 = vunpack.c.l.b16 %v423
    %v812 = vunpack.c.h.b16 %v423
    %v813 = vunpack.c.l.b16 %v424
    %v814 = vunpack.c.h.b16 %v424
    %v815 = vunpack.c.l.b16 %v425
    %v816 = vunpack.c.h.b16 %v425
    %v817 = vunpack.c.l.b16 %v426
    %v818 = vunpack.c.h.b16 %v426
    %v819 = vunpack.c.l.b16 %v427
    %v820 = vunpack.c.h.b16 %v427
    %v821 = vunpack.c.l.b16 %v428
    %v822 = vunpack.c.h.b16 %v428
    %v823 = vunpack.c.l.b16 %v429
    %v824 = vunpack.c.h.b16 %v429
    %v825 = vunpack.c.l.b16 %v430
    %v826 = vunpack.c.h.b16 %v430
    %v827 = vunpack.c.l.b16 %v431
    %v828 = vunpack.c.h.b16 %v431
    %v829 = vunpack.c.l.b16 %v432
    %v830 = vunpack.c.h.b16 %v432
    %v831 = vunpack.c.l.b16 %v433
    %v832 = vunpack.c.h.b16 %v433
    %v833 = vunpack.c.l.b16 %v434
    %v834 = vunpack.c.h.b16 %v434
    %v835 = vunpack.c.l.b16 %v435
    %v836 = vunpack.c.h.b16 %v435
    %v837 = vpack.c.b16 %v589, %v581
    %v838 = vpack.c.b16 %v590, %v582
    %v839 = vpack.c.b16 %v591, %v583
    %v840 = vpack.c.b16 %v592, %v584
    %v841 = vpack.c.b16 %v593, %v585
    %v842 = vpack.c.b16 %v594, %v586
    %v843 = vpack.c.b16 %v595, %v587
    %v844 = vpack.c.b16 %v596, %v588
    %v845 = vpack.c.b16 %v605, %v597
    %v846 = vpack.c.b16 %v606, %v598
    %v847 = vpack.c.b16 %v607, %v599
    %v848 = vpack.c.b16 %v608, %v600
    %v849 = vpack.c.b16 %v609, %v601
    %v850 = vpack.c.b16 %v610, %v602
    %v851 = vpack.c.b16 %v611, %v603
    %v852 = vpack.c.b16 %v612, %v604
    %v853 = vpack.c.b16 %v621, %v613
    %v854 = vpack.c.b16 %v622, %v614
    %v855 = vpack.c.b16 %v623, %v615
    %v856 = vpack.c.b16 %v624, %v616
    %v857 = vpack.c.b16 %v625, %v617
    %v858 = vpack.c.b16 %v626, %v618
    %v859 = vpack.c.b16 %v627, %v619
    %v860 = vpack.c.b16 %v628, %v620
    %v861 = vpack.c.b16 %v637, %v629
    %v862 = vpack.c.b16 %v638, %v630
    %v863 = vpack.c.b16 %v639, %v631
    %v864 = vpack.c.b16 %v640, %v632
    %v865 = vpack.c.b16 %v641, %v633
    %v866 = vpack.c.b16 %v642, %v634
    %v867 = vpack.c.b16 %v643, %v635
    %v868 = vpack.c.b16 %v644, %v636
    %v869 = vpack.c.b16 %v653, %v645
    %v870 = vpack.c.b16 %v654, %v646
    %v871 = vpack.c.b16 %v655, %v647
    %v872 = vpack.c.b16 %v656, %v648
    %v873 = vpack.c.b16 %v657, %v649
    %v874 = vpack.c.b16 %v658, %v650
    %v875 = vpack.c.b16 %v659, %v651
    %v876 = vpack.c.b16 %v660, %v652
    %v877 = vpack.c.b16 %v669, %v661
    %v878 = vpack.c.b16 %v670, %v662
    %v879 = vpack.c.b16 %v671, %v663
    %v880 = vpack.c.b16 %v672, %v664
    %v881 = vpack.c.b16 %v673, %v665
    %v882 = vpack.c.b16 %v674, %v666
    %v883 = vpack.c.b16 %v675, %v667
    %v884 = vpack.c.b16 %v676, %v668
    %v885 = vpack.c.b16 %v685, %v677
    %v886 = vpack.c.b16 %v686, %v678
    %v887 = vpack.c.b16 %v687, %v679
    %v888 = vpack.c.b16 %v688, %v680
    %v889 = vpack.c.b16 %v689, %v681
    %v890 = vpack.c.b16 %v690, %v682
    %v891 = vpack.c.b16 %v691, %v683
    %v892 = vpack.c.b16 %v692, %v684
    %v893 = vpack.c.b16 %v701, %v693
    %v894 = vpack.c.b16 %v702, %v694
    %v895 = vpack.c.b16 %v703, %v695
    %v896 = vpack.c.b16 %v704, %v696
    %v897 = vpack.c.b16 %v705, %v697
    %v898 = vpack.c.b16 %v706, %v698
    %v899 = vpack.c.b16 %v707, %v699
    %v900 = vpack.c.b16 %v708, %v700
    %v901 = vpack.c.b16 %v717, %v709
    %v902 = vpack.c.b16 %v718, %v710
    %v903 = vpack.c.b16 %v719, %v711
    %v904 = vpack.c.b16 %v720, %v712
    %v905 = vpack.c.b16 %v721, %v713
    %v906 = vpack.c.b16 %v722, %v714
    %v907 = vpack.c.b16 %v723, %v715
    %v908 = vpack.c.b16 %v724, %v716
    %v909 = vpack.c.b16 %v733, %v725
    %v910 = vpack.c.b16 %v734, %v726
    %v911 = vpack.c.b16 %v735, %v727
    %v912 = vpack.c.b16 %v736, %v728
    %v913 = vpack.c.b16 %v737, %v729
    %v914 = vpack.c.b16 %v738, %v730
    %v915 = vpack.c.b16 %v739, %v731
    %v916 = vpack.c.b16 %v740, %v732
    %v917 = vpack.c.b16 %v749, %v741
    %v918 = vpack.c.b16 %v750, %v742
    %v919 = vpack.c.b16 %v751, %v743
    %v920 = vpack.c.b16 %v752, %v744
    %v921 = vpack.c.b16 %v753, %v745
    %v922 = vpack.c.b16 %v754, %v746
    %v923 = vpack.c.b16 %v755, %v747
    %v924 = vpack.c.b16 %v756, %v748
    %v925 = vpack.c.b16 %v765, %v757
    %v926 = vpack.c.b16 %v766, %v758
    %v927 = vpack.c.b16 %v767, %v759
    %v928 = vpack.c.b16 %v768, %v760
    %v929 = vpack.c.b16 %v769, %v761
    %v930 = vpack.c.b16 %v770, %v762
    %v931 = vpack.c.b16 %v771, %v763
    %v932 = vpack.c.b16 %v772, %v764
    %v933 = vpack.c.b16 %v781, %v773
    %v934 = vpack.c.b16 %v782, %v774
    %v935 = vpack.c.b16 %v783, %v775
    %v936 = vpack.c.b16 %v784, %v776
    %v937 = vpack.c.b16 %v785, %v777
    %v938 = vpack.c.b16 %v786, %v778
    %v939 = vpack.c.b16 %v787, %v779
    %v940 = vpack.c.b16 %v788, %v780
    %v941 = vpack.c.b16 %v797, %v789
    %v942 = vpack.c.b16 %v798, %v790
    %v943 = vpack.c.b16 %v799, %v791
    %v944 = vpack.c.b16 %v800, %v792
    %v945 = vpack.c.b16 %v801, %v793
    %v946 = vpack.c.b16 %v802, %v794
    %v947 = vpack.c.b16 %v803, %v795
    %v948 = vpack.c.b16 %v804, %v796
    %v949 = vpack.c.b16 %v813, %v805
    %v950 = vpack.c.b16 %v814, %v806
    %v951 = vpack.c.b16 %v815, %v807
    %v952 = vpack.c.b16 %v816, %v808
    %v953 = vpack.c.b16 %v817, %v809
    %v954 = vpack.c.b16 %v818, %v810
    %v955 = vpack.c.b16 %v819, %v811
    %v956 = vpack.c.b16 %v820, %v812
    %v957 = vpack.c.b16 %v829, %v821
    %v958 = vpack.c.b16 %v830, %v822
    %v959 = vpack.c.b16 %v831, %v823
    %v960 = vpack.c.b16 %v832, %v824
    %v961 = vpack.c.b16 %v833, %v825
    %v962 = vpack.c.b16 %v834, %v826
    %v963 = vpack.c.b16 %v835, %v827
    %v964 = vpack.c.b16 %v836, %v828
    %1093 = vmatpush.bf16.msra.mxu0 %v893
    %1094 = vmatpush.bf16.msra.mxu0 %v885
    %1095 = vmatpush.bf16.msra.mxu0 %v877
    %1096 = vmatpush.bf16.msra.mxu0 %v869
    %1097 = vmatpush.bf16.msra.mxu0 %v861
    %1098 = vmatpush.bf16.msra.mxu0 %v853
    %1099 = vmatpush.bf16.msra.mxu0 %v845
    %1100 = vmatpush.bf16.msra.mxu0 %v837
    %1101 = vmatmul.bf16.gmra.mxu0 %v292
    %v1102 = vpop.f32.mrf.mxu0
    %v1103 = vadd.f32 %v437, %v1102
    %v1104 = vpop.f32.mrf.mxu0
    %v1105 = vadd.f32 %v437, %v1104
    %1106 = vmatmul.bf16.gmra.mxu0 %v294
    %v1107 = vpop.f32.mrf.mxu0
    %v1108 = vadd.f32 %v437, %v1107
    %v1109 = vpop.f32.mrf.mxu0
    %v1110 = vadd.f32 %v437, %v1109
    %1111 = vmatmul.bf16.gmra.mxu0 %v296
    %v1112 = vpop.f32.mrf.mxu0
    %v1113 = vadd.f32 %v437, %v1112
    %v1114 = vpop.f32.mrf.mxu0
    %v1115 = vadd.f32 %v437, %v1114
    %1116 = vmatmul.bf16.gmra.mxu0 %v298
    %v1117 = vpop.f32.mrf.mxu0
    %v1118 = vadd.f32 %v437, %v1117
    %v1119 = vpop.f32.mrf.mxu0
    %v1120 = vadd.f32 %v437, %v1119
    %1121 = vmatmul.bf16.gmra.mxu0 %v300
    %v1122 = vpop.f32.mrf.mxu0
    %v1123 = vadd.f32 %v437, %v1122
    %v1124 = vpop.f32.mrf.mxu0
    %v1125 = vadd.f32 %v437, %v1124
    %1126 = vmatmul.bf16.gmra.mxu0 %v302
    %v1127 = vpop.f32.mrf.mxu0
    %v1128 = vadd.f32 %v437, %v1127
    %v1129 = vpop.f32.mrf.mxu0
    %v1130 = vadd.f32 %v437, %v1129
    %1131 = vmatmul.bf16.gmra.mxu0 %v304
    %v1132 = vpop.f32.mrf.mxu0
    %v1133 = vadd.f32 %v437, %v1132
    %v1134 = vpop.f32.mrf.mxu0
    %v1135 = vadd.f32 %v437, %v1134
    %1136 = vmatmul.bf16.gmra.mxu0 %v306
    %v1137 = vpop.f32.mrf.mxu0
    %v1138 = vadd.f32 %v437, %v1137
    %v1139 = vpop.f32.mrf.mxu0
    %v1140 = vadd.f32 %v437, %v1139
    %1141 = vdwg.mxu0
    %1142 = vmatpush.bf16.msra.mxu0 %v957
    %1143 = vmatpush.bf16.msra.mxu0 %v949
    %1144 = vmatpush.bf16.msra.mxu0 %v941
    %1145 = vmatpush.bf16.msra.mxu0 %v933
    %1146 = vmatpush.bf16.msra.mxu0 %v925
    %1147 = vmatpush.bf16.msra.mxu0 %v917
    %1148 = vmatpush.bf16.msra.mxu0 %v909
    %1149 = vmatpush.bf16.msra.mxu0 %v901
    %1150 = vmatmul.bf16.gmra.mxu0 %v293
    %v1151 = vpop.f32.mrf.mxu0
    %v1152 = vadd.f32 %v1103, %v1151
    %v1153 = vpop.f32.mrf.mxu0
    %v1154 = vadd.f32 %v1105, %v1153
    %1155 = vmatmul.bf16.gmra.mxu0 %v295
    %v1156 = vpop.f32.mrf.mxu0
    %v1157 = vadd.f32 %v1108, %v1156
    %v1158 = vpop.f32.mrf.mxu0
    %v1159 = vadd.f32 %v1110, %v1158
    %1160 = vmatmul.bf16.gmra.mxu0 %v297
    %v1161 = vpop.f32.mrf.mxu0
    %v1162 = vadd.f32 %v1113, %v1161
    %v1163 = vpop.f32.mrf.mxu0
    %v1164 = vadd.f32 %v1115, %v1163
    %1165 = vmatmul.bf16.gmra.mxu0 %v299
    %v1166 = vpop.f32.mrf.mxu0
    %v1167 = vadd.f32 %v1118, %v1166
    %v1168 = vpop.f32.mrf.mxu0
    %v1169 = vadd.f32 %v1120, %v1168
    %1170 = vmatmul.bf16.gmra.mxu0 %v301
    %v1171 = vpop.f32.mrf.mxu0
    %v1172 = vadd.f32 %v1123, %v1171
    %v1173 = vpop.f32.mrf.mxu0
    %v1174 = vadd.f32 %v1125, %v1173
    %1175 = vmatmul.bf16.gmra.mxu0 %v303
    %v1176 = vpop.f32.mrf.mxu0
    %v1177 = vadd.f32 %v1128, %v1176
    %v1178 = vpop.f32.mrf.mxu0
    %v1179 = vadd.f32 %v1130, %v1178
    %1180 = vmatmul.bf16.gmra.mxu0 %v305
    %v1181 = vpop.f32.mrf.mxu0
    %v1182 = vadd.f32 %v1133, %v1181
    %v1183 = vpop.f32.mrf.mxu0
    %v1184 = vadd.f32 %v1135, %v1183
    %1185 = vmatmul.bf16.gmra.mxu0 %v307
    %v1186 = vpop.f32.mrf.mxu0
    %v1187 = vadd.f32 %v1138, %v1186
    %v1188 = vpop.f32.mrf.mxu0
    %v1189 = vadd.f32 %v1140, %v1188
    %1190 = vdwg.mxu0
    %1191 = vmatpush.bf16.msra.mxu0 %v894
    %1192 = vmatpush.bf16.msra.mxu0 %v886
    %1193 = vmatpush.bf16.msra.mxu0 %v878
    %1194 = vmatpush.bf16.msra.mxu0 %v870
    %1195 = vmatpush.bf16.msra.mxu0 %v862
    %1196 = vmatpush.bf16.msra.mxu0 %v854
    %1197 = vmatpush.bf16.msra.mxu0 %v846
    %1198 = vmatpush.bf16.msra.mxu0 %v838
    %1199 = vmatmul.bf16.gmra.mxu0 %v292
    %v1200 = vpop.f32.mrf.mxu0
    %v1201 = vadd.f32 %v438, %v1200
    %v1202 = vpop.f32.mrf.mxu0
    %v1203 = vadd.f32 %v438, %v1202
    %1204 = vmatmul.bf16.gmra.mxu0 %v294
    %v1205 = vpop.f32.mrf.mxu0
    %v1206 = vadd.f32 %v438, %v1205
    %v1207 = vpop.f32.mrf.mxu0
    %v1208 = vadd.f32 %v438, %v1207
    %1209 = vmatmul.bf16.gmra.mxu0 %v296
    %v1210 = vpop.f32.mrf.mxu0
    %v1211 = vadd.f32 %v438, %v1210
    %v1212 = vpop.f32.mrf.mxu0
    %v1213 = vadd.f32 %v438, %v1212
    %1214 = vmatmul.bf16.gmra.mxu0 %v298
    %v1215 = vpop.f32.mrf.mxu0
    %v1216 = vadd.f32 %v438, %v1215
    %v1217 = vpop.f32.mrf.mxu0
    %v1218 = vadd.f32 %v438, %v1217
    %1219 = vmatmul.bf16.gmra.mxu0 %v300
    %v1220 = vpop.f32.mrf.mxu0
    %v1221 = vadd.f32 %v438, %v1220
    %v1222 = vpop.f32.mrf.mxu0
    %v1223 = vadd.f32 %v438, %v1222
    %1224 = vmatmul.bf16.gmra.mxu0 %v302
    %v1225 = vpop.f32.mrf.mxu0
    %v1226 = vadd.f32 %v438, %v1225
    %v1227 = vpop.f32.mrf.mxu0
    %v1228 = vadd.f32 %v438, %v1227
    %1229 = vmatmul.bf16.gmra.mxu0 %v304
    %v1230 = vpop.f32.mrf.mxu0
    %v1231 = vadd.f32 %v438, %v1230
    %v1232 = vpop.f32.mrf.mxu0
    %v1233 = vadd.f32 %v438, %v1232
    %1234 = vmatmul.bf16.gmra.mxu0 %v306
    %v1235 = vpop.f32.mrf.mxu0
    %v1236 = vadd.f32 %v438, %v1235
    %v1237 = vpop.f32.mrf.mxu0
    %v1238 = vadd.f32 %v438, %v1237
    %1239 = vdwg.mxu0
    %1240 = vmatpush.bf16.msra.mxu0 %v958
    %1241 = vmatpush.bf16.msra.mxu0 %v950
    %1242 = vmatpush.bf16.msra.mxu0 %v942
    %1243 = vmatpush.bf16.msra.mxu0 %v934
    %1244 = vmatpush.bf16.msra.mxu0 %v926
    %1245 = vmatpush.bf16.msra.mxu0 %v918
    %1246 = vmatpush.bf16.msra.mxu0 %v910
    %1247 = vmatpush.bf16.msra.mxu0 %v902
    %1248 = vmatmul.bf16.gmra.mxu0 %v293
    %v1249 = vpop.f32.mrf.mxu0
    %v1250 = vadd.f32 %v1201, %v1249
    %v1251 = vpop.f32.mrf.mxu0
    %v1252 = vadd.f32 %v1203, %v1251
    %1253 = vmatmul.bf16.gmra.mxu0 %v295
    %v1254 = vpop.f32.mrf.mxu0
    %v1255 = vadd.f32 %v1206, %v1254
    %v1256 = vpop.f32.mrf.mxu0
    %v1257 = vadd.f32 %v1208, %v1256
    %1258 = vmatmul.bf16.gmra.mxu0 %v297
    %v1259 = vpop.f32.mrf.mxu0
    %v1260 = vadd.f32 %v1211, %v1259
    %v1261 = vpop.f32.mrf.mxu0
    %v1262 = vadd.f32 %v1213, %v1261
    %1263 = vmatmul.bf16.gmra.mxu0 %v299
    %v1264 = vpop.f32.mrf.mxu0
    %v1265 = vadd.f32 %v1216, %v1264
    %v1266 = vpop.f32.mrf.mxu0
    %v1267 = vadd.f32 %v1218, %v1266
    %1268 = vmatmul.bf16.gmra.mxu0 %v301
    %v1269 = vpop.f32.mrf.mxu0
    %v1270 = vadd.f32 %v1221, %v1269
    %v1271 = vpop.f32.mrf.mxu0
    %v1272 = vadd.f32 %v1223, %v1271
    %1273 = vmatmul.bf16.gmra.mxu0 %v303
    %v1274 = vpop.f32.mrf.mxu0
    %v1275 = vadd.f32 %v1226, %v1274
    %v1276 = vpop.f32.mrf.mxu0
    %v1277 = vadd.f32 %v1228, %v1276
    %1278 = vmatmul.bf16.gmra.mxu0 %v305
    %v1279 = vpop.f32.mrf.mxu0
    %v1280 = vadd.f32 %v1231, %v1279
    %v1281 = vpop.f32.mrf.mxu0
    %v1282 = vadd.f32 %v1233, %v1281
    %1283 = vmatmul.bf16.gmra.mxu0 %v307
    %v1284 = vpop.f32.mrf.mxu0
    %v1285 = vadd.f32 %v1236, %v1284
    %v1286 = vpop.f32.mrf.mxu0
    %v1287 = vadd.f32 %v1238, %v1286
    %1288 = vdwg.mxu0
    %1289 = vmatpush.bf16.msra.mxu0 %v895
    %1290 = vmatpush.bf16.msra.mxu0 %v887
    %1291 = vmatpush.bf16.msra.mxu0 %v879
    %1292 = vmatpush.bf16.msra.mxu0 %v871
    %1293 = vmatpush.bf16.msra.mxu0 %v863
    %1294 = vmatpush.bf16.msra.mxu0 %v855
    %1295 = vmatpush.bf16.msra.mxu0 %v847
    %1296 = vmatpush.bf16.msra.mxu0 %v839
    %1297 = vmatmul.bf16.gmra.mxu0 %v292
    %v1298 = vpop.f32.mrf.mxu0
    %v1299 = vadd.f32 %v439, %v1298
    %v1300 = vpop.f32.mrf.mxu0
    %v1301 = vadd.f32 %v439, %v1300
    %1302 = vmatmul.bf16.gmra.mxu0 %v294
    %v1303 = vpop.f32.mrf.mxu0
    %v1304 = vadd.f32 %v439, %v1303
    %v1305 = vpop.f32.mrf.mxu0
    %v1306 = vadd.f32 %v439, %v1305
    %1307 = vmatmul.bf16.gmra.mxu0 %v296
    %v1308 = vpop.f32.mrf.mxu0
    %v1309 = vadd.f32 %v439, %v1308
    %v1310 = vpop.f32.mrf.mxu0
    %v1311 = vadd.f32 %v439, %v1310
    %1312 = vmatmul.bf16.gmra.mxu0 %v298
    %v1313 = vpop.f32.mrf.mxu0
    %v1314 = vadd.f32 %v439, %v1313
    %v1315 = vpop.f32.mrf.mxu0
    %v1316 = vadd.f32 %v439, %v1315
    %1317 = vmatmul.bf16.gmra.mxu0 %v300
    %v1318 = vpop.f32.mrf.mxu0
    %v1319 = vadd.f32 %v439, %v1318
    %v1320 = vpop.f32.mrf.mxu0
    %v1321 = vadd.f32 %v439, %v1320
    %1322 = vmatmul.bf16.gmra.mxu0 %v302
    %v1323 = vpop.f32.mrf.mxu0
    %v1324 = vadd.f32 %v439, %v1323
    %v1325 = vpop.f32.mrf.mxu0
    %v1326 = vadd.f32 %v439, %v1325
    %1327 = vmatmul.bf16.gmra.mxu0 %v304
    %v1328 = vpop.f32.mrf.mxu0
    %v1329 = vadd.f32 %v439, %v1328
    %v1330 = vpop.f32.mrf.mxu0
    %v1331 = vadd.f32 %v439, %v1330
    %1332 = vmatmul.bf16.gmra.mxu0 %v306
    %v1333 = vpop.f32.mrf.mxu0
    %v1334 = vadd.f32 %v439, %v1333
    %v1335 = vpop.f32.mrf.mxu0
    %v1336 = vadd.f32 %v439, %v1335
    %1337 = vdwg.mxu0
    %1338 = vmatpush.bf16.msra.mxu0 %v959
    %1339 = vmatpush.bf16.msra.mxu0 %v951
    %1340 = vmatpush.bf16.msra.mxu0 %v943
    %1341 = vmatpush.bf16.msra.mxu0 %v935
    %1342 = vmatpush.bf16.msra.mxu0 %v927
    %1343 = vmatpush.bf16.msra.mxu0 %v919
    %1344 = vmatpush.bf16.msra.mxu0 %v911
    %1345 = vmatpush.bf16.msra.mxu0 %v903
    %1346 = vmatmul.bf16.gmra.mxu0 %v293
    %v1347 = vpop.f32.mrf.mxu0
    %v1348 = vadd.f32 %v1299, %v1347
    %v1349 = vpop.f32.mrf.mxu0
    %v1350 = vadd.f32 %v1301, %v1349
    %1351 = vmatmul.bf16.gmra.mxu0 %v295
    %v1352 = vpop.f32.mrf.mxu0
    %v1353 = vadd.f32 %v1304, %v1352
    %v1354 = vpop.f32.mrf.mxu0
    %v1355 = vadd.f32 %v1306, %v1354
    %1356 = vmatmul.bf16.gmra.mxu0 %v297
    %v1357 = vpop.f32.mrf.mxu0
    %v1358 = vadd.f32 %v1309, %v1357
    %v1359 = vpop.f32.mrf.mxu0
    %v1360 = vadd.f32 %v1311, %v1359
    %1361 = vmatmul.bf16.gmra.mxu0 %v299
    %v1362 = vpop.f32.mrf.mxu0
    %v1363 = vadd.f32 %v1314, %v1362
    %v1364 = vpop.f32.mrf.mxu0
    %v1365 = vadd.f32 %v1316, %v1364
    %1366 = vmatmul.bf16.gmra.mxu0 %v301
    %v1367 = vpop.f32.mrf.mxu0
    %v1368 = vadd.f32 %v1319, %v1367
    %v1369 = vpop.f32.mrf.mxu0
    %v1370 = vadd.f32 %v1321, %v1369
    %1371 = vmatmul.bf16.gmra.mxu0 %v303
    %v1372 = vpop.f32.mrf.mxu0
    %v1373 = vadd.f32 %v1324, %v1372
    %v1374 = vpop.f32.mrf.mxu0
    %v1375 = vadd.f32 %v1326, %v1374
    %1376 = vmatmul.bf16.gmra.mxu0 %v305
    %v1377 = vpop.f32.mrf.mxu0
    %v1378 = vadd.f32 %v1329, %v1377
    %v1379 = vpop.f32.mrf.mxu0
    %v1380 = vadd.f32 %v1331, %v1379
    %1381 = vmatmul.bf16.gmra.mxu0 %v307
    %v1382 = vpop.f32.mrf.mxu0
    %v1383 = vadd.f32 %v1334, %v1382
    %v1384 = vpop.f32.mrf.mxu0
    %v1385 = vadd.f32 %v1336, %v1384
    %1386 = vdwg.mxu0
    %1387 = vmatpush.bf16.msra.mxu0 %v896
    %1388 = vmatpush.bf16.msra.mxu0 %v888
    %1389 = vmatpush.bf16.msra.mxu0 %v880
    %1390 = vmatpush.bf16.msra.mxu0 %v872
    %1391 = vmatpush.bf16.msra.mxu0 %v864
    %1392 = vmatpush.bf16.msra.mxu0 %v856
    %1393 = vmatpush.bf16.msra.mxu0 %v848
    %1394 = vmatpush.bf16.msra.mxu0 %v840
    %1395 = vmatmul.bf16.gmra.mxu0 %v292
    %v1396 = vpop.f32.mrf.mxu0
    %v1397 = vadd.f32 %v440, %v1396
    %v1398 = vpop.f32.mrf.mxu0
    %v1399 = vadd.f32 %v440, %v1398
    %1400 = vmatmul.bf16.gmra.mxu0 %v294
    %v1401 = vpop.f32.mrf.mxu0
    %v1402 = vadd.f32 %v440, %v1401
    %v1403 = vpop.f32.mrf.mxu0
    %v1404 = vadd.f32 %v440, %v1403
    %1405 = vmatmul.bf16.gmra.mxu0 %v296
    %v1406 = vpop.f32.mrf.mxu0
    %v1407 = vadd.f32 %v440, %v1406
    %v1408 = vpop.f32.mrf.mxu0
    %v1409 = vadd.f32 %v440, %v1408
    %1410 = vmatmul.bf16.gmra.mxu0 %v298
    %v1411 = vpop.f32.mrf.mxu0
    %v1412 = vadd.f32 %v440, %v1411
    %v1413 = vpop.f32.mrf.mxu0
    %v1414 = vadd.f32 %v440, %v1413
    %1415 = vmatmul.bf16.gmra.mxu0 %v300
    %v1416 = vpop.f32.mrf.mxu0
    %v1417 = vadd.f32 %v440, %v1416
    %v1418 = vpop.f32.mrf.mxu0
    %v1419 = vadd.f32 %v440, %v1418
    %1420 = vmatmul.bf16.gmra.mxu0 %v302
    %v1421 = vpop.f32.mrf.mxu0
    %v1422 = vadd.f32 %v440, %v1421
    %v1423 = vpop.f32.mrf.mxu0
    %v1424 = vadd.f32 %v440, %v1423
    %1425 = vmatmul.bf16.gmra.mxu0 %v304
    %v1426 = vpop.f32.mrf.mxu0
    %v1427 = vadd.f32 %v440, %v1426
    %v1428 = vpop.f32.mrf.mxu0
    %v1429 = vadd.f32 %v440, %v1428
    %1430 = vmatmul.bf16.gmra.mxu0 %v306
    %v1431 = vpop.f32.mrf.mxu0
    %v1432 = vadd.f32 %v440, %v1431
    %v1433 = vpop.f32.mrf.mxu0
    %v1434 = vadd.f32 %v440, %v1433
    %1435 = vdwg.mxu0
    %1436 = vmatpush.bf16.msra.mxu0 %v960
    %1437 = vmatpush.bf16.msra.mxu0 %v952
    %1438 = vmatpush.bf16.msra.mxu0 %v944
    %1439 = vmatpush.bf16.msra.mxu0 %v936
    %1440 = vmatpush.bf16.msra.mxu0 %v928
    %1441 = vmatpush.bf16.msra.mxu0 %v920
    %1442 = vmatpush.bf16.msra.mxu0 %v912
    %1443 = vmatpush.bf16.msra.mxu0 %v904
    %1444 = vmatmul.bf16.gmra.mxu0 %v293
    %v1445 = vpop.f32.mrf.mxu0
    %v1446 = vadd.f32 %v1397, %v1445
    %v1447 = vpop.f32.mrf.mxu0
    %v1448 = vadd.f32 %v1399, %v1447
    %1449 = vmatmul.bf16.gmra.mxu0 %v295
    %v1450 = vpop.f32.mrf.mxu0
    %v1451 = vadd.f32 %v1402, %v1450
    %v1452 = vpop.f32.mrf.mxu0
    %v1453 = vadd.f32 %v1404, %v1452
    %1454 = vmatmul.bf16.gmra.mxu0 %v297
    %v1455 = vpop.f32.mrf.mxu0
    %v1456 = vadd.f32 %v1407, %v1455
    %v1457 = vpop.f32.mrf.mxu0
    %v1458 = vadd.f32 %v1409, %v1457
    %1459 = vmatmul.bf16.gmra.mxu0 %v299
    %v1460 = vpop.f32.mrf.mxu0
    %v1461 = vadd.f32 %v1412, %v1460
    %v1462 = vpop.f32.mrf.mxu0
    %v1463 = vadd.f32 %v1414, %v1462
    %1464 = vmatmul.bf16.gmra.mxu0 %v301
    %v1465 = vpop.f32.mrf.mxu0
    %v1466 = vadd.f32 %v1417, %v1465
    %v1467 = vpop.f32.mrf.mxu0
    %v1468 = vadd.f32 %v1419, %v1467
    %1469 = vmatmul.bf16.gmra.mxu0 %v303
    %v1470 = vpop.f32.mrf.mxu0
    %v1471 = vadd.f32 %v1422, %v1470
    %v1472 = vpop.f32.mrf.mxu0
    %v1473 = vadd.f32 %v1424, %v1472
    %1474 = vmatmul.bf16.gmra.mxu0 %v305
    %v1475 = vpop.f32.mrf.mxu0
    %v1476 = vadd.f32 %v1427, %v1475
    %v1477 = vpop.f32.mrf.mxu0
    %v1478 = vadd.f32 %v1429, %v1477
    %1479 = vmatmul.bf16.gmra.mxu0 %v307
    %v1480 = vpop.f32.mrf.mxu0
    %v1481 = vadd.f32 %v1432, %v1480
    %v1482 = vpop.f32.mrf.mxu0
    %v1483 = vadd.f32 %v1434, %v1482
    %1484 = vdwg.mxu0
    %1485 = vmatpush.bf16.msra.mxu0 %v897
    %1486 = vmatpush.bf16.msra.mxu0 %v889
    %1487 = vmatpush.bf16.msra.mxu0 %v881
    %1488 = vmatpush.bf16.msra.mxu0 %v873
    %1489 = vmatpush.bf16.msra.mxu0 %v865
    %1490 = vmatpush.bf16.msra.mxu0 %v857
    %1491 = vmatpush.bf16.msra.mxu0 %v849
    %1492 = vmatpush.bf16.msra.mxu0 %v841
    %1493 = vmatmul.bf16.gmra.mxu0 %v292
    %v1494 = vpop.f32.mrf.mxu0
    %v1495 = vadd.f32 %v441, %v1494
    %v1496 = vpop.f32.mrf.mxu0
    %v1497 = vadd.f32 %v441, %v1496
    %1498 = vmatmul.bf16.gmra.mxu0 %v294
    %v1499 = vpop.f32.mrf.mxu0
    %v1500 = vadd.f32 %v441, %v1499
    %v1501 = vpop.f32.mrf.mxu0
    %v1502 = vadd.f32 %v441, %v1501
    %1503 = vmatmul.bf16.gmra.mxu0 %v296
    %v1504 = vpop.f32.mrf.mxu0
    %v1505 = vadd.f32 %v441, %v1504
    %v1506 = vpop.f32.mrf.mxu0
    %v1507 = vadd.f32 %v441, %v1506
    %1508 = vmatmul.bf16.gmra.mxu0 %v298
    %v1509 = vpop.f32.mrf.mxu0
    %v1510 = vadd.f32 %v441, %v1509
    %v1511 = vpop.f32.mrf.mxu0
    %v1512 = vadd.f32 %v441, %v1511
    %1513 = vmatmul.bf16.gmra.mxu0 %v300
    %v1514 = vpop.f32.mrf.mxu0
    %v1515 = vadd.f32 %v441, %v1514
    %v1516 = vpop.f32.mrf.mxu0
    %v1517 = vadd.f32 %v441, %v1516
    %1518 = vmatmul.bf16.gmra.mxu0 %v302
    %v1519 = vpop.f32.mrf.mxu0
    %v1520 = vadd.f32 %v441, %v1519
    %v1521 = vpop.f32.mrf.mxu0
    %v1522 = vadd.f32 %v441, %v1521
    %1523 = vmatmul.bf16.gmra.mxu0 %v304
    %v1524 = vpop.f32.mrf.mxu0
    %v1525 = vadd.f32 %v441, %v1524
    %v1526 = vpop.f32.mrf.mxu0
    %v1527 = vadd.f32 %v441, %v1526
    %1528 = vmatmul.bf16.gmra.mxu0 %v306
    %v1529 = vpop.f32.mrf.mxu0
    %v1530 = vadd.f32 %v441, %v1529
    %v1531 = vpop.f32.mrf.mxu0
    %v1532 = vadd.f32 %v441, %v1531
    %1533 = vdwg.mxu0
    %1534 = vmatpush.bf16.msra.mxu0 %v961
    %1535 = vmatpush.bf16.msra.mxu0 %v953
    %1536 = vmatpush.bf16.msra.mxu0 %v945
    %1537 = vmatpush.bf16.msra.mxu0 %v937
    %1538 = vmatpush.bf16.msra.mxu0 %v929
    %1539 = vmatpush.bf16.msra.mxu0 %v921
    %1540 = vmatpush.bf16.msra.mxu0 %v913
    %1541 = vmatpush.bf16.msra.mxu0 %v905
    %1542 = vmatmul.bf16.gmra.mxu0 %v293
    %v1543 = vpop.f32.mrf.mxu0
    %v1544 = vadd.f32 %v1495, %v1543
    %v1545 = vpop.f32.mrf.mxu0
    %v1546 = vadd.f32 %v1497, %v1545
    %1547 = vmatmul.bf16.gmra.mxu0 %v295
    %v1548 = vpop.f32.mrf.mxu0
    %v1549 = vadd.f32 %v1500, %v1548
    %v1550 = vpop.f32.mrf.mxu0
    %v1551 = vadd.f32 %v1502, %v1550
    %1552 = vmatmul.bf16.gmra.mxu0 %v297
    %v1553 = vpop.f32.mrf.mxu0
    %v1554 = vadd.f32 %v1505, %v1553
    %v1555 = vpop.f32.mrf.mxu0
    %v1556 = vadd.f32 %v1507, %v1555
    %1557 = vmatmul.bf16.gmra.mxu0 %v299
    %v1558 = vpop.f32.mrf.mxu0
    %v1559 = vadd.f32 %v1510, %v1558
    %v1560 = vpop.f32.mrf.mxu0
    %v1561 = vadd.f32 %v1512, %v1560
    %1562 = vmatmul.bf16.gmra.mxu0 %v301
    %v1563 = vpop.f32.mrf.mxu0
    %v1564 = vadd.f32 %v1515, %v1563
    %v1565 = vpop.f32.mrf.mxu0
    %v1566 = vadd.f32 %v1517, %v1565
    %1567 = vmatmul.bf16.gmra.mxu0 %v303
    %v1568 = vpop.f32.mrf.mxu0
    %v1569 = vadd.f32 %v1520, %v1568
    %v1570 = vpop.f32.mrf.mxu0
    %v1571 = vadd.f32 %v1522, %v1570
    %1572 = vmatmul.bf16.gmra.mxu0 %v305
    %v1573 = vpop.f32.mrf.mxu0
    %v1574 = vadd.f32 %v1525, %v1573
    %v1575 = vpop.f32.mrf.mxu0
    %v1576 = vadd.f32 %v1527, %v1575
    %1577 = vmatmul.bf16.gmra.mxu0 %v307
    %v1578 = vpop.f32.mrf.mxu0
    %v1579 = vadd.f32 %v1530, %v1578
    %v1580 = vpop.f32.mrf.mxu0
    %v1581 = vadd.f32 %v1532, %v1580
    %1582 = vdwg.mxu0
    %1583 = vmatpush.bf16.msra.mxu0 %v898
    %1584 = vmatpush.bf16.msra.mxu0 %v890
    %1585 = vmatpush.bf16.msra.mxu0 %v882
    %1586 = vmatpush.bf16.msra.mxu0 %v874
    %1587 = vmatpush.bf16.msra.mxu0 %v866
    %1588 = vmatpush.bf16.msra.mxu0 %v858
    %1589 = vmatpush.bf16.msra.mxu0 %v850
    %1590 = vmatpush.bf16.msra.mxu0 %v842
    %1591 = vmatmul.bf16.gmra.mxu0 %v292
    %v1592 = vpop.f32.mrf.mxu0
    %v1593 = vadd.f32 %v442, %v1592
    %v1594 = vpop.f32.mrf.mxu0
    %v1595 = vadd.f32 %v442, %v1594
    %1596 = vmatmul.bf16.gmra.mxu0 %v294
    %v1597 = vpop.f32.mrf.mxu0
    %v1598 = vadd.f32 %v442, %v1597
    %v1599 = vpop.f32.mrf.mxu0
    %v1600 = vadd.f32 %v442, %v1599
    %1601 = vmatmul.bf16.gmra.mxu0 %v296
    %v1602 = vpop.f32.mrf.mxu0
    %v1603 = vadd.f32 %v442, %v1602
    %v1604 = vpop.f32.mrf.mxu0
    %v1605 = vadd.f32 %v442, %v1604
    %1606 = vmatmul.bf16.gmra.mxu0 %v298
    %v1607 = vpop.f32.mrf.mxu0
    %v1608 = vadd.f32 %v442, %v1607
    %v1609 = vpop.f32.mrf.mxu0
    %v1610 = vadd.f32 %v442, %v1609
    %1611 = vmatmul.bf16.gmra.mxu0 %v300
    %v1612 = vpop.f32.mrf.mxu0
    %v1613 = vadd.f32 %v442, %v1612
    %v1614 = vpop.f32.mrf.mxu0
    %v1615 = vadd.f32 %v442, %v1614
    %1616 = vmatmul.bf16.gmra.mxu0 %v302
    %v1617 = vpop.f32.mrf.mxu0
    %v1618 = vadd.f32 %v442, %v1617
    %v1619 = vpop.f32.mrf.mxu0
    %v1620 = vadd.f32 %v442, %v1619
    %1621 = vmatmul.bf16.gmra.mxu0 %v304
    %v1622 = vpop.f32.mrf.mxu0
    %v1623 = vadd.f32 %v442, %v1622
    %v1624 = vpop.f32.mrf.mxu0
    %v1625 = vadd.f32 %v442, %v1624
    %1626 = vmatmul.bf16.gmra.mxu0 %v306
    %v1627 = vpop.f32.mrf.mxu0
    %v1628 = vadd.f32 %v442, %v1627
    %v1629 = vpop.f32.mrf.mxu0
    %v1630 = vadd.f32 %v442, %v1629
    %1631 = vdwg.mxu0
    %1632 = vmatpush.bf16.msra.mxu0 %v962
    %1633 = vmatpush.bf16.msra.mxu0 %v954
    %1634 = vmatpush.bf16.msra.mxu0 %v946
    %1635 = vmatpush.bf16.msra.mxu0 %v938
    %1636 = vmatpush.bf16.msra.mxu0 %v930
    %1637 = vmatpush.bf16.msra.mxu0 %v922
    %1638 = vmatpush.bf16.msra.mxu0 %v914
    %1639 = vmatpush.bf16.msra.mxu0 %v906
    %1640 = vmatmul.bf16.gmra.mxu0 %v293
    %v1641 = vpop.f32.mrf.mxu0
    %v1642 = vadd.f32 %v1593, %v1641
    %v1643 = vpop.f32.mrf.mxu0
    %v1644 = vadd.f32 %v1595, %v1643
    %1645 = vmatmul.bf16.gmra.mxu0 %v295
    %v1646 = vpop.f32.mrf.mxu0
    %v1647 = vadd.f32 %v1598, %v1646
    %v1648 = vpop.f32.mrf.mxu0
    %v1649 = vadd.f32 %v1600, %v1648
    %1650 = vmatmul.bf16.gmra.mxu0 %v297
    %v1651 = vpop.f32.mrf.mxu0
    %v1652 = vadd.f32 %v1603, %v1651
    %v1653 = vpop.f32.mrf.mxu0
    %v1654 = vadd.f32 %v1605, %v1653
    %1655 = vmatmul.bf16.gmra.mxu0 %v299
    %v1656 = vpop.f32.mrf.mxu0
    %v1657 = vadd.f32 %v1608, %v1656
    %v1658 = vpop.f32.mrf.mxu0
    %v1659 = vadd.f32 %v1610, %v1658
    %1660 = vmatmul.bf16.gmra.mxu0 %v301
    %v1661 = vpop.f32.mrf.mxu0
    %v1662 = vadd.f32 %v1613, %v1661
    %v1663 = vpop.f32.mrf.mxu0
    %v1664 = vadd.f32 %v1615, %v1663
    %1665 = vmatmul.bf16.gmra.mxu0 %v303
    %v1666 = vpop.f32.mrf.mxu0
    %v1667 = vadd.f32 %v1618, %v1666
    %v1668 = vpop.f32.mrf.mxu0
    %v1669 = vadd.f32 %v1620, %v1668
    %1670 = vmatmul.bf16.gmra.mxu0 %v305
    %v1671 = vpop.f32.mrf.mxu0
    %v1672 = vadd.f32 %v1623, %v1671
    %v1673 = vpop.f32.mrf.mxu0
    %v1674 = vadd.f32 %v1625, %v1673
    %1675 = vmatmul.bf16.gmra.mxu0 %v307
    %v1676 = vpop.f32.mrf.mxu0
    %v1677 = vadd.f32 %v1628, %v1676
    %v1678 = vpop.f32.mrf.mxu0
    %v1679 = vadd.f32 %v1630, %v1678
    %1680 = vdwg.mxu0
    %1681 = vmatpush.bf16.msra.mxu0 %v899
    %1682 = vmatpush.bf16.msra.mxu0 %v891
    %1683 = vmatpush.bf16.msra.mxu0 %v883
    %1684 = vmatpush.bf16.msra.mxu0 %v875
    %1685 = vmatpush.bf16.msra.mxu0 %v867
    %1686 = vmatpush.bf16.msra.mxu0 %v859
    %1687 = vmatpush.bf16.msra.mxu0 %v851
    %1688 = vmatpush.bf16.msra.mxu0 %v843
    %1689 = vmatmul.bf16.gmra.mxu0 %v292
    %v1690 = vpop.f32.mrf.mxu0
    %v1691 = vadd.f32 %v443, %v1690
    %v1692 = vpop.f32.mrf.mxu0
    %v1693 = vadd.f32 %v443, %v1692
    %1694 = vmatmul.bf16.gmra.mxu0 %v294
    %v1695 = vpop.f32.mrf.mxu0
    %v1696 = vadd.f32 %v443, %v1695
    %v1697 = vpop.f32.mrf.mxu0
    %v1698 = vadd.f32 %v443, %v1697
    %1699 = vmatmul.bf16.gmra.mxu0 %v296
    %v1700 = vpop.f32.mrf.mxu0
    %v1701 = vadd.f32 %v443, %v1700
    %v1702 = vpop.f32.mrf.mxu0
    %v1703 = vadd.f32 %v443, %v1702
    %1704 = vmatmul.bf16.gmra.mxu0 %v298
    %v1705 = vpop.f32.mrf.mxu0
    %v1706 = vadd.f32 %v443, %v1705
    %v1707 = vpop.f32.mrf.mxu0
    %v1708 = vadd.f32 %v443, %v1707
    %1709 = vmatmul.bf16.gmra.mxu0 %v300
    %v1710 = vpop.f32.mrf.mxu0
    %v1711 = vadd.f32 %v443, %v1710
    %v1712 = vpop.f32.mrf.mxu0
    %v1713 = vadd.f32 %v443, %v1712
    %1714 = vmatmul.bf16.gmra.mxu0 %v302
    %v1715 = vpop.f32.mrf.mxu0
    %v1716 = vadd.f32 %v443, %v1715
    %v1717 = vpop.f32.mrf.mxu0
    %v1718 = vadd.f32 %v443, %v1717
    %1719 = vmatmul.bf16.gmra.mxu0 %v304
    %v1720 = vpop.f32.mrf.mxu0
    %v1721 = vadd.f32 %v443, %v1720
    %v1722 = vpop.f32.mrf.mxu0
    %v1723 = vadd.f32 %v443, %v1722
    %1724 = vmatmul.bf16.gmra.mxu0 %v306
    %v1725 = vpop.f32.mrf.mxu0
    %v1726 = vadd.f32 %v443, %v1725
    %v1727 = vpop.f32.mrf.mxu0
    %v1728 = vadd.f32 %v443, %v1727
    %1729 = vdwg.mxu0
    %1730 = vmatpush.bf16.msra.mxu0 %v963
    %1731 = vmatpush.bf16.msra.mxu0 %v955
    %1732 = vmatpush.bf16.msra.mxu0 %v947
    %1733 = vmatpush.bf16.msra.mxu0 %v939
    %1734 = vmatpush.bf16.msra.mxu0 %v931
    %1735 = vmatpush.bf16.msra.mxu0 %v923
    %1736 = vmatpush.bf16.msra.mxu0 %v915
    %1737 = vmatpush.bf16.msra.mxu0 %v907
    %1738 = vmatmul.bf16.gmra.mxu0 %v293
    %v1739 = vpop.f32.mrf.mxu0
    %v1740 = vadd.f32 %v1691, %v1739
    %v1741 = vpop.f32.mrf.mxu0
    %v1742 = vadd.f32 %v1693, %v1741
    %1743 = vmatmul.bf16.gmra.mxu0 %v295
    %v1744 = vpop.f32.mrf.mxu0
    %v1745 = vadd.f32 %v1696, %v1744
    %v1746 = vpop.f32.mrf.mxu0
    %v1747 = vadd.f32 %v1698, %v1746
    %1748 = vmatmul.bf16.gmra.mxu0 %v297
    %v1749 = vpop.f32.mrf.mxu0
    %v1750 = vadd.f32 %v1701, %v1749
    %v1751 = vpop.f32.mrf.mxu0
    %v1752 = vadd.f32 %v1703, %v1751
    %1753 = vmatmul.bf16.gmra.mxu0 %v299
    %v1754 = vpop.f32.mrf.mxu0
    %v1755 = vadd.f32 %v1706, %v1754
    %v1756 = vpop.f32.mrf.mxu0
    %v1757 = vadd.f32 %v1708, %v1756
    %1758 = vmatmul.bf16.gmra.mxu0 %v301
    %v1759 = vpop.f32.mrf.mxu0
    %v1760 = vadd.f32 %v1711, %v1759
    %v1761 = vpop.f32.mrf.mxu0
    %v1762 = vadd.f32 %v1713, %v1761
    %1763 = vmatmul.bf16.gmra.mxu0 %v303
    %v1764 = vpop.f32.mrf.mxu0
    %v1765 = vadd.f32 %v1716, %v1764
    %v1766 = vpop.f32.mrf.mxu0
    %v1767 = vadd.f32 %v1718, %v1766
    %1768 = vmatmul.bf16.gmra.mxu0 %v305
    %v1769 = vpop.f32.mrf.mxu0
    %v1770 = vadd.f32 %v1721, %v1769
    %v1771 = vpop.f32.mrf.mxu0
    %v1772 = vadd.f32 %v1723, %v1771
    %1773 = vmatmul.bf16.gmra.mxu0 %v307
    %v1774 = vpop.f32.mrf.mxu0
    %v1775 = vadd.f32 %v1726, %v1774
    %v1776 = vpop.f32.mrf.mxu0
    %v1777 = vadd.f32 %v1728, %v1776
    %1778 = vdwg.mxu0
    %1779 = vmatpush.bf16.msra.mxu0 %v900
    %1780 = vmatpush.bf16.msra.mxu0 %v892
    %1781 = vmatpush.bf16.msra.mxu0 %v884
    %1782 = vmatpush.bf16.msra.mxu0 %v876
    %1783 = vmatpush.bf16.msra.mxu0 %v868
    %1784 = vmatpush.bf16.msra.mxu0 %v860
    %1785 = vmatpush.bf16.msra.mxu0 %v852
    %1786 = vmatpush.bf16.msra.mxu0 %v844
    %1787 = vmatmul.bf16.gmra.mxu0 %v292
    %v1788 = vpop.f32.mrf.mxu0
    %v1789 = vadd.f32 %v444, %v1788
    %v1790 = vpop.f32.mrf.mxu0
    %v1791 = vadd.f32 %v444, %v1790
    %1792 = vmatmul.bf16.gmra.mxu0 %v294
    %v1793 = vpop.f32.mrf.mxu0
    %v1794 = vadd.f32 %v444, %v1793
    %v1795 = vpop.f32.mrf.mxu0
    %v1796 = vadd.f32 %v444, %v1795
    %1797 = vmatmul.bf16.gmra.mxu0 %v296
    %v1798 = vpop.f32.mrf.mxu0
    %v1799 = vadd.f32 %v444, %v1798
    %v1800 = vpop.f32.mrf.mxu0
    %v1801 = vadd.f32 %v444, %v1800
    %1802 = vmatmul.bf16.gmra.mxu0 %v298
    %v1803 = vpop.f32.mrf.mxu0
    %v1804 = vadd.f32 %v444, %v1803
    %v1805 = vpop.f32.mrf.mxu0
    %v1806 = vadd.f32 %v444, %v1805
    %1807 = vmatmul.bf16.gmra.mxu0 %v300
    %v1808 = vpop.f32.mrf.mxu0
    %v1809 = vadd.f32 %v444, %v1808
    %v1810 = vpop.f32.mrf.mxu0
    %v1811 = vadd.f32 %v444, %v1810
    %1812 = vmatmul.bf16.gmra.mxu0 %v302
    %v1813 = vpop.f32.mrf.mxu0
    %v1814 = vadd.f32 %v444, %v1813
    %v1815 = vpop.f32.mrf.mxu0
    %v1816 = vadd.f32 %v444, %v1815
    %1817 = vmatmul.bf16.gmra.mxu0 %v304
    %v1818 = vpop.f32.mrf.mxu0
    %v1819 = vadd.f32 %v444, %v1818
    %v1820 = vpop.f32.mrf.mxu0
    %v1821 = vadd.f32 %v444, %v1820
    %1822 = vmatmul.bf16.gmra.mxu0 %v306
    %v1823 = vpop.f32.mrf.mxu0
    %v1824 = vadd.f32 %v444, %v1823
    %v1825 = vpop.f32.mrf.mxu0
    %v1826 = vadd.f32 %v444, %v1825
    %1827 = vdwg.mxu0
    %1828 = vmatpush.bf16.msra.mxu0 %v964
    %1829 = vmatpush.bf16.msra.mxu0 %v956
    %1830 = vmatpush.bf16.msra.mxu0 %v948
    %1831 = vmatpush.bf16.msra.mxu0 %v940
    %1832 = vmatpush.bf16.msra.mxu0 %v932
    %1833 = vmatpush.bf16.msra.mxu0 %v924
    %1834 = vmatpush.bf16.msra.mxu0 %v916
    %1835 = vmatpush.bf16.msra.mxu0 %v908
    %1836 = vmatmul.bf16.gmra.mxu0 %v293
    %v1837 = vpop.f32.mrf.mxu0
    %v1838 = vadd.f32 %v1789, %v1837
    %v1839 = vpop.f32.mrf.mxu0
    %v1840 = vadd.f32 %v1791, %v1839
    %1841 = vmatmul.bf16.gmra.mxu0 %v295
    %v1842 = vpop.f32.mrf.mxu0
    %v1843 = vadd.f32 %v1794, %v1842
    %v1844 = vpop.f32.mrf.mxu0
    %v1845 = vadd.f32 %v1796, %v1844
    %1846 = vmatmul.bf16.gmra.mxu0 %v297
    %v1847 = vpop.f32.mrf.mxu0
    %v1848 = vadd.f32 %v1799, %v1847
    %v1849 = vpop.f32.mrf.mxu0
    %v1850 = vadd.f32 %v1801, %v1849
    %1851 = vmatmul.bf16.gmra.mxu0 %v299
    %v1852 = vpop.f32.mrf.mxu0
    %v1853 = vadd.f32 %v1804, %v1852
    %v1854 = vpop.f32.mrf.mxu0
    %v1855 = vadd.f32 %v1806, %v1854
    %1856 = vmatmul.bf16.gmra.mxu0 %v301
    %v1857 = vpop.f32.mrf.mxu0
    %v1858 = vadd.f32 %v1809, %v1857
    %v1859 = vpop.f32.mrf.mxu0
    %v1860 = vadd.f32 %v1811, %v1859
    %1861 = vmatmul.bf16.gmra.mxu0 %v303
    %v1862 = vpop.f32.mrf.mxu0
    %v1863 = vadd.f32 %v1814, %v1862
    %v1864 = vpop.f32.mrf.mxu0
    %v1865 = vadd.f32 %v1816, %v1864
    %1866 = vmatmul.bf16.gmra.mxu0 %v305
    %v1867 = vpop.f32.mrf.mxu0
    %v1868 = vadd.f32 %v1819, %v1867
    %v1869 = vpop.f32.mrf.mxu0
    %v1870 = vadd.f32 %v1821, %v1869
    %1871 = vmatmul.bf16.gmra.mxu0 %v307
    %v1872 = vpop.f32.mrf.mxu0
    %v1873 = vadd.f32 %v1824, %v1872
    %v1874 = vpop.f32.mrf.mxu0
    %v1875 = vadd.f32 %v1826, %v1874
    %1876 = vdwg.mxu0
    %v1877 = vadd.f32 %v1152, %v1250
    %v1878 = vadd.f32 %v1877, %v1348
    %v1879 = vadd.f32 %v1878, %v1446
    %v1880 = vadd.f32 %v1879, %v1544
    %v1881 = vadd.f32 %v1880, %v1642
    %v1882 = vadd.f32 %v1881, %v1740
    %v1883 = vadd.f32 %v1882, %v1838
    %1884 = vadd.xlane.f32.xlu0 %v1883
    %v1885 = vpop.xlane.xlu0 %1884
    %v1886 = vadd.f32 %v1154, %v1252
    %v1887 = vadd.f32 %v1886, %v1350
    %v1888 = vadd.f32 %v1887, %v1448
    %v1889 = vadd.f32 %v1888, %v1546
    %v1890 = vadd.f32 %v1889, %v1644
    %v1891 = vadd.f32 %v1890, %v1742
    %v1892 = vadd.f32 %v1891, %v1840
    %1893 = vadd.xlane.f32.xlu0 %v1892
    %v1894 = vpop.xlane.xlu0 %1893
    %v1895 = vadd.f32 %v1157, %v1255
    %v1896 = vadd.f32 %v1895, %v1353
    %v1897 = vadd.f32 %v1896, %v1451
    %v1898 = vadd.f32 %v1897, %v1549
    %v1899 = vadd.f32 %v1898, %v1647
    %v1900 = vadd.f32 %v1899, %v1745
    %v1901 = vadd.f32 %v1900, %v1843
    %1902 = vadd.xlane.f32.xlu0 %v1901
    %v1903 = vpop.xlane.xlu0 %1902
    %v1904 = vadd.f32 %v1159, %v1257
    %v1905 = vadd.f32 %v1904, %v1355
    %v1906 = vadd.f32 %v1905, %v1453
    %v1907 = vadd.f32 %v1906, %v1551
    %v1908 = vadd.f32 %v1907, %v1649
    %v1909 = vadd.f32 %v1908, %v1747
    %v1910 = vadd.f32 %v1909, %v1845
    %1911 = vadd.xlane.f32.xlu0 %v1910
    %v1912 = vpop.xlane.xlu0 %1911
    %v1913 = vadd.f32 %v1162, %v1260
    %v1914 = vadd.f32 %v1913, %v1358
    %v1915 = vadd.f32 %v1914, %v1456
    %v1916 = vadd.f32 %v1915, %v1554
    %v1917 = vadd.f32 %v1916, %v1652
    %v1918 = vadd.f32 %v1917, %v1750
    %v1919 = vadd.f32 %v1918, %v1848
    %1920 = vadd.xlane.f32.xlu0 %v1919
    %v1921 = vpop.xlane.xlu0 %1920
    %v1922 = vadd.f32 %v1164, %v1262
    %v1923 = vadd.f32 %v1922, %v1360
    %v1924 = vadd.f32 %v1923, %v1458
    %v1925 = vadd.f32 %v1924, %v1556
    %v1926 = vadd.f32 %v1925, %v1654
    %v1927 = vadd.f32 %v1926, %v1752
    %v1928 = vadd.f32 %v1927, %v1850
    %1929 = vadd.xlane.f32.xlu0 %v1928
    %v1930 = vpop.xlane.xlu0 %1929
    %v1931 = vadd.f32 %v1167, %v1265
    %v1932 = vadd.f32 %v1931, %v1363
    %v1933 = vadd.f32 %v1932, %v1461
    %v1934 = vadd.f32 %v1933, %v1559
    %v1935 = vadd.f32 %v1934, %v1657
    %v1936 = vadd.f32 %v1935, %v1755
    %v1937 = vadd.f32 %v1936, %v1853
    %1938 = vadd.xlane.f32.xlu0 %v1937
    %v1939 = vpop.xlane.xlu0 %1938
    %v1940 = vadd.f32 %v1169, %v1267
    %v1941 = vadd.f32 %v1940, %v1365
    %v1942 = vadd.f32 %v1941, %v1463
    %v1943 = vadd.f32 %v1942, %v1561
    %v1944 = vadd.f32 %v1943, %v1659
    %v1945 = vadd.f32 %v1944, %v1757
    %v1946 = vadd.f32 %v1945, %v1855
    %1947 = vadd.xlane.f32.xlu0 %v1946
    %v1948 = vpop.xlane.xlu0 %1947
    %v1949 = vadd.f32 %v1172, %v1270
    %v1950 = vadd.f32 %v1949, %v1368
    %v1951 = vadd.f32 %v1950, %v1466
    %v1952 = vadd.f32 %v1951, %v1564
    %v1953 = vadd.f32 %v1952, %v1662
    %v1954 = vadd.f32 %v1953, %v1760
    %v1955 = vadd.f32 %v1954, %v1858
    %1956 = vadd.xlane.f32.xlu0 %v1955
    %v1957 = vpop.xlane.xlu0 %1956
    %v1958 = vadd.f32 %v1174, %v1272
    %v1959 = vadd.f32 %v1958, %v1370
    %v1960 = vadd.f32 %v1959, %v1468
    %v1961 = vadd.f32 %v1960, %v1566
    %v1962 = vadd.f32 %v1961, %v1664
    %v1963 = vadd.f32 %v1962, %v1762
    %v1964 = vadd.f32 %v1963, %v1860
    %1965 = vadd.xlane.f32.xlu0 %v1964
    %v1966 = vpop.xlane.xlu0 %1965
    %v1967 = vadd.f32 %v1177, %v1275
    %v1968 = vadd.f32 %v1967, %v1373
    %v1969 = vadd.f32 %v1968, %v1471
    %v1970 = vadd.f32 %v1969, %v1569
    %v1971 = vadd.f32 %v1970, %v1667
    %v1972 = vadd.f32 %v1971, %v1765
    %v1973 = vadd.f32 %v1972, %v1863
    %1974 = vadd.xlane.f32.xlu0 %v1973
    %v1975 = vpop.xlane.xlu0 %1974
    %v1976 = vadd.f32 %v1179, %v1277
    %v1977 = vadd.f32 %v1976, %v1375
    %v1978 = vadd.f32 %v1977, %v1473
    %v1979 = vadd.f32 %v1978, %v1571
    %v1980 = vadd.f32 %v1979, %v1669
    %v1981 = vadd.f32 %v1980, %v1767
    %v1982 = vadd.f32 %v1981, %v1865
    %1983 = vadd.xlane.f32.xlu0 %v1982
    %v1984 = vpop.xlane.xlu0 %1983
    %v1985 = vadd.f32 %v1182, %v1280
    %v1986 = vadd.f32 %v1985, %v1378
    %v1987 = vadd.f32 %v1986, %v1476
    %v1988 = vadd.f32 %v1987, %v1574
    %v1989 = vadd.f32 %v1988, %v1672
    %v1990 = vadd.f32 %v1989, %v1770
    %v1991 = vadd.f32 %v1990, %v1868
    %1992 = vadd.xlane.f32.xlu0 %v1991
    %v1993 = vpop.xlane.xlu0 %1992
    %v1994 = vadd.f32 %v1184, %v1282
    %v1995 = vadd.f32 %v1994, %v1380
    %v1996 = vadd.f32 %v1995, %v1478
    %v1997 = vadd.f32 %v1996, %v1576
    %v1998 = vadd.f32 %v1997, %v1674
    %v1999 = vadd.f32 %v1998, %v1772
    %v2000 = vadd.f32 %v1999, %v1870
    %2001 = vadd.xlane.f32.xlu0 %v2000
    %v2002 = vpop.xlane.xlu0 %2001
    %v2003 = vadd.f32 %v1187, %v1285
    %v2004 = vadd.f32 %v2003, %v1383
    %v2005 = vadd.f32 %v2004, %v1481
    %v2006 = vadd.f32 %v2005, %v1579
    %v2007 = vadd.f32 %v2006, %v1677
    %v2008 = vadd.f32 %v2007, %v1775
    %v2009 = vadd.f32 %v2008, %v1873
    %2010 = vadd.xlane.f32.xlu0 %v2009
    %v2011 = vpop.xlane.xlu0 %2010
    %v2012 = vadd.f32 %v1189, %v1287
    %v2013 = vadd.f32 %v2012, %v1385
    %v2014 = vadd.f32 %v2013, %v1483
    %v2015 = vadd.f32 %v2014, %v1581
    %v2016 = vadd.f32 %v2015, %v1679
    %v2017 = vadd.f32 %v2016, %v1777
    %v2018 = vadd.f32 %v2017, %v1875
    %2019 = vadd.xlane.f32.xlu0 %v2018
    %v2020 = vpop.xlane.xlu0 %2019
    %v2021 = vrcp.pop 1024.0
    %v2022 = vmul.f32 1024.0, %v2021
    %v2023 = vsub.f32 1.0, %v2022
    %v2024 = vmul.f32 %v2021, %v2023
    %v2025 = vadd.f32 %v2021, %v2024
    %vm2026 = vweird.f32 %v2021
    %v2027 = vsel %vm2026, %v2021, %v2025
    %v2028 = vmul.f32 %v1885, %v2027
    %v2029 = vmul.f32 %v1894, %v2027
    %v2030 = vmul.f32 %v1903, %v2027
    %v2031 = vmul.f32 %v1912, %v2027
    %v2032 = vmul.f32 %v1921, %v2027
    %v2033 = vmul.f32 %v1930, %v2027
    %v2034 = vmul.f32 %v1939, %v2027
    %v2035 = vmul.f32 %v1948, %v2027
    %v2036 = vmul.f32 %v1957, %v2027
    %v2037 = vmul.f32 %v1966, %v2027
    %v2038 = vmul.f32 %v1975, %v2027
    %v2039 = vmul.f32 %v1984, %v2027
    %v2040 = vmul.f32 %v1993, %v2027
    %v2041 = vmul.f32 %v2002, %v2027
    %v2042 = vmul.f32 %v2011, %v2027
    %v2043 = vmul.f32 %v2020, %v2027
    %v2044 = vmul.f32 %v1152, %v1152
    %v2045 = vmul.f32 %v1250, %v1250
    %v2046 = vmul.f32 %v1348, %v1348
    %v2047 = vmul.f32 %v1446, %v1446
    %v2048 = vmul.f32 %v1544, %v1544
    %v2049 = vmul.f32 %v1642, %v1642
    %v2050 = vmul.f32 %v1740, %v1740
    %v2051 = vmul.f32 %v1838, %v1838
    %v2052 = vmul.f32 %v1154, %v1154
    %v2053 = vmul.f32 %v1252, %v1252
    %v2054 = vmul.f32 %v1350, %v1350
    %v2055 = vmul.f32 %v1448, %v1448
    %v2056 = vmul.f32 %v1546, %v1546
    %v2057 = vmul.f32 %v1644, %v1644
    %v2058 = vmul.f32 %v1742, %v1742
    %v2059 = vmul.f32 %v1840, %v1840
    %v2060 = vmul.f32 %v1157, %v1157
    %v2061 = vmul.f32 %v1255, %v1255
    %v2062 = vmul.f32 %v1353, %v1353
    %v2063 = vmul.f32 %v1451, %v1451
    %v2064 = vmul.f32 %v1549, %v1549
    %v2065 = vmul.f32 %v1647, %v1647
    %v2066 = vmul.f32 %v1745, %v1745
    %v2067 = vmul.f32 %v1843, %v1843
    %v2068 = vmul.f32 %v1159, %v1159
    %v2069 = vmul.f32 %v1257, %v1257
    %v2070 = vmul.f32 %v1355, %v1355
    %v2071 = vmul.f32 %v1453, %v1453
    %v2072 = vmul.f32 %v1551, %v1551
    %v2073 = vmul.f32 %v1649, %v1649
    %v2074 = vmul.f32 %v1747, %v1747
    %v2075 = vmul.f32 %v1845, %v1845
    %v2076 = vmul.f32 %v1162, %v1162
    %v2077 = vmul.f32 %v1260, %v1260
    %v2078 = vmul.f32 %v1358, %v1358
    %v2079 = vmul.f32 %v1456, %v1456
    %v2080 = vmul.f32 %v1554, %v1554
    %v2081 = vmul.f32 %v1652, %v1652
    %v2082 = vmul.f32 %v1750, %v1750
    %v2083 = vmul.f32 %v1848, %v1848
    %v2084 = vmul.f32 %v1164, %v1164
    %v2085 = vmul.f32 %v1262, %v1262
    %v2086 = vmul.f32 %v1360, %v1360
    %v2087 = vmul.f32 %v1458, %v1458
    %v2088 = vmul.f32 %v1556, %v1556
    %v2089 = vmul.f32 %v1654, %v1654
    %v2090 = vmul.f32 %v1752, %v1752
    %v2091 = vmul.f32 %v1850, %v1850
    %v2092 = vmul.f32 %v1167, %v1167
    %v2093 = vmul.f32 %v1265, %v1265
    %v2094 = vmul.f32 %v1363, %v1363
    %v2095 = vmul.f32 %v1461, %v1461
    %v2096 = vmul.f32 %v1559, %v1559
    %v2097 = vmul.f32 %v1657, %v1657
    %v2098 = vmul.f32 %v1755, %v1755
    %v2099 = vmul.f32 %v1853, %v1853
    %v2100 = vmul.f32 %v1169, %v1169
    %v2101 = vmul.f32 %v1267, %v1267
    %v2102 = vmul.f32 %v1365, %v1365
    %v2103 = vmul.f32 %v1463, %v1463
    %v2104 = vmul.f32 %v1561, %v1561
    %v2105 = vmul.f32 %v1659, %v1659
    %v2106 = vmul.f32 %v1757, %v1757
    %v2107 = vmul.f32 %v1855, %v1855
    %v2108 = vmul.f32 %v1172, %v1172
    %v2109 = vmul.f32 %v1270, %v1270
    %v2110 = vmul.f32 %v1368, %v1368
    %v2111 = vmul.f32 %v1466, %v1466
    %v2112 = vmul.f32 %v1564, %v1564
    %v2113 = vmul.f32 %v1662, %v1662
    %v2114 = vmul.f32 %v1760, %v1760
    %v2115 = vmul.f32 %v1858, %v1858
    %v2116 = vmul.f32 %v1174, %v1174
    %v2117 = vmul.f32 %v1272, %v1272
    %v2118 = vmul.f32 %v1370, %v1370
    %v2119 = vmul.f32 %v1468, %v1468
    %v2120 = vmul.f32 %v1566, %v1566
    %v2121 = vmul.f32 %v1664, %v1664
    %v2122 = vmul.f32 %v1762, %v1762
    %v2123 = vmul.f32 %v1860, %v1860
    %v2124 = vmul.f32 %v1177, %v1177
    %v2125 = vmul.f32 %v1275, %v1275
    %v2126 = vmul.f32 %v1373, %v1373
    %v2127 = vmul.f32 %v1471, %v1471
    %v2128 = vmul.f32 %v1569, %v1569
    %v2129 = vmul.f32 %v1667, %v1667
    %v2130 = vmul.f32 %v1765, %v1765
    %v2131 = vmul.f32 %v1863, %v1863
    %v2132 = vmul.f32 %v1179, %v1179
    %v2133 = vmul.f32 %v1277, %v1277
    %v2134 = vmul.f32 %v1375, %v1375
    %v2135 = vmul.f32 %v1473, %v1473
    %v2136 = vmul.f32 %v1571, %v1571
    %v2137 = vmul.f32 %v1669, %v1669
    %v2138 = vmul.f32 %v1767, %v1767
    %v2139 = vmul.f32 %v1865, %v1865
    %v2140 = vmul.f32 %v1182, %v1182
    %v2141 = vmul.f32 %v1280, %v1280
    %v2142 = vmul.f32 %v1378, %v1378
    %v2143 = vmul.f32 %v1476, %v1476
    %v2144 = vmul.f32 %v1574, %v1574
    %v2145 = vmul.f32 %v1672, %v1672
    %v2146 = vmul.f32 %v1770, %v1770
    %v2147 = vmul.f32 %v1868, %v1868
    %v2148 = vmul.f32 %v1184, %v1184
    %v2149 = vmul.f32 %v1282, %v1282
    %v2150 = vmul.f32 %v1380, %v1380
    %v2151 = vmul.f32 %v1478, %v1478
    %v2152 = vmul.f32 %v1576, %v1576
    %v2153 = vmul.f32 %v1674, %v1674
    %v2154 = vmul.f32 %v1772, %v1772
    %v2155 = vmul.f32 %v1870, %v1870
    %v2156 = vmul.f32 %v1187, %v1187
    %v2157 = vmul.f32 %v1285, %v1285
    %v2158 = vmul.f32 %v1383, %v1383
    %v2159 = vmul.f32 %v1481, %v1481
    %v2160 = vmul.f32 %v1579, %v1579
    %v2161 = vmul.f32 %v1677, %v1677
    %v2162 = vmul.f32 %v1775, %v1775
    %v2163 = vmul.f32 %v1873, %v1873
    %v2164 = vmul.f32 %v1189, %v1189
    %v2165 = vmul.f32 %v1287, %v1287
    %v2166 = vmul.f32 %v1385, %v1385
    %v2167 = vmul.f32 %v1483, %v1483
    %v2168 = vmul.f32 %v1581, %v1581
    %v2169 = vmul.f32 %v1679, %v1679
    %v2170 = vmul.f32 %v1777, %v1777
    %v2171 = vmul.f32 %v1875, %v1875
    %v2172 = vadd.f32 %v2044, %v2045
    %v2173 = vadd.f32 %v2172, %v2046
    %v2174 = vadd.f32 %v2173, %v2047
    %v2175 = vadd.f32 %v2174, %v2048
    %v2176 = vadd.f32 %v2175, %v2049
    %v2177 = vadd.f32 %v2176, %v2050
    %v2178 = vadd.f32 %v2177, %v2051
    %2179 = vadd.xlane.f32.xlu0 %v2178
    %v2180 = vpop.xlane.xlu0 %2179
    %v2181 = vadd.f32 %v2052, %v2053
    %v2182 = vadd.f32 %v2181, %v2054
    %v2183 = vadd.f32 %v2182, %v2055
    %v2184 = vadd.f32 %v2183, %v2056
    %v2185 = vadd.f32 %v2184, %v2057
    %v2186 = vadd.f32 %v2185, %v2058
    %v2187 = vadd.f32 %v2186, %v2059
    %2188 = vadd.xlane.f32.xlu0 %v2187
    %v2189 = vpop.xlane.xlu0 %2188
    %v2190 = vadd.f32 %v2060, %v2061
    %v2191 = vadd.f32 %v2190, %v2062
    %v2192 = vadd.f32 %v2191, %v2063
    %v2193 = vadd.f32 %v2192, %v2064
    %v2194 = vadd.f32 %v2193, %v2065
    %v2195 = vadd.f32 %v2194, %v2066
    %v2196 = vadd.f32 %v2195, %v2067
    %2197 = vadd.xlane.f32.xlu0 %v2196
    %v2198 = vpop.xlane.xlu0 %2197
    %v2199 = vadd.f32 %v2068, %v2069
    %v2200 = vadd.f32 %v2199, %v2070
    %v2201 = vadd.f32 %v2200, %v2071
    %v2202 = vadd.f32 %v2201, %v2072
    %v2203 = vadd.f32 %v2202, %v2073
    %v2204 = vadd.f32 %v2203, %v2074
    %v2205 = vadd.f32 %v2204, %v2075
    %2206 = vadd.xlane.f32.xlu0 %v2205
    %v2207 = vpop.xlane.xlu0 %2206
    %v2208 = vadd.f32 %v2076, %v2077
    %v2209 = vadd.f32 %v2208, %v2078
    %v2210 = vadd.f32 %v2209, %v2079
    %v2211 = vadd.f32 %v2210, %v2080
    %v2212 = vadd.f32 %v2211, %v2081
    %v2213 = vadd.f32 %v2212, %v2082
    %v2214 = vadd.f32 %v2213, %v2083
    %2215 = vadd.xlane.f32.xlu0 %v2214
    %v2216 = vpop.xlane.xlu0 %2215
    %v2217 = vadd.f32 %v2084, %v2085
    %v2218 = vadd.f32 %v2217, %v2086
    %v2219 = vadd.f32 %v2218, %v2087
    %v2220 = vadd.f32 %v2219, %v2088
    %v2221 = vadd.f32 %v2220, %v2089
    %v2222 = vadd.f32 %v2221, %v2090
    %v2223 = vadd.f32 %v2222, %v2091
    %2224 = vadd.xlane.f32.xlu0 %v2223
    %v2225 = vpop.xlane.xlu0 %2224
    %v2226 = vadd.f32 %v2092, %v2093
    %v2227 = vadd.f32 %v2226, %v2094
    %v2228 = vadd.f32 %v2227, %v2095
    %v2229 = vadd.f32 %v2228, %v2096
    %v2230 = vadd.f32 %v2229, %v2097
    %v2231 = vadd.f32 %v2230, %v2098
    %v2232 = vadd.f32 %v2231, %v2099
    %2233 = vadd.xlane.f32.xlu0 %v2232
    %v2234 = vpop.xlane.xlu0 %2233
    %v2235 = vadd.f32 %v2100, %v2101
    %v2236 = vadd.f32 %v2235, %v2102
    %v2237 = vadd.f32 %v2236, %v2103
    %v2238 = vadd.f32 %v2237, %v2104
    %v2239 = vadd.f32 %v2238, %v2105
    %v2240 = vadd.f32 %v2239, %v2106
    %v2241 = vadd.f32 %v2240, %v2107
    %2242 = vadd.xlane.f32.xlu0 %v2241
    %v2243 = vpop.xlane.xlu0 %2242
    %v2244 = vadd.f32 %v2108, %v2109
    %v2245 = vadd.f32 %v2244, %v2110
    %v2246 = vadd.f32 %v2245, %v2111
    %v2247 = vadd.f32 %v2246, %v2112
    %v2248 = vadd.f32 %v2247, %v2113
    %v2249 = vadd.f32 %v2248, %v2114
    %v2250 = vadd.f32 %v2249, %v2115
    %2251 = vadd.xlane.f32.xlu0 %v2250
    %v2252 = vpop.xlane.xlu0 %2251
    %v2253 = vadd.f32 %v2116, %v2117
    %v2254 = vadd.f32 %v2253, %v2118
    %v2255 = vadd.f32 %v2254, %v2119
    %v2256 = vadd.f32 %v2255, %v2120
    %v2257 = vadd.f32 %v2256, %v2121
    %v2258 = vadd.f32 %v2257, %v2122
    %v2259 = vadd.f32 %v2258, %v2123
    %2260 = vadd.xlane.f32.xlu0 %v2259
    %v2261 = vpop.xlane.xlu0 %2260
    %v2262 = vadd.f32 %v2124, %v2125
    %v2263 = vadd.f32 %v2262, %v2126
    %v2264 = vadd.f32 %v2263, %v2127
    %v2265 = vadd.f32 %v2264, %v2128
    %v2266 = vadd.f32 %v2265, %v2129
    %v2267 = vadd.f32 %v2266, %v2130
    %v2268 = vadd.f32 %v2267, %v2131
    %2269 = vadd.xlane.f32.xlu0 %v2268
    %v2270 = vpop.xlane.xlu0 %2269
    %v2271 = vadd.f32 %v2132, %v2133
    %v2272 = vadd.f32 %v2271, %v2134
    %v2273 = vadd.f32 %v2272, %v2135
    %v2274 = vadd.f32 %v2273, %v2136
    %v2275 = vadd.f32 %v2274, %v2137
    %v2276 = vadd.f32 %v2275, %v2138
    %v2277 = vadd.f32 %v2276, %v2139
    %2278 = vadd.xlane.f32.xlu0 %v2277
    %v2279 = vpop.xlane.xlu0 %2278
    %v2280 = vadd.f32 %v2140, %v2141
    %v2281 = vadd.f32 %v2280, %v2142
    %v2282 = vadd.f32 %v2281, %v2143
    %v2283 = vadd.f32 %v2282, %v2144
    %v2284 = vadd.f32 %v2283, %v2145
    %v2285 = vadd.f32 %v2284, %v2146
    %v2286 = vadd.f32 %v2285, %v2147
    %2287 = vadd.xlane.f32.xlu0 %v2286
    %v2288 = vpop.xlane.xlu0 %2287
    %v2289 = vadd.f32 %v2148, %v2149
    %v2290 = vadd.f32 %v2289, %v2150
    %v2291 = vadd.f32 %v2290, %v2151
    %v2292 = vadd.f32 %v2291, %v2152
    %v2293 = vadd.f32 %v2292, %v2153
    %v2294 = vadd.f32 %v2293, %v2154
    %v2295 = vadd.f32 %v2294, %v2155
    %2296 = vadd.xlane.f32.xlu0 %v2295
    %v2297 = vpop.xlane.xlu0 %2296
    %v2298 = vadd.f32 %v2156, %v2157
    %v2299 = vadd.f32 %v2298, %v2158
    %v2300 = vadd.f32 %v2299, %v2159
    %v2301 = vadd.f32 %v2300, %v2160
    %v2302 = vadd.f32 %v2301, %v2161
    %v2303 = vadd.f32 %v2302, %v2162
    %v2304 = vadd.f32 %v2303, %v2163
    %2305 = vadd.xlane.f32.xlu0 %v2304
    %v2306 = vpop.xlane.xlu0 %2305
    %v2307 = vadd.f32 %v2164, %v2165
    %v2308 = vadd.f32 %v2307, %v2166
    %v2309 = vadd.f32 %v2308, %v2167
    %v2310 = vadd.f32 %v2309, %v2168
    %v2311 = vadd.f32 %v2310, %v2169
    %v2312 = vadd.f32 %v2311, %v2170
    %v2313 = vadd.f32 %v2312, %v2171
    %2314 = vadd.xlane.f32.xlu0 %v2313
    %v2315 = vpop.xlane.xlu0 %2314
    %v2316 = vmul.f32 %v2180, %v2027
    %v2317 = vmul.f32 %v2189, %v2027
    %v2318 = vmul.f32 %v2198, %v2027
    %v2319 = vmul.f32 %v2207, %v2027
    %v2320 = vmul.f32 %v2216, %v2027
    %v2321 = vmul.f32 %v2225, %v2027
    %v2322 = vmul.f32 %v2234, %v2027
    %v2323 = vmul.f32 %v2243, %v2027
    %v2324 = vmul.f32 %v2252, %v2027
    %v2325 = vmul.f32 %v2261, %v2027
    %v2326 = vmul.f32 %v2270, %v2027
    %v2327 = vmul.f32 %v2279, %v2027
    %v2328 = vmul.f32 %v2288, %v2027
    %v2329 = vmul.f32 %v2297, %v2027
    %v2330 = vmul.f32 %v2306, %v2027
    %v2331 = vmul.f32 %v2315, %v2027
    %v2332 = vmul.f32 %v2028, %v2028
    %v2333 = vmul.f32 %v2029, %v2029
    %v2334 = vmul.f32 %v2030, %v2030
    %v2335 = vmul.f32 %v2031, %v2031
    %v2336 = vmul.f32 %v2032, %v2032
    %v2337 = vmul.f32 %v2033, %v2033
    %v2338 = vmul.f32 %v2034, %v2034
    %v2339 = vmul.f32 %v2035, %v2035
    %v2340 = vmul.f32 %v2036, %v2036
    %v2341 = vmul.f32 %v2037, %v2037
    %v2342 = vmul.f32 %v2038, %v2038
    %v2343 = vmul.f32 %v2039, %v2039
    %v2344 = vmul.f32 %v2040, %v2040
    %v2345 = vmul.f32 %v2041, %v2041
    %v2346 = vmul.f32 %v2042, %v2042
    %v2347 = vmul.f32 %v2043, %v2043
    %v2348 = vsub.f32 %v2316, %v2332
    %v2349 = vsub.f32 %v2317, %v2333
    %v2350 = vsub.f32 %v2318, %v2334
    %v2351 = vsub.f32 %v2319, %v2335
    %v2352 = vsub.f32 %v2320, %v2336
    %v2353 = vsub.f32 %v2321, %v2337
    %v2354 = vsub.f32 %v2322, %v2338
    %v2355 = vsub.f32 %v2323, %v2339
    %v2356 = vsub.f32 %v2324, %v2340
    %v2357 = vsub.f32 %v2325, %v2341
    %v2358 = vsub.f32 %v2326, %v2342
    %v2359 = vsub.f32 %v2327, %v2343
    %v2360 = vsub.f32 %v2328, %v2344
    %v2361 = vsub.f32 %v2329, %v2345
    %v2362 = vsub.f32 %v2330, %v2346
    %v2363 = vsub.f32 %v2331, %v2347
    %v2364 = vmax.f32 %v2348, 0.0
    %v2365 = vmax.f32 %v2349, 0.0
    %v2366 = vmax.f32 %v2350, 0.0
    %v2367 = vmax.f32 %v2351, 0.0
    %v2368 = vmax.f32 %v2352, 0.0
    %v2369 = vmax.f32 %v2353, 0.0
    %v2370 = vmax.f32 %v2354, 0.0
    %v2371 = vmax.f32 %v2355, 0.0
    %v2372 = vmax.f32 %v2356, 0.0
    %v2373 = vmax.f32 %v2357, 0.0
    %v2374 = vmax.f32 %v2358, 0.0
    %v2375 = vmax.f32 %v2359, 0.0
    %v2376 = vmax.f32 %v2360, 0.0
    %v2377 = vmax.f32 %v2361, 0.0
    %v2378 = vmax.f32 %v2362, 0.0
    %v2379 = vmax.f32 %v2363, 0.0
    %v2380 = vadd.f32 %v2364, 1e-05
    %v2381 = vadd.f32 %v2365, 1e-05
    %v2382 = vadd.f32 %v2366, 1e-05
    %v2383 = vadd.f32 %v2367, 1e-05
    %v2384 = vadd.f32 %v2368, 1e-05
    %v2385 = vadd.f32 %v2369, 1e-05
    %v2386 = vadd.f32 %v2370, 1e-05
    %v2387 = vadd.f32 %v2371, 1e-05
    %v2388 = vadd.f32 %v2372, 1e-05
    %v2389 = vadd.f32 %v2373, 1e-05
    %v2390 = vadd.f32 %v2374, 1e-05
    %v2391 = vadd.f32 %v2375, 1e-05
    %v2392 = vadd.f32 %v2376, 1e-05
    %v2393 = vadd.f32 %v2377, 1e-05
    %v2394 = vadd.f32 %v2378, 1e-05
    %v2395 = vadd.f32 %v2379, 1e-05
    %v2396 = vrsqrt.pop %v2380
    %v2397 = vmul.f32 %v2396, %v2380
    %v2398 = vmul.f32 %v2397, %v2396
    %v2399 = vmul.f32 0.5, %v2398
    %v2400 = vsub.f32 1.5, %v2399
    %v2401 = vmul.f32 %v2396, %v2400
    %vm2402 = vweird.f32 %v2380
    %vm2403 = vweird.f32 %v2396
    %vm2404 = vmor %vm2402, %vm2403
    %v2405 = vsel %vm2404, %v2396, %v2401
    %v2406 = vrsqrt.pop %v2381
    %v2407 = vmul.f32 %v2406, %v2381
    %v2408 = vmul.f32 %v2407, %v2406
    %v2409 = vmul.f32 0.5, %v2408
    %v2410 = vsub.f32 1.5, %v2409
    %v2411 = vmul.f32 %v2406, %v2410
    %vm2412 = vweird.f32 %v2381
    %vm2413 = vweird.f32 %v2406
    %vm2414 = vmor %vm2412, %vm2413
    %v2415 = vsel %vm2414, %v2406, %v2411
    %v2416 = vrsqrt.pop %v2382
    %v2417 = vmul.f32 %v2416, %v2382
    %v2418 = vmul.f32 %v2417, %v2416
    %v2419 = vmul.f32 0.5, %v2418
    %v2420 = vsub.f32 1.5, %v2419
    %v2421 = vmul.f32 %v2416, %v2420
    %vm2422 = vweird.f32 %v2382
    %vm2423 = vweird.f32 %v2416
    %vm2424 = vmor %vm2422, %vm2423
    %v2425 = vsel %vm2424, %v2416, %v2421
    %v2426 = vrsqrt.pop %v2383
    %v2427 = vmul.f32 %v2426, %v2383
    %v2428 = vmul.f32 %v2427, %v2426
    %v2429 = vmul.f32 0.5, %v2428
    %v2430 = vsub.f32 1.5, %v2429
    %v2431 = vmul.f32 %v2426, %v2430
    %vm2432 = vweird.f32 %v2383
    %vm2433 = vweird.f32 %v2426
    %vm2434 = vmor %vm2432, %vm2433
    %v2435 = vsel %vm2434, %v2426, %v2431
    %v2436 = vrsqrt.pop %v2384
    %v2437 = vmul.f32 %v2436, %v2384
    %v2438 = vmul.f32 %v2437, %v2436
    %v2439 = vmul.f32 0.5, %v2438
    %v2440 = vsub.f32 1.5, %v2439
    %v2441 = vmul.f32 %v2436, %v2440
    %vm2442 = vweird.f32 %v2384
    %vm2443 = vweird.f32 %v2436
    %vm2444 = vmor %vm2442, %vm2443
    %v2445 = vsel %vm2444, %v2436, %v2441
    %v2446 = vrsqrt.pop %v2385
    %v2447 = vmul.f32 %v2446, %v2385
    %v2448 = vmul.f32 %v2447, %v2446
    %v2449 = vmul.f32 0.5, %v2448
    %v2450 = vsub.f32 1.5, %v2449
    %v2451 = vmul.f32 %v2446, %v2450
    %vm2452 = vweird.f32 %v2385
    %vm2453 = vweird.f32 %v2446
    %vm2454 = vmor %vm2452, %vm2453
    %v2455 = vsel %vm2454, %v2446, %v2451
    %v2456 = vrsqrt.pop %v2386
    %v2457 = vmul.f32 %v2456, %v2386
    %v2458 = vmul.f32 %v2457, %v2456
    %v2459 = vmul.f32 0.5, %v2458
    %v2460 = vsub.f32 1.5, %v2459
    %v2461 = vmul.f32 %v2456, %v2460
    %vm2462 = vweird.f32 %v2386
    %vm2463 = vweird.f32 %v2456
    %vm2464 = vmor %vm2462, %vm2463
    %v2465 = vsel %vm2464, %v2456, %v2461
    %v2466 = vrsqrt.pop %v2387
    %v2467 = vmul.f32 %v2466, %v2387
    %v2468 = vmul.f32 %v2467, %v2466
    %v2469 = vmul.f32 0.5, %v2468
    %v2470 = vsub.f32 1.5, %v2469
    %v2471 = vmul.f32 %v2466, %v2470
    %vm2472 = vweird.f32 %v2387
    %vm2473 = vweird.f32 %v2466
    %vm2474 = vmor %vm2472, %vm2473
    %v2475 = vsel %vm2474, %v2466, %v2471
    %v2476 = vrsqrt.pop %v2388
    %v2477 = vmul.f32 %v2476, %v2388
    %v2478 = vmul.f32 %v2477, %v2476
    %v2479 = vmul.f32 0.5, %v2478
    %v2480 = vsub.f32 1.5, %v2479
    %v2481 = vmul.f32 %v2476, %v2480
    %vm2482 = vweird.f32 %v2388
    %vm2483 = vweird.f32 %v2476
    %vm2484 = vmor %vm2482, %vm2483
    %v2485 = vsel %vm2484, %v2476, %v2481
    %v2486 = vrsqrt.pop %v2389
    %v2487 = vmul.f32 %v2486, %v2389
    %v2488 = vmul.f32 %v2487, %v2486
    %v2489 = vmul.f32 0.5, %v2488
    %v2490 = vsub.f32 1.5, %v2489
    %v2491 = vmul.f32 %v2486, %v2490
    %vm2492 = vweird.f32 %v2389
    %vm2493 = vweird.f32 %v2486
    %vm2494 = vmor %vm2492, %vm2493
    %v2495 = vsel %vm2494, %v2486, %v2491
    %v2496 = vrsqrt.pop %v2390
    %v2497 = vmul.f32 %v2496, %v2390
    %v2498 = vmul.f32 %v2497, %v2496
    %v2499 = vmul.f32 0.5, %v2498
    %v2500 = vsub.f32 1.5, %v2499
    %v2501 = vmul.f32 %v2496, %v2500
    %vm2502 = vweird.f32 %v2390
    %vm2503 = vweird.f32 %v2496
    %vm2504 = vmor %vm2502, %vm2503
    %v2505 = vsel %vm2504, %v2496, %v2501
    %v2506 = vrsqrt.pop %v2391
    %v2507 = vmul.f32 %v2506, %v2391
    %v2508 = vmul.f32 %v2507, %v2506
    %v2509 = vmul.f32 0.5, %v2508
    %v2510 = vsub.f32 1.5, %v2509
    %v2511 = vmul.f32 %v2506, %v2510
    %vm2512 = vweird.f32 %v2391
    %vm2513 = vweird.f32 %v2506
    %vm2514 = vmor %vm2512, %vm2513
    %v2515 = vsel %vm2514, %v2506, %v2511
    %v2516 = vrsqrt.pop %v2392
    %v2517 = vmul.f32 %v2516, %v2392
    %v2518 = vmul.f32 %v2517, %v2516
    %v2519 = vmul.f32 0.5, %v2518
    %v2520 = vsub.f32 1.5, %v2519
    %v2521 = vmul.f32 %v2516, %v2520
    %vm2522 = vweird.f32 %v2392
    %vm2523 = vweird.f32 %v2516
    %vm2524 = vmor %vm2522, %vm2523
    %v2525 = vsel %vm2524, %v2516, %v2521
    %v2526 = vrsqrt.pop %v2393
    %v2527 = vmul.f32 %v2526, %v2393
    %v2528 = vmul.f32 %v2527, %v2526
    %v2529 = vmul.f32 0.5, %v2528
    %v2530 = vsub.f32 1.5, %v2529
    %v2531 = vmul.f32 %v2526, %v2530
    %vm2532 = vweird.f32 %v2393
    %vm2533 = vweird.f32 %v2526
    %vm2534 = vmor %vm2532, %vm2533
    %v2535 = vsel %vm2534, %v2526, %v2531
    %v2536 = vrsqrt.pop %v2394
    %v2537 = vmul.f32 %v2536, %v2394
    %v2538 = vmul.f32 %v2537, %v2536
    %v2539 = vmul.f32 0.5, %v2538
    %v2540 = vsub.f32 1.5, %v2539
    %v2541 = vmul.f32 %v2536, %v2540
    %vm2542 = vweird.f32 %v2394
    %vm2543 = vweird.f32 %v2536
    %vm2544 = vmor %vm2542, %vm2543
    %v2545 = vsel %vm2544, %v2536, %v2541
    %v2546 = vrsqrt.pop %v2395
    %v2547 = vmul.f32 %v2546, %v2395
    %v2548 = vmul.f32 %v2547, %v2546
    %v2549 = vmul.f32 0.5, %v2548
    %v2550 = vsub.f32 1.5, %v2549
    %v2551 = vmul.f32 %v2546, %v2550
    %vm2552 = vweird.f32 %v2395
    %vm2553 = vweird.f32 %v2546
    %vm2554 = vmor %vm2552, %vm2553
    %v2555 = vsel %vm2554, %v2546, %v2551
    %v2556 = vpack.c.bf16 %v1154, %v1152
    %v2557 = vpack.c.bf16 %v1252, %v1250
    %v2558 = vpack.c.bf16 %v1350, %v1348
    %v2559 = vpack.c.bf16 %v1448, %v1446
    %v2560 = vpack.c.bf16 %v1546, %v1544
    %v2561 = vpack.c.bf16 %v1644, %v1642
    %v2562 = vpack.c.bf16 %v1742, %v1740
    %v2563 = vpack.c.bf16 %v1840, %v1838
    %v2564 = vpack.c.bf16 %v1159, %v1157
    %v2565 = vpack.c.bf16 %v1257, %v1255
    %v2566 = vpack.c.bf16 %v1355, %v1353
    %v2567 = vpack.c.bf16 %v1453, %v1451
    %v2568 = vpack.c.bf16 %v1551, %v1549
    %v2569 = vpack.c.bf16 %v1649, %v1647
    %v2570 = vpack.c.bf16 %v1747, %v1745
    %v2571 = vpack.c.bf16 %v1845, %v1843
    %v2572 = vpack.c.bf16 %v1164, %v1162
    %v2573 = vpack.c.bf16 %v1262, %v1260
    %v2574 = vpack.c.bf16 %v1360, %v1358
    %v2575 = vpack.c.bf16 %v1458, %v1456
    %v2576 = vpack.c.bf16 %v1556, %v1554
    %v2577 = vpack.c.bf16 %v1654, %v1652
    %v2578 = vpack.c.bf16 %v1752, %v1750
    %v2579 = vpack.c.bf16 %v1850, %v1848
    %v2580 = vpack.c.bf16 %v1169, %v1167
    %v2581 = vpack.c.bf16 %v1267, %v1265
    %v2582 = vpack.c.bf16 %v1365, %v1363
    %v2583 = vpack.c.bf16 %v1463, %v1461
    %v2584 = vpack.c.bf16 %v1561, %v1559
    %v2585 = vpack.c.bf16 %v1659, %v1657
    %v2586 = vpack.c.bf16 %v1757, %v1755
    %v2587 = vpack.c.bf16 %v1855, %v1853
    %v2588 = vpack.c.bf16 %v1174, %v1172
    %v2589 = vpack.c.bf16 %v1272, %v1270
    %v2590 = vpack.c.bf16 %v1370, %v1368
    %v2591 = vpack.c.bf16 %v1468, %v1466
    %v2592 = vpack.c.bf16 %v1566, %v1564
    %v2593 = vpack.c.bf16 %v1664, %v1662
    %v2594 = vpack.c.bf16 %v1762, %v1760
    %v2595 = vpack.c.bf16 %v1860, %v1858
    %v2596 = vpack.c.bf16 %v1179, %v1177
    %v2597 = vpack.c.bf16 %v1277, %v1275
    %v2598 = vpack.c.bf16 %v1375, %v1373
    %v2599 = vpack.c.bf16 %v1473, %v1471
    %v2600 = vpack.c.bf16 %v1571, %v1569
    %v2601 = vpack.c.bf16 %v1669, %v1667
    %v2602 = vpack.c.bf16 %v1767, %v1765
    %v2603 = vpack.c.bf16 %v1865, %v1863
    %v2604 = vpack.c.bf16 %v1184, %v1182
    %v2605 = vpack.c.bf16 %v1282, %v1280
    %v2606 = vpack.c.bf16 %v1380, %v1378
    %v2607 = vpack.c.bf16 %v1478, %v1476
    %v2608 = vpack.c.bf16 %v1576, %v1574
    %v2609 = vpack.c.bf16 %v1674, %v1672
    %v2610 = vpack.c.bf16 %v1772, %v1770
    %v2611 = vpack.c.bf16 %v1870, %v1868
    %v2612 = vpack.c.bf16 %v1189, %v1187
    %v2613 = vpack.c.bf16 %v1287, %v1285
    %v2614 = vpack.c.bf16 %v1385, %v1383
    %v2615 = vpack.c.bf16 %v1483, %v1481
    %v2616 = vpack.c.bf16 %v1581, %v1579
    %v2617 = vpack.c.bf16 %v1679, %v1677
    %v2618 = vpack.c.bf16 %v1777, %v1775
    %v2619 = vpack.c.bf16 %v1875, %v1873
    %v2620 = vld [vmem:[#allocation4] sm:$0xf]
    %v2621 = vld [vmem:[#allocation4 + $0x4] sm:$0xf]
    %v2622 = vld [vmem:[#allocation4 + $0x8] sm:$0xf]
    %v2623 = vld [vmem:[#allocation4 + $0xc] sm:$0xf]
    %v2624 = vld [vmem:[#allocation4 + $0x10] sm:$0xf]
    %v2625 = vld [vmem:[#allocation4 + $0x14] sm:$0xf]
    %v2626 = vld [vmem:[#allocation4 + $0x18] sm:$0xf]
    %v2627 = vld [vmem:[#allocation4 + $0x1c] sm:$0xf]
    %v2628 = vld [vmem:[#allocation4 + $0x20] sm:$0xf]
    %v2629 = vld [vmem:[#allocation4 + $0x24] sm:$0xf]
    %v2630 = vld [vmem:[#allocation4 + $0x28] sm:$0xf]
    %v2631 = vld [vmem:[#allocation4 + $0x2c] sm:$0xf]
    %v2632 = vld [vmem:[#allocation4 + $0x30] sm:$0xf]
    %v2633 = vld [vmem:[#allocation4 + $0x34] sm:$0xf]
    %v2634 = vld [vmem:[#allocation4 + $0x38] sm:$0xf]
    %v2635 = vld [vmem:[#allocation4 + $0x3c] sm:$0xf]
    %v2636 = vld [vmem:[#allocation4 + $0x40] sm:$0xf]
    %v2637 = vld [vmem:[#allocation4 + $0x44] sm:$0xf]
    %v2638 = vld [vmem:[#allocation4 + $0x48] sm:$0xf]
    %v2639 = vld [vmem:[#allocation4 + $0x4c] sm:$0xf]
    %v2640 = vld [vmem:[#allocation4 + $0x50] sm:$0xf]
    %v2641 = vld [vmem:[#allocation4 + $0x54] sm:$0xf]
    %v2642 = vld [vmem:[#allocation4 + $0x58] sm:$0xf]
    %v2643 = vld [vmem:[#allocation4 + $0x5c] sm:$0xf]
    %v2644 = vld [vmem:[#allocation4 + $0x60] sm:$0xf]
    %v2645 = vld [vmem:[#allocation4 + $0x64] sm:$0xf]
    %v2646 = vld [vmem:[#allocation4 + $0x68] sm:$0xf]
    %v2647 = vld [vmem:[#allocation4 + $0x6c] sm:$0xf]
    %v2648 = vld [vmem:[#allocation4 + $0x70] sm:$0xf]
    %v2649 = vld [vmem:[#allocation4 + $0x74] sm:$0xf]
    %v2650 = vld [vmem:[#allocation4 + $0x78] sm:$0xf]
    %v2651 = vld [vmem:[#allocation4 + $0x7c] sm:$0xf]
    %v2652 = vld [vmem:[#allocation4 + $0x80] sm:$0xf]
    %v2653 = vld [vmem:[#allocation4 + $0x84] sm:$0xf]
    %v2654 = vld [vmem:[#allocation4 + $0x88] sm:$0xf]
    %v2655 = vld [vmem:[#allocation4 + $0x8c] sm:$0xf]
    %v2656 = vld [vmem:[#allocation4 + $0x90] sm:$0xf]
    %v2657 = vld [vmem:[#allocation4 + $0x94] sm:$0xf]
    %v2658 = vld [vmem:[#allocation4 + $0x98] sm:$0xf]
    %v2659 = vld [vmem:[#allocation4 + $0x9c] sm:$0xf]
    %v2660 = vld [vmem:[#allocation4 + $0xa0] sm:$0xf]
    %v2661 = vld [vmem:[#allocation4 + $0xa4] sm:$0xf]
    %v2662 = vld [vmem:[#allocation4 + $0xa8] sm:$0xf]
    %v2663 = vld [vmem:[#allocation4 + $0xac] sm:$0xf]
    %v2664 = vld [vmem:[#allocation4 + $0xb0] sm:$0xf]
    %v2665 = vld [vmem:[#allocation4 + $0xb4] sm:$0xf]
    %v2666 = vld [vmem:[#allocation4 + $0xb8] sm:$0xf]
    %v2667 = vld [vmem:[#allocation4 + $0xbc] sm:$0xf]
    %v2668 = vld [vmem:[#allocation4 + $0xc0] sm:$0xf]
    %v2669 = vld [vmem:[#allocation4 + $0xc4] sm:$0xf]
    %v2670 = vld [vmem:[#allocation4 + $0xc8] sm:$0xf]
    %v2671 = vld [vmem:[#allocation4 + $0xcc] sm:$0xf]
    %v2672 = vld [vmem:[#allocation4 + $0xd0] sm:$0xf]
    %v2673 = vld [vmem:[#allocation4 + $0xd4] sm:$0xf]
    %v2674 = vld [vmem:[#allocation4 + $0xd8] sm:$0xf]
    %v2675 = vld [vmem:[#allocation4 + $0xdc] sm:$0xf]
    %v2676 = vld [vmem:[#allocation4 + $0xe0] sm:$0xf]
    %v2677 = vld [vmem:[#allocation4 + $0xe4] sm:$0xf]
    %v2678 = vld [vmem:[#allocation4 + $0xe8] sm:$0xf]
    %v2679 = vld [vmem:[#allocation4 + $0xec] sm:$0xf]
    %v2680 = vld [vmem:[#allocation4 + $0xf0] sm:$0xf]
    %v2681 = vld [vmem:[#allocation4 + $0xf4] sm:$0xf]
    %v2682 = vld [vmem:[#allocation4 + $0xf8] sm:$0xf]
    %v2683 = vld [vmem:[#allocation4 + $0xfc] sm:$0xf]
    %v2684 = vld [vmem:[#allocation4 + $0x100] sm:$0xf]
    %v2685 = vld [vmem:[#allocation4 + $0x104] sm:$0xf]
    %v2686 = vld [vmem:[#allocation4 + $0x108] sm:$0xf]
    %v2687 = vld [vmem:[#allocation4 + $0x10c] sm:$0xf]
    %v2688 = vld [vmem:[#allocation4 + $0x110] sm:$0xf]
    %v2689 = vld [vmem:[#allocation4 + $0x114] sm:$0xf]
    %v2690 = vld [vmem:[#allocation4 + $0x118] sm:$0xf]
    %v2691 = vld [vmem:[#allocation4 + $0x11c] sm:$0xf]
    %v2692 = vld [vmem:[#allocation4 + $0x120] sm:$0xf]
    %v2693 = vld [vmem:[#allocation4 + $0x124] sm:$0xf]
    %v2694 = vld [vmem:[#allocation4 + $0x128] sm:$0xf]
    %v2695 = vld [vmem:[#allocation4 + $0x12c] sm:$0xf]
    %v2696 = vld [vmem:[#allocation4 + $0x130] sm:$0xf]
    %v2697 = vld [vmem:[#allocation4 + $0x134] sm:$0xf]
    %v2698 = vld [vmem:[#allocation4 + $0x138] sm:$0xf]
    %v2699 = vld [vmem:[#allocation4 + $0x13c] sm:$0xf]
    %v2700 = vld [vmem:[#allocation4 + $0x140] sm:$0xf]
    %v2701 = vld [vmem:[#allocation4 + $0x144] sm:$0xf]
    %v2702 = vld [vmem:[#allocation4 + $0x148] sm:$0xf]
    %v2703 = vld [vmem:[#allocation4 + $0x14c] sm:$0xf]
    %v2704 = vld [vmem:[#allocation4 + $0x150] sm:$0xf]
    %v2705 = vld [vmem:[#allocation4 + $0x154] sm:$0xf]
    %v2706 = vld [vmem:[#allocation4 + $0x158] sm:$0xf]
    %v2707 = vld [vmem:[#allocation4 + $0x15c] sm:$0xf]
    %v2708 = vld [vmem:[#allocation4 + $0x160] sm:$0xf]
    %v2709 = vld [vmem:[#allocation4 + $0x164] sm:$0xf]
    %v2710 = vld [vmem:[#allocation4 + $0x168] sm:$0xf]
    %v2711 = vld [vmem:[#allocation4 + $0x16c] sm:$0xf]
    %v2712 = vld [vmem:[#allocation4 + $0x170] sm:$0xf]
    %v2713 = vld [vmem:[#allocation4 + $0x174] sm:$0xf]
    %v2714 = vld [vmem:[#allocation4 + $0x178] sm:$0xf]
    %v2715 = vld [vmem:[#allocation4 + $0x17c] sm:$0xf]
    %v2716 = vld [vmem:[#allocation4 + $0x180] sm:$0xf]
    %v2717 = vld [vmem:[#allocation4 + $0x184] sm:$0xf]
    %v2718 = vld [vmem:[#allocation4 + $0x188] sm:$0xf]
    %v2719 = vld [vmem:[#allocation4 + $0x18c] sm:$0xf]
    %v2720 = vld [vmem:[#allocation4 + $0x190] sm:$0xf]
    %v2721 = vld [vmem:[#allocation4 + $0x194] sm:$0xf]
    %v2722 = vld [vmem:[#allocation4 + $0x198] sm:$0xf]
    %v2723 = vld [vmem:[#allocation4 + $0x19c] sm:$0xf]
    %v2724 = vld [vmem:[#allocation4 + $0x1a0] sm:$0xf]
    %v2725 = vld [vmem:[#allocation4 + $0x1a4] sm:$0xf]
    %v2726 = vld [vmem:[#allocation4 + $0x1a8] sm:$0xf]
    %v2727 = vld [vmem:[#allocation4 + $0x1ac] sm:$0xf]
    %v2728 = vld [vmem:[#allocation4 + $0x1b0] sm:$0xf]
    %v2729 = vld [vmem:[#allocation4 + $0x1b4] sm:$0xf]
    %v2730 = vld [vmem:[#allocation4 + $0x1b8] sm:$0xf]
    %v2731 = vld [vmem:[#allocation4 + $0x1bc] sm:$0xf]
    %v2732 = vld [vmem:[#allocation4 + $0x1c0] sm:$0xf]
    %v2733 = vld [vmem:[#allocation4 + $0x1c4] sm:$0xf]
    %v2734 = vld [vmem:[#allocation4 + $0x1c8] sm:$0xf]
    %v2735 = vld [vmem:[#allocation4 + $0x1cc] sm:$0xf]
    %v2736 = vld [vmem:[#allocation4 + $0x1d0] sm:$0xf]
    %v2737 = vld [vmem:[#allocation4 + $0x1d4] sm:$0xf]
    %v2738 = vld [vmem:[#allocation4 + $0x1d8] sm:$0xf]
    %v2739 = vld [vmem:[#allocation4 + $0x1dc] sm:$0xf]
    %v2740 = vld [vmem:[#allocation4 + $0x1e0] sm:$0xf]
    %v2741 = vld [vmem:[#allocation4 + $0x1e4] sm:$0xf]
    %v2742 = vld [vmem:[#allocation4 + $0x1e8] sm:$0xf]
    %v2743 = vld [vmem:[#allocation4 + $0x1ec] sm:$0xf]
    %v2744 = vld [vmem:[#allocation4 + $0x1f0] sm:$0xf]
    %v2745 = vld [vmem:[#allocation4 + $0x1f4] sm:$0xf]
    %v2746 = vld [vmem:[#allocation4 + $0x1f8] sm:$0xf]
    %v2747 = vld [vmem:[#allocation4 + $0x1fc] sm:$0xf]
    %v2876 = vunpack.c.l.b16 %v2620
    %v2877 = vunpack.c.l.b16 %v2621
    %v2878 = vunpack.c.l.b16 %v2622
    %v2879 = vunpack.c.l.b16 %v2623
    %v2880 = vunpack.c.l.b16 %v2624
    %v2881 = vunpack.c.l.b16 %v2625
    %v2882 = vunpack.c.l.b16 %v2626
    %v2883 = vunpack.c.l.b16 %v2627
    %v2884 = vunpack.c.l.b16 %v2628
    %v2885 = vunpack.c.l.b16 %v2629
    %v2886 = vunpack.c.l.b16 %v2630
    %v2887 = vunpack.c.l.b16 %v2631
    %v2888 = vunpack.c.l.b16 %v2632
    %v2889 = vunpack.c.l.b16 %v2633
    %v2890 = vunpack.c.l.b16 %v2634
    %v2891 = vunpack.c.l.b16 %v2635
    %v2892 = vunpack.c.l.b16 %v2636
    %v2893 = vunpack.c.l.b16 %v2637
    %v2894 = vunpack.c.l.b16 %v2638
    %v2895 = vunpack.c.l.b16 %v2639
    %v2896 = vunpack.c.l.b16 %v2640
    %v2897 = vunpack.c.l.b16 %v2641
    %v2898 = vunpack.c.l.b16 %v2642
    %v2899 = vunpack.c.l.b16 %v2643
    %v2900 = vunpack.c.l.b16 %v2644
    %v2901 = vunpack.c.l.b16 %v2645
    %v2902 = vunpack.c.l.b16 %v2646
    %v2903 = vunpack.c.l.b16 %v2647
    %v2904 = vunpack.c.l.b16 %v2648
    %v2905 = vunpack.c.l.b16 %v2649
    %v2906 = vunpack.c.l.b16 %v2650
    %v2907 = vunpack.c.l.b16 %v2651
    %v2908 = vunpack.c.l.b16 %v2652
    %v2909 = vunpack.c.l.b16 %v2653
    %v2910 = vunpack.c.l.b16 %v2654
    %v2911 = vunpack.c.l.b16 %v2655
    %v2912 = vunpack.c.l.b16 %v2656
    %v2913 = vunpack.c.l.b16 %v2657
    %v2914 = vunpack.c.l.b16 %v2658
    %v2915 = vunpack.c.l.b16 %v2659
    %v2916 = vunpack.c.l.b16 %v2660
    %v2917 = vunpack.c.l.b16 %v2661
    %v2918 = vunpack.c.l.b16 %v2662
    %v2919 = vunpack.c.l.b16 %v2663
    %v2920 = vunpack.c.l.b16 %v2664
    %v2921 = vunpack.c.l.b16 %v2665
    %v2922 = vunpack.c.l.b16 %v2666
    %v2923 = vunpack.c.l.b16 %v2667
    %v2924 = vunpack.c.l.b16 %v2668
    %v2925 = vunpack.c.l.b16 %v2669
    %v2926 = vunpack.c.l.b16 %v2670
    %v2927 = vunpack.c.l.b16 %v2671
    %v2928 = vunpack.c.l.b16 %v2672
    %v2929 = vunpack.c.l.b16 %v2673
    %v2930 = vunpack.c.l.b16 %v2674
    %v2931 = vunpack.c.l.b16 %v2675
    %v2932 = vunpack.c.l.b16 %v2676
    %v2933 = vunpack.c.l.b16 %v2677
    %v2934 = vunpack.c.l.b16 %v2678
    %v2935 = vunpack.c.l.b16 %v2679
    %v2936 = vunpack.c.l.b16 %v2680
    %v2937 = vunpack.c.l.b16 %v2681
    %v2938 = vunpack.c.l.b16 %v2682
    %v2939 = vunpack.c.l.b16 %v2683
    %v2940 = vunpack.c.l.b16 %v2684
    %v2941 = vunpack.c.l.b16 %v2685
    %v2942 = vunpack.c.l.b16 %v2686
    %v2943 = vunpack.c.l.b16 %v2687
    %v2944 = vunpack.c.l.b16 %v2688
    %v2945 = vunpack.c.l.b16 %v2689
    %v2946 = vunpack.c.l.b16 %v2690
    %v2947 = vunpack.c.l.b16 %v2691
    %v2948 = vunpack.c.l.b16 %v2692
    %v2949 = vunpack.c.l.b16 %v2693
    %v2950 = vunpack.c.l.b16 %v2694
    %v2951 = vunpack.c.l.b16 %v2695
    %v2952 = vunpack.c.l.b16 %v2696
    %v2953 = vunpack.c.l.b16 %v2697
    %v2954 = vunpack.c.l.b16 %v2698
    %v2955 = vunpack.c.l.b16 %v2699
    %v2956 = vunpack.c.l.b16 %v2700
    %v2957 = vunpack.c.l.b16 %v2701
    %v2958 = vunpack.c.l.b16 %v2702
    %v2959 = vunpack.c.l.b16 %v2703
    %v2960 = vunpack.c.l.b16 %v2704
    %v2961 = vunpack.c.l.b16 %v2705
    %v2962 = vunpack.c.l.b16 %v2706
    %v2963 = vunpack.c.l.b16 %v2707
    %v2964 = vunpack.c.l.b16 %v2708
    %v2965 = vunpack.c.l.b16 %v2709
    %v2966 = vunpack.c.l.b16 %v2710
    %v2967 = vunpack.c.l.b16 %v2711
    %v2968 = vunpack.c.l.b16 %v2712
    %v2969 = vunpack.c.l.b16 %v2713
    %v2970 = vunpack.c.l.b16 %v2714
    %v2971 = vunpack.c.l.b16 %v2715
    %v2972 = vunpack.c.l.b16 %v2716
    %v2973 = vunpack.c.l.b16 %v2717
    %v2974 = vunpack.c.l.b16 %v2718
    %v2975 = vunpack.c.l.b16 %v2719
    %v2976 = vunpack.c.l.b16 %v2720
    %v2977 = vunpack.c.l.b16 %v2721
    %v2978 = vunpack.c.l.b16 %v2722
    %v2979 = vunpack.c.l.b16 %v2723
    %v2980 = vunpack.c.l.b16 %v2724
    %v2981 = vunpack.c.l.b16 %v2725
    %v2982 = vunpack.c.l.b16 %v2726
    %v2983 = vunpack.c.l.b16 %v2727
    %v2984 = vunpack.c.l.b16 %v2728
    %v2985 = vunpack.c.l.b16 %v2729
    %v2986 = vunpack.c.l.b16 %v2730
    %v2987 = vunpack.c.l.b16 %v2731
    %v2988 = vunpack.c.l.b16 %v2732
    %v2989 = vunpack.c.l.b16 %v2733
    %v2990 = vunpack.c.l.b16 %v2734
    %v2991 = vunpack.c.l.b16 %v2735
    %v2992 = vunpack.c.l.b16 %v2736
    %v2993 = vunpack.c.l.b16 %v2737
    %v2994 = vunpack.c.l.b16 %v2738
    %v2995 = vunpack.c.l.b16 %v2739
    %v2996 = vunpack.c.l.b16 %v2740
    %v2997 = vunpack.c.l.b16 %v2741
    %v2998 = vunpack.c.l.b16 %v2742
    %v2999 = vunpack.c.l.b16 %v2743
    %v3000 = vunpack.c.l.b16 %v2744
    %v3001 = vunpack.c.l.b16 %v2745
    %v3002 = vunpack.c.l.b16 %v2746
    %v3003 = vunpack.c.l.b16 %v2747
    %v3004 = vpack.c.b16 %v2877, %v2876
    %v3005 = vpack.c.b16 %v2879, %v2878
    %v3006 = vpack.c.b16 %v2881, %v2880
    %v3007 = vpack.c.b16 %v2883, %v2882
    %v3008 = vpack.c.b16 %v2885, %v2884
    %v3009 = vpack.c.b16 %v2887, %v2886
    %v3010 = vpack.c.b16 %v2889, %v2888
    %v3011 = vpack.c.b16 %v2891, %v2890
    %v3012 = vpack.c.b16 %v2893, %v2892
    %v3013 = vpack.c.b16 %v2895, %v2894
    %v3014 = vpack.c.b16 %v2897, %v2896
    %v3015 = vpack.c.b16 %v2899, %v2898
    %v3016 = vpack.c.b16 %v2901, %v2900
    %v3017 = vpack.c.b16 %v2903, %v2902
    %v3018 = vpack.c.b16 %v2905, %v2904
    %v3019 = vpack.c.b16 %v2907, %v2906
    %v3020 = vpack.c.b16 %v2909, %v2908
    %v3021 = vpack.c.b16 %v2911, %v2910
    %v3022 = vpack.c.b16 %v2913, %v2912
    %v3023 = vpack.c.b16 %v2915, %v2914
    %v3024 = vpack.c.b16 %v2917, %v2916
    %v3025 = vpack.c.b16 %v2919, %v2918
    %v3026 = vpack.c.b16 %v2921, %v2920
    %v3027 = vpack.c.b16 %v2923, %v2922
    %v3028 = vpack.c.b16 %v2925, %v2924
    %v3029 = vpack.c.b16 %v2927, %v2926
    %v3030 = vpack.c.b16 %v2929, %v2928
    %v3031 = vpack.c.b16 %v2931, %v2930
    %v3032 = vpack.c.b16 %v2933, %v2932
    %v3033 = vpack.c.b16 %v2935, %v2934
    %v3034 = vpack.c.b16 %v2937, %v2936
    %v3035 = vpack.c.b16 %v2939, %v2938
    %v3036 = vpack.c.b16 %v2941, %v2940
    %v3037 = vpack.c.b16 %v2943, %v2942
    %v3038 = vpack.c.b16 %v2945, %v2944
    %v3039 = vpack.c.b16 %v2947, %v2946
    %v3040 = vpack.c.b16 %v2949, %v2948
    %v3041 = vpack.c.b16 %v2951, %v2950
    %v3042 = vpack.c.b16 %v2953, %v2952
    %v3043 = vpack.c.b16 %v2955, %v2954
    %v3044 = vpack.c.b16 %v2957, %v2956
    %v3045 = vpack.c.b16 %v2959, %v2958
    %v3046 = vpack.c.b16 %v2961, %v2960
    %v3047 = vpack.c.b16 %v2963, %v2962
    %v3048 = vpack.c.b16 %v2965, %v2964
    %v3049 = vpack.c.b16 %v2967, %v2966
    %v3050 = vpack.c.b16 %v2969, %v2968
    %v3051 = vpack.c.b16 %v2971, %v2970
    %v3052 = vpack.c.b16 %v2973, %v2972
    %v3053 = vpack.c.b16 %v2975, %v2974
    %v3054 = vpack.c.b16 %v2977, %v2976
    %v3055 = vpack.c.b16 %v2979, %v2978
    %v3056 = vpack.c.b16 %v2981, %v2980
    %v3057 = vpack.c.b16 %v2983, %v2982
    %v3058 = vpack.c.b16 %v2985, %v2984
    %v3059 = vpack.c.b16 %v2987, %v2986
    %v3060 = vpack.c.b16 %v2989, %v2988
    %v3061 = vpack.c.b16 %v2991, %v2990
    %v3062 = vpack.c.b16 %v2993, %v2992
    %v3063 = vpack.c.b16 %v2995, %v2994
    %v3064 = vpack.c.b16 %v2997, %v2996
    %v3065 = vpack.c.b16 %v2999, %v2998
    %v3066 = vpack.c.b16 %v3001, %v3000
    %v3067 = vpack.c.b16 %v3003, %v3002
    %3132 = vmatpush.bf16.msra.mxu0 %v3011
    %3133 = vmatpush.bf16.msra.mxu0 %v3010
    %3134 = vmatpush.bf16.msra.mxu0 %v3009
    %3135 = vmatpush.bf16.msra.mxu0 %v3008
    %3136 = vmatpush.bf16.msra.mxu0 %v3007
    %3137 = vmatpush.bf16.msra.mxu0 %v3006
    %3138 = vmatpush.bf16.msra.mxu0 %v3005
    %3139 = vmatpush.bf16.msra.mxu0 %v3004
    %3140 = vmatmul.bf16.gmra.mxu0 %v2556
    %v3141 = vpop.f32.mrf.mxu0
    %v3142 = vadd.f32 0.0, %v3141
    %v3143 = vpop.f32.mrf.mxu0
    %v3144 = vadd.f32 0.0, %v3143
    %3145 = vmatmul.bf16.gmra.mxu0 %v2564
    %v3146 = vpop.f32.mrf.mxu0
    %v3147 = vadd.f32 0.0, %v3146
    %v3148 = vpop.f32.mrf.mxu0
    %v3149 = vadd.f32 0.0, %v3148
    %3150 = vmatmul.bf16.gmra.mxu0 %v2572
    %v3151 = vpop.f32.mrf.mxu0
    %v3152 = vadd.f32 0.0, %v3151
    %v3153 = vpop.f32.mrf.mxu0
    %v3154 = vadd.f32 0.0, %v3153
    %3155 = vmatmul.bf16.gmra.mxu0 %v2580
    %v3156 = vpop.f32.mrf.mxu0
    %v3157 = vadd.f32 0.0, %v3156
    %v3158 = vpop.f32.mrf.mxu0
    %v3159 = vadd.f32 0.0, %v3158
    %3160 = vmatmul.bf16.gmra.mxu0 %v2588
    %v3161 = vpop.f32.mrf.mxu0
    %v3162 = vadd.f32 0.0, %v3161
    %v3163 = vpop.f32.mrf.mxu0
    %v3164 = vadd.f32 0.0, %v3163
    %3165 = vmatmul.bf16.gmra.mxu0 %v2596
    %v3166 = vpop.f32.mrf.mxu0
    %v3167 = vadd.f32 0.0, %v3166
    %v3168 = vpop.f32.mrf.mxu0
    %v3169 = vadd.f32 0.0, %v3168
    %3170 = vmatmul.bf16.gmra.mxu0 %v2604
    %v3171 = vpop.f32.mrf.mxu0
    %v3172 = vadd.f32 0.0, %v3171
    %v3173 = vpop.f32.mrf.mxu0
    %v3174 = vadd.f32 0.0, %v3173
    %3175 = vmatmul.bf16.gmra.mxu0 %v2612
    %v3176 = vpop.f32.mrf.mxu0
    %v3177 = vadd.f32 0.0, %v3176
    %v3178 = vpop.f32.mrf.mxu0
    %v3179 = vadd.f32 0.0, %v3178
    %3180 = vdwg.mxu0
    %3181 = vmatpush.bf16.msra.mxu0 %v3019
    %3182 = vmatpush.bf16.msra.mxu0 %v3018
    %3183 = vmatpush.bf16.msra.mxu0 %v3017
    %3184 = vmatpush.bf16.msra.mxu0 %v3016
    %3185 = vmatpush.bf16.msra.mxu0 %v3015
    %3186 = vmatpush.bf16.msra.mxu0 %v3014
    %3187 = vmatpush.bf16.msra.mxu0 %v3013
    %3188 = vmatpush.bf16.msra.mxu0 %v3012
    %3189 = vmatmul.bf16.gmra.mxu0 %v2557
    %v3190 = vpop.f32.mrf.mxu0
    %v3191 = vadd.f32 %v3142, %v3190
    %v3192 = vpop.f32.mrf.mxu0
    %v3193 = vadd.f32 %v3144, %v3192
    %3194 = vmatmul.bf16.gmra.mxu0 %v2565
    %v3195 = vpop.f32.mrf.mxu0
    %v3196 = vadd.f32 %v3147, %v3195
    %v3197 = vpop.f32.mrf.mxu0
    %v3198 = vadd.f32 %v3149, %v3197
    %3199 = vmatmul.bf16.gmra.mxu0 %v2573
    %v3200 = vpop.f32.mrf.mxu0
    %v3201 = vadd.f32 %v3152, %v3200
    %v3202 = vpop.f32.mrf.mxu0
    %v3203 = vadd.f32 %v3154, %v3202
    %3204 = vmatmul.bf16.gmra.mxu0 %v2581
    %v3205 = vpop.f32.mrf.mxu0
    %v3206 = vadd.f32 %v3157, %v3205
    %v3207 = vpop.f32.mrf.mxu0
    %v3208 = vadd.f32 %v3159, %v3207
    %3209 = vmatmul.bf16.gmra.mxu0 %v2589
    %v3210 = vpop.f32.mrf.mxu0
    %v3211 = vadd.f32 %v3162, %v3210
    %v3212 = vpop.f32.mrf.mxu0
    %v3213 = vadd.f32 %v3164, %v3212
    %3214 = vmatmul.bf16.gmra.mxu0 %v2597
    %v3215 = vpop.f32.mrf.mxu0
    %v3216 = vadd.f32 %v3167, %v3215
    %v3217 = vpop.f32.mrf.mxu0
    %v3218 = vadd.f32 %v3169, %v3217
    %3219 = vmatmul.bf16.gmra.mxu0 %v2605
    %v3220 = vpop.f32.mrf.mxu0
    %v3221 = vadd.f32 %v3172, %v3220
    %v3222 = vpop.f32.mrf.mxu0
    %v3223 = vadd.f32 %v3174, %v3222
    %3224 = vmatmul.bf16.gmra.mxu0 %v2613
    %v3225 = vpop.f32.mrf.mxu0
    %v3226 = vadd.f32 %v3177, %v3225
    %v3227 = vpop.f32.mrf.mxu0
    %v3228 = vadd.f32 %v3179, %v3227
    %3229 = vdwg.mxu0
    %3230 = vmatpush.bf16.msra.mxu0 %v3027
    %3231 = vmatpush.bf16.msra.mxu0 %v3026
    %3232 = vmatpush.bf16.msra.mxu0 %v3025
    %3233 = vmatpush.bf16.msra.mxu0 %v3024
    %3234 = vmatpush.bf16.msra.mxu0 %v3023
    %3235 = vmatpush.bf16.msra.mxu0 %v3022
    %3236 = vmatpush.bf16.msra.mxu0 %v3021
    %3237 = vmatpush.bf16.msra.mxu0 %v3020
    %3238 = vmatmul.bf16.gmra.mxu0 %v2558
    %v3239 = vpop.f32.mrf.mxu0
    %v3240 = vadd.f32 %v3191, %v3239
    %v3241 = vpop.f32.mrf.mxu0
    %v3242 = vadd.f32 %v3193, %v3241
    %3243 = vmatmul.bf16.gmra.mxu0 %v2566
    %v3244 = vpop.f32.mrf.mxu0
    %v3245 = vadd.f32 %v3196, %v3244
    %v3246 = vpop.f32.mrf.mxu0
    %v3247 = vadd.f32 %v3198, %v3246
    %3248 = vmatmul.bf16.gmra.mxu0 %v2574
    %v3249 = vpop.f32.mrf.mxu0
    %v3250 = vadd.f32 %v3201, %v3249
    %v3251 = vpop.f32.mrf.mxu0
    %v3252 = vadd.f32 %v3203, %v3251
    %3253 = vmatmul.bf16.gmra.mxu0 %v2582
    %v3254 = vpop.f32.mrf.mxu0
    %v3255 = vadd.f32 %v3206, %v3254
    %v3256 = vpop.f32.mrf.mxu0
    %v3257 = vadd.f32 %v3208, %v3256
    %3258 = vmatmul.bf16.gmra.mxu0 %v2590
    %v3259 = vpop.f32.mrf.mxu0
    %v3260 = vadd.f32 %v3211, %v3259
    %v3261 = vpop.f32.mrf.mxu0
    %v3262 = vadd.f32 %v3213, %v3261
    %3263 = vmatmul.bf16.gmra.mxu0 %v2598
    %v3264 = vpop.f32.mrf.mxu0
    %v3265 = vadd.f32 %v3216, %v3264
    %v3266 = vpop.f32.mrf.mxu0
    %v3267 = vadd.f32 %v3218, %v3266
    %3268 = vmatmul.bf16.gmra.mxu0 %v2606
    %v3269 = vpop.f32.mrf.mxu0
    %v3270 = vadd.f32 %v3221, %v3269
    %v3271 = vpop.f32.mrf.mxu0
    %v3272 = vadd.f32 %v3223, %v3271
    %3273 = vmatmul.bf16.gmra.mxu0 %v2614
    %v3274 = vpop.f32.mrf.mxu0
    %v3275 = vadd.f32 %v3226, %v3274
    %v3276 = vpop.f32.mrf.mxu0
    %v3277 = vadd.f32 %v3228, %v3276
    %3278 = vdwg.mxu0
    %3279 = vmatpush.bf16.msra.mxu0 %v3035
    %3280 = vmatpush.bf16.msra.mxu0 %v3034
    %3281 = vmatpush.bf16.msra.mxu0 %v3033
    %3282 = vmatpush.bf16.msra.mxu0 %v3032
    %3283 = vmatpush.bf16.msra.mxu0 %v3031
    %3284 = vmatpush.bf16.msra.mxu0 %v3030
    %3285 = vmatpush.bf16.msra.mxu0 %v3029
    %3286 = vmatpush.bf16.msra.mxu0 %v3028
    %3287 = vmatmul.bf16.gmra.mxu0 %v2559
    %v3288 = vpop.f32.mrf.mxu0
    %v3289 = vadd.f32 %v3240, %v3288
    %v3290 = vpop.f32.mrf.mxu0
    %v3291 = vadd.f32 %v3242, %v3290
    %3292 = vmatmul.bf16.gmra.mxu0 %v2567
    %v3293 = vpop.f32.mrf.mxu0
    %v3294 = vadd.f32 %v3245, %v3293
    %v3295 = vpop.f32.mrf.mxu0
    %v3296 = vadd.f32 %v3247, %v3295
    %3297 = vmatmul.bf16.gmra.mxu0 %v2575
    %v3298 = vpop.f32.mrf.mxu0
    %v3299 = vadd.f32 %v3250, %v3298
    %v3300 = vpop.f32.mrf.mxu0
    %v3301 = vadd.f32 %v3252, %v3300
    %3302 = vmatmul.bf16.gmra.mxu0 %v2583
    %v3303 = vpop.f32.mrf.mxu0
    %v3304 = vadd.f32 %v3255, %v3303
    %v3305 = vpop.f32.mrf.mxu0
    %v3306 = vadd.f32 %v3257, %v3305
    %3307 = vmatmul.bf16.gmra.mxu0 %v2591
    %v3308 = vpop.f32.mrf.mxu0
    %v3309 = vadd.f32 %v3260, %v3308
    %v3310 = vpop.f32.mrf.mxu0
    %v3311 = vadd.f32 %v3262, %v3310
    %3312 = vmatmul.bf16.gmra.mxu0 %v2599
    %v3313 = vpop.f32.mrf.mxu0
    %v3314 = vadd.f32 %v3265, %v3313
    %v3315 = vpop.f32.mrf.mxu0
    %v3316 = vadd.f32 %v3267, %v3315
    %3317 = vmatmul.bf16.gmra.mxu0 %v2607
    %v3318 = vpop.f32.mrf.mxu0
    %v3319 = vadd.f32 %v3270, %v3318
    %v3320 = vpop.f32.mrf.mxu0
    %v3321 = vadd.f32 %v3272, %v3320
    %3322 = vmatmul.bf16.gmra.mxu0 %v2615
    %v3323 = vpop.f32.mrf.mxu0
    %v3324 = vadd.f32 %v3275, %v3323
    %v3325 = vpop.f32.mrf.mxu0
    %v3326 = vadd.f32 %v3277, %v3325
    %3327 = vdwg.mxu0
    %3328 = vmatpush.bf16.msra.mxu0 %v3043
    %3329 = vmatpush.bf16.msra.mxu0 %v3042
    %3330 = vmatpush.bf16.msra.mxu0 %v3041
    %3331 = vmatpush.bf16.msra.mxu0 %v3040
    %3332 = vmatpush.bf16.msra.mxu0 %v3039
    %3333 = vmatpush.bf16.msra.mxu0 %v3038
    %3334 = vmatpush.bf16.msra.mxu0 %v3037
    %3335 = vmatpush.bf16.msra.mxu0 %v3036
    %3336 = vmatmul.bf16.gmra.mxu0 %v2560
    %v3337 = vpop.f32.mrf.mxu0
    %v3338 = vadd.f32 %v3289, %v3337
    %v3339 = vpop.f32.mrf.mxu0
    %v3340 = vadd.f32 %v3291, %v3339
    %3341 = vmatmul.bf16.gmra.mxu0 %v2568
    %v3342 = vpop.f32.mrf.mxu0
    %v3343 = vadd.f32 %v3294, %v3342
    %v3344 = vpop.f32.mrf.mxu0
    %v3345 = vadd.f32 %v3296, %v3344
    %3346 = vmatmul.bf16.gmra.mxu0 %v2576
    %v3347 = vpop.f32.mrf.mxu0
    %v3348 = vadd.f32 %v3299, %v3347
    %v3349 = vpop.f32.mrf.mxu0
    %v3350 = vadd.f32 %v3301, %v3349
    %3351 = vmatmul.bf16.gmra.mxu0 %v2584
    %v3352 = vpop.f32.mrf.mxu0
    %v3353 = vadd.f32 %v3304, %v3352
    %v3354 = vpop.f32.mrf.mxu0
    %v3355 = vadd.f32 %v3306, %v3354
    %3356 = vmatmul.bf16.gmra.mxu0 %v2592
    %v3357 = vpop.f32.mrf.mxu0
    %v3358 = vadd.f32 %v3309, %v3357
    %v3359 = vpop.f32.mrf.mxu0
    %v3360 = vadd.f32 %v3311, %v3359
    %3361 = vmatmul.bf16.gmra.mxu0 %v2600
    %v3362 = vpop.f32.mrf.mxu0
    %v3363 = vadd.f32 %v3314, %v3362
    %v3364 = vpop.f32.mrf.mxu0
    %v3365 = vadd.f32 %v3316, %v3364
    %3366 = vmatmul.bf16.gmra.mxu0 %v2608
    %v3367 = vpop.f32.mrf.mxu0
    %v3368 = vadd.f32 %v3319, %v3367
    %v3369 = vpop.f32.mrf.mxu0
    %v3370 = vadd.f32 %v3321, %v3369
    %3371 = vmatmul.bf16.gmra.mxu0 %v2616
    %v3372 = vpop.f32.mrf.mxu0
    %v3373 = vadd.f32 %v3324, %v3372
    %v3374 = vpop.f32.mrf.mxu0
    %v3375 = vadd.f32 %v3326, %v3374
    %3376 = vdwg.mxu0
    %3377 = vmatpush.bf16.msra.mxu0 %v3051
    %3378 = vmatpush.bf16.msra.mxu0 %v3050
    %3379 = vmatpush.bf16.msra.mxu0 %v3049
    %3380 = vmatpush.bf16.msra.mxu0 %v3048
    %3381 = vmatpush.bf16.msra.mxu0 %v3047
    %3382 = vmatpush.bf16.msra.mxu0 %v3046
    %3383 = vmatpush.bf16.msra.mxu0 %v3045
    %3384 = vmatpush.bf16.msra.mxu0 %v3044
    %3385 = vmatmul.bf16.gmra.mxu0 %v2561
    %v3386 = vpop.f32.mrf.mxu0
    %v3387 = vadd.f32 %v3338, %v3386
    %v3388 = vpop.f32.mrf.mxu0
    %v3389 = vadd.f32 %v3340, %v3388
    %3390 = vmatmul.bf16.gmra.mxu0 %v2569
    %v3391 = vpop.f32.mrf.mxu0
    %v3392 = vadd.f32 %v3343, %v3391
    %v3393 = vpop.f32.mrf.mxu0
    %v3394 = vadd.f32 %v3345, %v3393
    %3395 = vmatmul.bf16.gmra.mxu0 %v2577
    %v3396 = vpop.f32.mrf.mxu0
    %v3397 = vadd.f32 %v3348, %v3396
    %v3398 = vpop.f32.mrf.mxu0
    %v3399 = vadd.f32 %v3350, %v3398
    %3400 = vmatmul.bf16.gmra.mxu0 %v2585
    %v3401 = vpop.f32.mrf.mxu0
    %v3402 = vadd.f32 %v3353, %v3401
    %v3403 = vpop.f32.mrf.mxu0
    %v3404 = vadd.f32 %v3355, %v3403
    %3405 = vmatmul.bf16.gmra.mxu0 %v2593
    %v3406 = vpop.f32.mrf.mxu0
    %v3407 = vadd.f32 %v3358, %v3406
    %v3408 = vpop.f32.mrf.mxu0
    %v3409 = vadd.f32 %v3360, %v3408
    %3410 = vmatmul.bf16.gmra.mxu0 %v2601
    %v3411 = vpop.f32.mrf.mxu0
    %v3412 = vadd.f32 %v3363, %v3411
    %v3413 = vpop.f32.mrf.mxu0
    %v3414 = vadd.f32 %v3365, %v3413
    %3415 = vmatmul.bf16.gmra.mxu0 %v2609
    %v3416 = vpop.f32.mrf.mxu0
    %v3417 = vadd.f32 %v3368, %v3416
    %v3418 = vpop.f32.mrf.mxu0
    %v3419 = vadd.f32 %v3370, %v3418
    %3420 = vmatmul.bf16.gmra.mxu0 %v2617
    %v3421 = vpop.f32.mrf.mxu0
    %v3422 = vadd.f32 %v3373, %v3421
    %v3423 = vpop.f32.mrf.mxu0
    %v3424 = vadd.f32 %v3375, %v3423
    %3425 = vdwg.mxu0
    %3426 = vmatpush.bf16.msra.mxu0 %v3059
    %3427 = vmatpush.bf16.msra.mxu0 %v3058
    %3428 = vmatpush.bf16.msra.mxu0 %v3057
    %3429 = vmatpush.bf16.msra.mxu0 %v3056
    %3430 = vmatpush.bf16.msra.mxu0 %v3055
    %3431 = vmatpush.bf16.msra.mxu0 %v3054
    %3432 = vmatpush.bf16.msra.mxu0 %v3053
    %3433 = vmatpush.bf16.msra.mxu0 %v3052
    %3434 = vmatmul.bf16.gmra.mxu0 %v2562
    %v3435 = vpop.f32.mrf.mxu0
    %v3436 = vadd.f32 %v3387, %v3435
    %v3437 = vpop.f32.mrf.mxu0
    %v3438 = vadd.f32 %v3389, %v3437
    %3439 = vmatmul.bf16.gmra.mxu0 %v2570
    %v3440 = vpop.f32.mrf.mxu0
    %v3441 = vadd.f32 %v3392, %v3440
    %v3442 = vpop.f32.mrf.mxu0
    %v3443 = vadd.f32 %v3394, %v3442
    %3444 = vmatmul.bf16.gmra.mxu0 %v2578
    %v3445 = vpop.f32.mrf.mxu0
    %v3446 = vadd.f32 %v3397, %v3445
    %v3447 = vpop.f32.mrf.mxu0
    %v3448 = vadd.f32 %v3399, %v3447
    %3449 = vmatmul.bf16.gmra.mxu0 %v2586
    %v3450 = vpop.f32.mrf.mxu0
    %v3451 = vadd.f32 %v3402, %v3450
    %v3452 = vpop.f32.mrf.mxu0
    %v3453 = vadd.f32 %v3404, %v3452
    %3454 = vmatmul.bf16.gmra.mxu0 %v2594
    %v3455 = vpop.f32.mrf.mxu0
    %v3456 = vadd.f32 %v3407, %v3455
    %v3457 = vpop.f32.mrf.mxu0
    %v3458 = vadd.f32 %v3409, %v3457
    %3459 = vmatmul.bf16.gmra.mxu0 %v2602
    %v3460 = vpop.f32.mrf.mxu0
    %v3461 = vadd.f32 %v3412, %v3460
    %v3462 = vpop.f32.mrf.mxu0
    %v3463 = vadd.f32 %v3414, %v3462
    %3464 = vmatmul.bf16.gmra.mxu0 %v2610
    %v3465 = vpop.f32.mrf.mxu0
    %v3466 = vadd.f32 %v3417, %v3465
    %v3467 = vpop.f32.mrf.mxu0
    %v3468 = vadd.f32 %v3419, %v3467
    %3469 = vmatmul.bf16.gmra.mxu0 %v2618
    %v3470 = vpop.f32.mrf.mxu0
    %v3471 = vadd.f32 %v3422, %v3470
    %v3472 = vpop.f32.mrf.mxu0
    %v3473 = vadd.f32 %v3424, %v3472
    %3474 = vdwg.mxu0
    %3475 = vmatpush.bf16.msra.mxu0 %v3067
    %3476 = vmatpush.bf16.msra.mxu0 %v3066
    %3477 = vmatpush.bf16.msra.mxu0 %v3065
    %3478 = vmatpush.bf16.msra.mxu0 %v3064
    %3479 = vmatpush.bf16.msra.mxu0 %v3063
    %3480 = vmatpush.bf16.msra.mxu0 %v3062
    %3481 = vmatpush.bf16.msra.mxu0 %v3061
    %3482 = vmatpush.bf16.msra.mxu0 %v3060
    %3483 = vmatmul.bf16.gmra.mxu0 %v2563
    %v3484 = vpop.f32.mrf.mxu0
    %v3485 = vadd.f32 %v3436, %v3484
    %v3486 = vpop.f32.mrf.mxu0
    %v3487 = vadd.f32 %v3438, %v3486
    %3488 = vmatmul.bf16.gmra.mxu0 %v2571
    %v3489 = vpop.f32.mrf.mxu0
    %v3490 = vadd.f32 %v3441, %v3489
    %v3491 = vpop.f32.mrf.mxu0
    %v3492 = vadd.f32 %v3443, %v3491
    %3493 = vmatmul.bf16.gmra.mxu0 %v2579
    %v3494 = vpop.f32.mrf.mxu0
    %v3495 = vadd.f32 %v3446, %v3494
    %v3496 = vpop.f32.mrf.mxu0
    %v3497 = vadd.f32 %v3448, %v3496
    %3498 = vmatmul.bf16.gmra.mxu0 %v2587
    %v3499 = vpop.f32.mrf.mxu0
    %v3500 = vadd.f32 %v3451, %v3499
    %v3501 = vpop.f32.mrf.mxu0
    %v3502 = vadd.f32 %v3453, %v3501
    %3503 = vmatmul.bf16.gmra.mxu0 %v2595
    %v3504 = vpop.f32.mrf.mxu0
    %v3505 = vadd.f32 %v3456, %v3504
    %v3506 = vpop.f32.mrf.mxu0
    %v3507 = vadd.f32 %v3458, %v3506
    %3508 = vmatmul.bf16.gmra.mxu0 %v2603
    %v3509 = vpop.f32.mrf.mxu0
    %v3510 = vadd.f32 %v3461, %v3509
    %v3511 = vpop.f32.mrf.mxu0
    %v3512 = vadd.f32 %v3463, %v3511
    %3513 = vmatmul.bf16.gmra.mxu0 %v2611
    %v3514 = vpop.f32.mrf.mxu0
    %v3515 = vadd.f32 %v3466, %v3514
    %v3516 = vpop.f32.mrf.mxu0
    %v3517 = vadd.f32 %v3468, %v3516
    %3518 = vmatmul.bf16.gmra.mxu0 %v2619
    %v3519 = vpop.f32.mrf.mxu0
    %v3520 = vadd.f32 %v3471, %v3519
    %v3521 = vpop.f32.mrf.mxu0
    %v3522 = vadd.f32 %v3473, %v3521
    %3523 = vdwg.mxu0
    %v3524 = vmul.f32 %v2028, %v82
    %v3525 = vmul.f32 %v2029, %v82
    %v3526 = vmul.f32 %v2030, %v82
    %v3527 = vmul.f32 %v2031, %v82
    %v3528 = vmul.f32 %v2032, %v82
    %v3529 = vmul.f32 %v2033, %v82
    %v3530 = vmul.f32 %v2034, %v82
    %v3531 = vmul.f32 %v2035, %v82
    %v3532 = vmul.f32 %v2036, %v82
    %v3533 = vmul.f32 %v2037, %v82
    %v3534 = vmul.f32 %v2038, %v82
    %v3535 = vmul.f32 %v2039, %v82
    %v3536 = vmul.f32 %v2040, %v82
    %v3537 = vmul.f32 %v2041, %v82
    %v3538 = vmul.f32 %v2042, %v82
    %v3539 = vmul.f32 %v2043, %v82
    %v3540 = vsub.f32 %v3485, %v3524
    %v3541 = vsub.f32 %v3487, %v3525
    %v3542 = vsub.f32 %v3490, %v3526
    %v3543 = vsub.f32 %v3492, %v3527
    %v3544 = vsub.f32 %v3495, %v3528
    %v3545 = vsub.f32 %v3497, %v3529
    %v3546 = vsub.f32 %v3500, %v3530
    %v3547 = vsub.f32 %v3502, %v3531
    %v3548 = vsub.f32 %v3505, %v3532
    %v3549 = vsub.f32 %v3507, %v3533
    %v3550 = vsub.f32 %v3510, %v3534
    %v3551 = vsub.f32 %v3512, %v3535
    %v3552 = vsub.f32 %v3515, %v3536
    %v3553 = vsub.f32 %v3517, %v3537
    %v3554 = vsub.f32 %v3520, %v3538
    %v3555 = vsub.f32 %v3522, %v3539
    %v3556 = vmul.f32 %v2405, %v3540
    %v3557 = vmul.f32 %v2415, %v3541
    %v3558 = vmul.f32 %v2425, %v3542
    %v3559 = vmul.f32 %v2435, %v3543
    %v3560 = vmul.f32 %v2445, %v3544
    %v3561 = vmul.f32 %v2455, %v3545
    %v3562 = vmul.f32 %v2465, %v3546
    %v3563 = vmul.f32 %v2475, %v3547
    %v3564 = vmul.f32 %v2485, %v3548
    %v3565 = vmul.f32 %v2495, %v3549
    %v3566 = vmul.f32 %v2505, %v3550
    %v3567 = vmul.f32 %v2515, %v3551
    %v3568 = vmul.f32 %v2525, %v3552
    %v3569 = vmul.f32 %v2535, %v3553
    %v3570 = vmul.f32 %v2545, %v3554
    %v3571 = vmul.f32 %v2555, %v3555
    %v3572 = vadd.f32 %v3556, %v83
    %v3573 = vadd.f32 %v3557, %v83
    %v3574 = vadd.f32 %v3558, %v83
    %v3575 = vadd.f32 %v3559, %v83
    %v3576 = vadd.f32 %v3560, %v83
    %v3577 = vadd.f32 %v3561, %v83
    %v3578 = vadd.f32 %v3562, %v83
    %v3579 = vadd.f32 %v3563, %v83
    %v3580 = vadd.f32 %v3564, %v83
    %v3581 = vadd.f32 %v3565, %v83
    %v3582 = vadd.f32 %v3566, %v83
    %v3583 = vadd.f32 %v3567, %v83
    %v3584 = vadd.f32 %v3568, %v83
    %v3585 = vadd.f32 %v3569, %v83
    %v3586 = vadd.f32 %v3570, %v83
    %v3587 = vadd.f32 %v3571, %v83
    %v3588 = vpack.c.bf16 %v3572, %v3572
    %v3589 = vpack.c.bf16 %v3573, %v3573
    %v3590 = vpack.c.bf16 %v3574, %v3574
    %v3591 = vpack.c.bf16 %v3575, %v3575
    %v3592 = vpack.c.bf16 %v3576, %v3576
    %v3593 = vpack.c.bf16 %v3577, %v3577
    %v3594 = vpack.c.bf16 %v3578, %v3578
    %v3595 = vpack.c.bf16 %v3579, %v3579
    %v3596 = vpack.c.bf16 %v3580, %v3580
    %v3597 = vpack.c.bf16 %v3581, %v3581
    %v3598 = vpack.c.bf16 %v3582, %v3582
    %v3599 = vpack.c.bf16 %v3583, %v3583
    %v3600 = vpack.c.bf16 %v3584, %v3584
    %v3601 = vpack.c.bf16 %v3585, %v3585
    %v3602 = vpack.c.bf16 %v3586, %v3586
    %v3603 = vpack.c.bf16 %v3587, %v3587
    %3604 = vst [vmem:[%s5] sm:$0xf] %v3588
    %3605 = vst [vmem:[%s5 + $0x4] sm:$0xf] %v3589
    %3606 = vst [vmem:[%s5 + $0x8] sm:$0xf] %v3590
    %3607 = vst [vmem:[%s5 + $0xc] sm:$0xf] %v3591
    %3608 = vst [vmem:[%s5 + $0x10] sm:$0xf] %v3592
    %3609 = vst [vmem:[%s5 + $0x14] sm:$0xf] %v3593
    %3610 = vst [vmem:[%s5 + $0x18] sm:$0xf] %v3594
    %3611 = vst [vmem:[%s5 + $0x1c] sm:$0xf] %v3595
    %3612 = vst [vmem:[%s5 + $0x20] sm:$0xf] %v3596
    %3613 = vst [vmem:[%s5 + $0x24] sm:$0xf] %v3597
    %3614 = vst [vmem:[%s5 + $0x28] sm:$0xf] %v3598
    %3615 = vst [vmem:[%s5 + $0x2c] sm:$0xf] %v3599
    %3616 = vst [vmem:[%s5 + $0x30] sm:$0xf] %v3600
    %3617 = vst [vmem:[%s5 + $0x34] sm:$0xf] %v3601
    %3618 = vst [vmem:[%s5 + $0x38] sm:$0xf] %v3602
    %3619 = vst [vmem:[%s5 + $0x3c] sm:$0xf] %v3603
    // Predicated region
    $region30: #{pipeline_forward.1} parent=1 // pred_check
      _
    $region31: #{pipeline_forward.1} parent=1 // pred_check_branch
      %3621 = sbr.rel (0) target = $region33
    $region32: #{pipeline_forward.1} parent=1 // pred_region
      _
    $region33: #{pipeline_forward.1} parent=1 // pred_fallthru
      _
    // Predicated region
    $region34: #{pipeline_forward.1} parent=1 // pred_check
      _
    $region35: #{pipeline_forward.1} parent=1 // pred_check_branch
      %3623 = sbr.rel (0) target = $region37
    $region36: #{pipeline_forward.1} parent=1 // pred_region
      _
    $region37: #{pipeline_forward.1} parent=1 // pred_fallthru
      _
    %3624 = vsyncpa [#allocation3], 1
    %3625 = vsyncpa [#allocation5], 1

</llo_original>
